<compile_context>
chip_gen: v7x
topology: tpu7x:2x2x1
jax: 0.10.0
libtpu: 0.0.40
codegen_flags: <defaults>
</compile_context>

<pallas_src>
import functools

import jax
import jax.numpy as jnp
import numpy as np
from jax import lax
from jax.experimental import pallas as pl
from jax.experimental.pallas import tpu as pltpu


# ----------------------------------------------------------------------------
# Trace-time constant builders (numpy -> baked into the jit as constants).
# ----------------------------------------------------------------------------
def _maxpool_select(h, w):
    """(4*(h//2)*(w//2), h*w) 0/1 matrix.  Row k*n_out + (h2*wo + w2) selects the
    input position (2*h2+dh, 2*w2+dw) with k = dh*2 + dw.  MaxPool2d(2) is then
    an elementwise max over the 4 row-blocks of (this @ act)."""
    ho, wo = h // 2, w // 2
    n_out = ho * wo
    m = np.zeros((4 * n_out, h * w), np.float32)
    for dh in range(2):
        for dw in range(2):
            k = dh * 2 + dw
            for h2 in range(ho):
                for w2 in range(wo):
                    m[k * n_out + h2 * wo + w2,
                      (2 * h2 + dh) * w + (2 * w2 + dw)] = 1.0
    return m


def _conv_gather(h, w):
    """(9*h*w, h*w) 0/1 matrix.  Row block t = dy*3+dx maps output (y, x) to the
    input neighbour (y+dy-1, x+dx-1); out-of-bounds rows are all-zero, which
    reproduces the zero-padding of Conv2d(padding=1)."""
    n = h * w
    m = np.zeros((9 * n, n), np.float32)
    for dy in range(3):
        for dx in range(3):
            t = dy * 3 + dx
            for y in range(h):
                for x in range(w):
                    yy, xx = y + dy - 1, x + dx - 1
                    if 0 <= yy < h and 0 <= xx < w:
                        m[t * n + y * w + x, yy * w + xx] = 1.0
    return m


# ----------------------------------------------------------------------------
# The single fused Pallas kernel (one grid step == one image).
# ----------------------------------------------------------------------------
def fused_forward_kernel(p1_ref, w1_ref, s1_ref, b1_ref,
                         mp1_ref,
                         g2_ref, w2_ref, s2_ref, b2_ref,
                         mp2_ref,
                         wq_ref, bq_ref, wk_ref, bk_ref, wv_ref, bv_ref,
                         gamma_ref,
                         g3_ref, w3_ref, s3_ref, b3_ref,
                         o_ref, *, n1, n2, n3):
    f32, bf16 = jnp.float32, jnp.bfloat16

    # ---- conv1 (im2col patches from wrapper) + folded BN + ReLU ------------
    a1 = jnp.dot(p1_ref[...], w1_ref[...], preferred_element_type=f32)   # (n1, 32)
    a1 = jnp.maximum(a1 * s1_ref[...] + b1_ref[...], 0.0).astype(bf16)

    # ---- MaxPool2d(2): selection matmul + max over the 4 offsets -----------
    y1 = jnp.dot(mp1_ref[...], a1, preferred_element_type=f32)           # (4*n2, 32)
    pool1 = jnp.maximum(jnp.maximum(y1[0:n2], y1[n2:2 * n2]),
                        jnp.maximum(y1[2 * n2:3 * n2], y1[3 * n2:4 * n2]))
    pool1 = pool1.astype(bf16)                                           # (n2, 32)

    # ---- conv2: zero-padded 3x3 gather (selection matmul) + 9 tap dots -----
    gth2 = jnp.dot(g2_ref[...], pool1,
                   preferred_element_type=f32).astype(bf16)              # (9*n2, 32)
    cout2 = w2_ref.shape[2]
    acc2 = jnp.zeros((n2, cout2), f32)
    for t in range(9):                                                   # unrolled
        acc2 = acc2 + jnp.dot(gth2[t * n2:(t + 1) * n2], w2_ref[t],
                              preferred_element_type=f32)
    a2 = jnp.maximum(acc2 * s2_ref[...] + b2_ref[...], 0.0).astype(bf16)  # (n2, 64)

    # ---- MaxPool2d(2) --------------------------------------------------------
    y2 = jnp.dot(mp2_ref[...], a2, preferred_element_type=f32)           # (4*n3, 64)
    xa = jnp.maximum(jnp.maximum(y2[0:n3], y2[n3:2 * n3]),
                     jnp.maximum(y2[2 * n3:3 * n3], y2[3 * n3:4 * n3]))  # (n3, 64) f32
    xa_bf = xa.astype(bf16)

    # ---- SelfAttention (exact PyTorch formulation) ---------------------------
    q = jnp.dot(xa_bf, wq_ref[...], preferred_element_type=f32) + bq_ref[...]
    k = jnp.dot(xa_bf, wk_ref[...], preferred_element_type=f32) + bk_ref[...]
    v = jnp.dot(xa_bf, wv_ref[...], preferred_element_type=f32) + bv_ref[...]
    energy = lax.dot_general(q.astype(bf16), k.astype(bf16),
                             (((1,), (1,)), ((), ())),
                             preferred_element_type=f32)                 # (n3, n3)
    energy = energy - jnp.max(energy, axis=-1, keepdims=True)
    pexp = jnp.exp(energy)
    attn = pexp * pl.reciprocal(jnp.sum(pexp, axis=-1, keepdims=True), approx=True)
    att = jnp.dot(attn.astype(bf16), v.astype(bf16),
                  preferred_element_type=f32)                            # (n3, 64)
    y_att = (gamma_ref[0] * att + xa).astype(bf16)                       # gamma*out + x

    # ---- conv3 + BN + ReLU + AdaptiveAvgPool2d((1,1)) ------------------------
    gth3 = jnp.dot(g3_ref[...], y_att,
                   preferred_element_type=f32).astype(bf16)              # (9*n3, 64)
    cout3 = w3_ref.shape[2]
    acc3 = jnp.zeros((n3, cout3), f32)
    for t in range(9):
        acc3 = acc3 + jnp.dot(gth3[t * n3:(t + 1) * n3], w3_ref[t],
                              preferred_element_type=f32)
    a3 = jnp.maximum(acc3 * s3_ref[...] + b3_ref[...], 0.0)              # (n3, 128) f32
    pooled = jnp.mean(a3, axis=0, keepdims=True)                         # (1, 128)
    o_ref[...] = jnp.broadcast_to(pooled, o_ref.shape)


# ----------------------------------------------------------------------------
# Wrapper: builds conv1 patches + constants, one pallas_call, tiny FC in XLA.
# ----------------------------------------------------------------------------
def gating_cnn_with_attention(params, x_nchw, *, eps=1e-5):
    """x_nchw: (B, 3, H, W) float32 (PyTorch layout). Returns (B, num_classes)."""
    B, c_in, H, W = x_nchw.shape
    H2, W2 = H // 2, W // 2
    H3, W3 = H2 // 2, W2 // 2
    n1, n2, n3 = H * W, H2 * W2, H3 * W3

    # conv1 im2col in the wrapper (tiny: (B, H*W, 27->32) bf16, ~30 KB total).
    x = jnp.transpose(x_nchw, (0, 2, 3, 1))                  # NCHW -> NHWC
    xp = jnp.pad(x, ((0, 0), (1, 1), (1, 1), (0, 0)))
    cols = [xp[:, dy:dy + H, dx:dx + W, :] for dy in range(3) for dx in range(3)]
    k1 = 9 * c_in
    k1p = -(-k1 // 8) * 8                                     # pad K to a multiple of 8
    p1 = jnp.concatenate(cols, axis=-1).reshape(B, n1, k1)
    p1 = jnp.pad(p1, ((0, 0), (0, 0), (0, k1p - k1))).astype(jnp.bfloat16)

    # Weights: bf16 operands for the MXU; BN folded (eval-mode running stats).
    c1 = params["conv1_w"].shape[-1]
    c2 = params["conv2_w"].shape[-1]
    c3 = params["conv3_w"].shape[-1]
    w1 = jnp.pad(params["conv1_w"].reshape(k1, c1),
                 ((0, k1p - k1), (0, 0))).astype(jnp.bfloat16)            # (k1p, 32)
    w2 = params["conv2_w"].reshape(9, c1, c2).astype(jnp.bfloat16)        # (9, 32, 64)
    w3 = params["conv3_w"].reshape(9, c2, c3).astype(jnp.bfloat16)        # (9, 64, 128)

    def fold_bn(conv_b, bn, c):
        s = bn["gamma"] / jnp.sqrt(bn["var"] + eps)
        scale = s.reshape(1, c).astype(jnp.float32)
        bias = ((conv_b - bn["mean"]) * s + bn["beta"]).reshape(1, c).astype(jnp.float32)
        return scale, bias

    s1, b1 = fold_bn(params["conv1_b"], params["bn1"], c1)
    s2, b2 = fold_bn(params["conv2_b"], params["bn2"], c2)
    s3, b3 = fold_bn(params["conv3_b"], params["bn3"], c3)

    # Constant 0/1 selection matrices (built in numpy at trace time).
    mp1 = jnp.asarray(_maxpool_select(H, W), jnp.bfloat16)    # (4*n2, n1)
    g2 = jnp.asarray(_conv_gather(H2, W2), jnp.bfloat16)      # (9*n2, n2)
    mp2 = jnp.asarray(_maxpool_select(H2, W2), jnp.bfloat16)  # (4*n3, n2)
    g3 = jnp.asarray(_conv_gather(H3, W3), jnp.bfloat16)      # (9*n3, n3)

    wq = params["att_wq"].astype(jnp.bfloat16)
    wk = params["att_wk"].astype(jnp.bfloat16)
    wv = params["att_wv"].astype(jnp.bfloat16)
    bq = params["att_bq"].astype(jnp.float32)
    bk = params["att_bk"].astype(jnp.float32)
    bv = params["att_bv"].astype(jnp.float32)
    gamma = params["att_gamma"].astype(jnp.float32).reshape(1)

    def cspec(a):                                             # whole-array, grid-constant block
        zeros = (0,) * a.ndim
        return pl.BlockSpec(a.shape, lambda b, _z=zeros: _z)

    kernel = functools.partial(fused_forward_kernel, n1=n1, n2=n2, n3=n3)
    out = pl.pallas_call(
        kernel,
        out_shape=jax.ShapeDtypeStruct((B, 8, c3), jnp.float32),
        grid=(B,),
        in_specs=[
            pl.BlockSpec((None, n1, k1p), lambda b: (b, 0, 0)),   # conv1 patches
            cspec(w1), cspec(s1), cspec(b1),
            cspec(mp1),
            cspec(g2), cspec(w2), cspec(s2), cspec(b2),
            cspec(mp2),
            cspec(wq), cspec(bq), cspec(wk), cspec(bk), cspec(wv), cspec(bv),
            pl.BlockSpec(memory_space=pltpu.MemorySpace.SMEM),    # gamma (1,)
            cspec(g3), cspec(w3), cspec(s3), cspec(b3),
        ],
        out_specs=pl.BlockSpec((None, 8, c3), lambda b: (b, 0, 0)),
        compiler_params=pltpu.CompilerParams(dimension_semantics=("parallel",)),
    )(p1, w1, s1, b1, mp1, g2, w2, s2, b2, mp2,
      wq, bq, wk, bk, wv, bv, gamma, g3, w3, s3, b3)

    pooled = out[:, 0, :]                                     # (B, 128) f32
    # Classifier: Flatten + Linear(128, num_classes) -- 4 output lanes, left to XLA.
    return jnp.dot(pooled, params["fc_w"]) + params["fc_b"]


# ----------------------------------------------------------------------------
# Deterministic parameter construction (shapes from the PyTorch __init__).
# ----------------------------------------------------------------------------
def init_params(key, num_classes=4):
    ks = jax.random.split(key, 20)
    p = {}

    def conv_w(k, cin, cout):
        std = 1.0 / np.sqrt(9 * cin)
        return jax.random.normal(k, (3, 3, cin, cout), jnp.float32) * std

    def bn(k, c):
        k1, k2, k3 = jax.random.split(k, 3)
        return dict(
            gamma=1.0 + 0.1 * jax.random.normal(k1, (c,), jnp.float32),
            beta=0.1 * jax.random.normal(k2, (c,), jnp.float32),
            mean=0.1 * jax.random.normal(k3, (c,), jnp.float32),
            var=jnp.ones((c,), jnp.float32),
        )

    p["conv1_w"] = conv_w(ks[0], 3, 32)
    p["conv1_b"] = 0.05 * jax.random.normal(ks[1], (32,), jnp.float32)
    p["bn1"] = bn(ks[2], 32)
    p["conv2_w"] = conv_w(ks[3], 32, 64)
    p["conv2_b"] = 0.05 * jax.random.normal(ks[4], (64,), jnp.float32)
    p["bn2"] = bn(ks[5], 64)
    # SelfAttention(64): 1x1 convs -> (C_in, C_out) matrices + biases.
    p["att_wq"] = jax.random.normal(ks[6], (64, 8), jnp.float32) * (1.0 / 8.0)
    p["att_bq"] = 0.05 * jax.random.normal(ks[7], (1, 8), jnp.float32)
    p["att_wk"] = jax.random.normal(ks[8], (64, 8), jnp.float32) * (1.0 / 8.0)
    p["att_bk"] = 0.05 * jax.random.normal(ks[9], (1, 8), jnp.float32)
    p["att_wv"] = jax.random.normal(ks[10], (64, 64), jnp.float32) * (1.0 / 8.0)
    p["att_bv"] = 0.05 * jax.random.normal(ks[11], (1, 64), jnp.float32)
    p["att_gamma"] = jnp.zeros((1,), jnp.float32)      # nn.Parameter(torch.zeros(1))
    p["conv3_w"] = conv_w(ks[12], 64, 128)
    p["conv3_b"] = 0.05 * jax.random.normal(ks[13], (128,), jnp.float32)
    p["bn3"] = bn(ks[14], 128)
    p["fc_w"] = jax.random.normal(ks[15], (128, num_classes), jnp.float32) * (
        1.0 / np.sqrt(128.0))
    p["fc_b"] = 0.05 * jax.random.normal(ks[16], (num_classes,), jnp.float32)
    return p


# ----------------------------------------------------------------------------
if __name__ == "__main__":
    key = jax.random.PRNGKey(0)
    k_param, k_input = jax.random.split(key)

    params = init_params(k_param, num_classes=4)
    x = jax.random.normal(k_input, (2, 3, 16, 16), jnp.float32)   # NCHW input

    logits = jax.jit(gating_cnn_with_attention)(params, x)
    logits = jax.block_until_ready(logits)

    assert logits.shape == (2, 4), logits.shape
    assert bool(jnp.all(jnp.isfinite(logits)))
    print("KERNEL_OK")
</pallas_src>

<mosaic_0001>
module attributes {stable_mosaic.version = 11 : i64} {
  func.func @fused_forward_kernel(%arg0: i32, %arg1: memref<1x256x32xbf16, #tpu.memory_space<vmem>>, %arg2: memref<32x32xbf16, #tpu.memory_space<vmem>>, %arg3: memref<1x32xf32, #tpu.memory_space<vmem>>, %arg4: memref<1x32xf32, #tpu.memory_space<vmem>>, %arg5: memref<256x256xbf16, #tpu.memory_space<vmem>>, %arg6: memref<576x64xbf16, #tpu.memory_space<vmem>>, %arg7: memref<9x32x64xbf16, #tpu.memory_space<vmem>>, %arg8: memref<1x64xf32, #tpu.memory_space<vmem>>, %arg9: memref<1x64xf32, #tpu.memory_space<vmem>>, %arg10: memref<64x64xbf16, #tpu.memory_space<vmem>>, %arg11: memref<64x8xbf16, #tpu.memory_space<vmem>>, %arg12: memref<1x8xf32, #tpu.memory_space<vmem>>, %arg13: memref<64x8xbf16, #tpu.memory_space<vmem>>, %arg14: memref<1x8xf32, #tpu.memory_space<vmem>>, %arg15: memref<64x64xbf16, #tpu.memory_space<vmem>>, %arg16: memref<1x64xf32, #tpu.memory_space<vmem>>, %arg17: memref<1xf32, #tpu.memory_space<smem>>, %arg18: memref<144x16xbf16, #tpu.memory_space<vmem>>, %arg19: memref<9x64x128xbf16, #tpu.memory_space<vmem>>, %arg20: memref<1x128xf32, #tpu.memory_space<vmem>>, %arg21: memref<1x128xf32, #tpu.memory_space<vmem>>, %arg22: memref<1x8x128xf32, #tpu.memory_space<vmem>>) attributes {dimension_semantics = [#tpu.dimension_semantics<parallel>], iteration_bounds = array<i64: 2>, scalar_prefetch = 0 : i64, scratch_operands = 0 : i64, tpu.core_type = #tpu.core_type<tc>, window_params = [{transform_indices = @transform_0, window_bounds = array<i64: 1, 256, 32>}, {pipeline_mode = #tpu.pipeline_mode<synchronous>, transform_indices = @transform_1, window_bounds = array<i64: 32, 32>}, {pipeline_mode = #tpu.pipeline_mode<synchronous>, transform_indices = @transform_2, window_bounds = array<i64: 1, 32>}, {pipeline_mode = #tpu.pipeline_mode<synchronous>, transform_indices = @transform_3, window_bounds = array<i64: 1, 32>}, {pipeline_mode = #tpu.pipeline_mode<synchronous>, transform_indices = @transform_4, window_bounds = array<i64: 256, 256>}, {pipeline_mode = #tpu.pipeline_mode<synchronous>, transform_indices = @transform_5, window_bounds = array<i64: 576, 64>}, {pipeline_mode = #tpu.pipeline_mode<synchronous>, transform_indices = @transform_6, window_bounds = array<i64: 9, 32, 64>}, {pipeline_mode = #tpu.pipeline_mode<synchronous>, transform_indices = @transform_7, window_bounds = array<i64: 1, 64>}, {pipeline_mode = #tpu.pipeline_mode<synchronous>, transform_indices = @transform_8, window_bounds = array<i64: 1, 64>}, {pipeline_mode = #tpu.pipeline_mode<synchronous>, transform_indices = @transform_9, window_bounds = array<i64: 64, 64>}, {pipeline_mode = #tpu.pipeline_mode<synchronous>, transform_indices = @transform_10, window_bounds = array<i64: 64, 8>}, {pipeline_mode = #tpu.pipeline_mode<synchronous>, transform_indices = @transform_11, window_bounds = array<i64: 1, 8>}, {pipeline_mode = #tpu.pipeline_mode<synchronous>, transform_indices = @transform_12, window_bounds = array<i64: 64, 8>}, {pipeline_mode = #tpu.pipeline_mode<synchronous>, transform_indices = @transform_13, window_bounds = array<i64: 1, 8>}, {pipeline_mode = #tpu.pipeline_mode<synchronous>, transform_indices = @transform_14, window_bounds = array<i64: 64, 64>}, {pipeline_mode = #tpu.pipeline_mode<synchronous>, transform_indices = @transform_15, window_bounds = array<i64: 1, 64>}, {transform_indices = @transform_16, window_bounds = array<i64: 1>}, {pipeline_mode = #tpu.pipeline_mode<synchronous>, transform_indices = @transform_17, window_bounds = array<i64: 144, 16>}, {pipeline_mode = #tpu.pipeline_mode<synchronous>, transform_indices = @transform_18, window_bounds = array<i64: 9, 64, 128>}, {pipeline_mode = #tpu.pipeline_mode<synchronous>, transform_indices = @transform_19, window_bounds = array<i64: 1, 128>}, {pipeline_mode = #tpu.pipeline_mode<synchronous>, transform_indices = @transform_20, window_bounds = array<i64: 1, 128>}, {transform_indices = @transform_21, window_bounds = array<i64: 1, 8, 128>}]} {
    %c0 = arith.constant 0 : index
    %c0_0 = arith.constant 0 : index
    %c0_1 = arith.constant 0 : index
    %0 = vector.load %arg1[%c0, %c0_0, %c0_1] : memref<1x256x32xbf16, #tpu.memory_space<vmem>>, vector<1x256x32xbf16>
    %1 = vector.shape_cast %0 : vector<1x256x32xbf16> to vector<256x32xbf16>
    %c0_2 = arith.constant 0 : index
    %c0_3 = arith.constant 0 : index
    %2 = vector.load %arg2[%c0_2, %c0_3] : memref<32x32xbf16, #tpu.memory_space<vmem>>, vector<32x32xbf16>
    %cst = arith.constant dense<0.000000e+00> : vector<256x32xf32>
    %3 = tpu.matmul %1, %2, %cst {dimension_numbers = #tpu.dot_dimension_numbers<[1], [0], [0], [1], [0, 0, 1, 1], [], []>} : vector<256x32xbf16>, vector<32x32xbf16>, vector<256x32xf32> -> vector<256x32xf32>
    %c0_4 = arith.constant 0 : index
    %c0_5 = arith.constant 0 : index
    %4 = vector.load %arg3[%c0_4, %c0_5] : memref<1x32xf32, #tpu.memory_space<vmem>>, vector<1x32xf32>
    %5 = vector.broadcast %4 : vector<1x32xf32> to vector<256x32xf32>
    %6 = arith.mulf %3, %5 : vector<256x32xf32>
    %c0_6 = arith.constant 0 : index
    %c0_7 = arith.constant 0 : index
    %7 = vector.load %arg4[%c0_6, %c0_7] : memref<1x32xf32, #tpu.memory_space<vmem>>, vector<1x32xf32>
    %8 = vector.broadcast %7 : vector<1x32xf32> to vector<256x32xf32>
    %9 = arith.addf %6, %8 : vector<256x32xf32>
    %cst_8 = arith.constant 0.000000e+00 : f32
    %10 = vector.broadcast %cst_8 : f32 to vector<256x32xf32>
    %11 = arith.maximumf %9, %10 : vector<256x32xf32>
    %12 = arith.truncf %11 : vector<256x32xf32> to vector<256x32xbf16>
    %c0_9 = arith.constant 0 : index
    %c0_10 = arith.constant 0 : index
    %13 = vector.load %arg5[%c0_9, %c0_10] : memref<256x256xbf16, #tpu.memory_space<vmem>>, vector<256x256xbf16>
    %cst_11 = arith.constant dense<0.000000e+00> : vector<256x32xf32>
    %14 = tpu.matmul %13, %12, %cst_11 {dimension_numbers = #tpu.dot_dimension_numbers<[1], [0], [0], [1], [0, 0, 1, 1], [], []>} : vector<256x256xbf16>, vector<256x32xbf16>, vector<256x32xf32> -> vector<256x32xf32>
    %15 = vector.extract_strided_slice %14 {offsets = [0, 0], sizes = [64, 32], strides = [1, 1]} : vector<256x32xf32> to vector<64x32xf32>
    %16 = vector.extract_strided_slice %14 {offsets = [64, 0], sizes = [64, 32], strides = [1, 1]} : vector<256x32xf32> to vector<64x32xf32>
    %17 = arith.maximumf %15, %16 : vector<64x32xf32>
    %18 = vector.extract_strided_slice %14 {offsets = [128, 0], sizes = [64, 32], strides = [1, 1]} : vector<256x32xf32> to vector<64x32xf32>
    %19 = vector.extract_strided_slice %14 {offsets = [192, 0], sizes = [64, 32], strides = [1, 1]} : vector<256x32xf32> to vector<64x32xf32>
    %20 = arith.maximumf %18, %19 : vector<64x32xf32>
    %21 = arith.maximumf %17, %20 : vector<64x32xf32>
    %22 = arith.truncf %21 : vector<64x32xf32> to vector<64x32xbf16>
    %c0_12 = arith.constant 0 : index
    %c0_13 = arith.constant 0 : index
    %23 = vector.load %arg6[%c0_12, %c0_13] : memref<576x64xbf16, #tpu.memory_space<vmem>>, vector<576x64xbf16>
    %cst_14 = arith.constant dense<0.000000e+00> : vector<576x32xf32>
    %24 = tpu.matmul %23, %22, %cst_14 {dimension_numbers = #tpu.dot_dimension_numbers<[1], [0], [0], [1], [0, 0, 1, 1], [], []>} : vector<576x64xbf16>, vector<64x32xbf16>, vector<576x32xf32> -> vector<576x32xf32>
    %25 = arith.truncf %24 : vector<576x32xf32> to vector<576x32xbf16>
    %cst_15 = arith.constant 0.000000e+00 : f32
    %26 = vector.broadcast %cst_15 : f32 to vector<64x64xf32>
    %27 = vector.extract_strided_slice %25 {offsets = [0, 0], sizes = [64, 32], strides = [1, 1]} : vector<576x32xbf16> to vector<64x32xbf16>
    %c0_16 = arith.constant 0 : index
    %c0_17 = arith.constant 0 : index
    %c0_18 = arith.constant 0 : index
    %28 = vector.load %arg7[%c0_16, %c0_17, %c0_18] : memref<9x32x64xbf16, #tpu.memory_space<vmem>>, vector<1x32x64xbf16>
    %29 = vector.shape_cast %28 : vector<1x32x64xbf16> to vector<32x64xbf16>
    %cst_19 = arith.constant dense<0.000000e+00> : vector<64x64xf32>
    %30 = tpu.matmul %27, %29, %cst_19 {dimension_numbers = #tpu.dot_dimension_numbers<[1], [0], [0], [1], [0, 0, 1, 1], [], []>} : vector<64x32xbf16>, vector<32x64xbf16>, vector<64x64xf32> -> vector<64x64xf32>
    %31 = arith.addf %26, %30 : vector<64x64xf32>
    %32 = vector.extract_strided_slice %25 {offsets = [64, 0], sizes = [64, 32], strides = [1, 1]} : vector<576x32xbf16> to vector<64x32xbf16>
    %c1 = arith.constant 1 : index
    %c0_20 = arith.constant 0 : index
    %c0_21 = arith.constant 0 : index
    %33 = vector.load %arg7[%c1, %c0_20, %c0_21] : memref<9x32x64xbf16, #tpu.memory_space<vmem>>, vector<1x32x64xbf16>
    %34 = vector.shape_cast %33 : vector<1x32x64xbf16> to vector<32x64xbf16>
    %cst_22 = arith.constant dense<0.000000e+00> : vector<64x64xf32>
    %35 = tpu.matmul %32, %34, %cst_22 {dimension_numbers = #tpu.dot_dimension_numbers<[1], [0], [0], [1], [0, 0, 1, 1], [], []>} : vector<64x32xbf16>, vector<32x64xbf16>, vector<64x64xf32> -> vector<64x64xf32>
    %36 = arith.addf %31, %35 : vector<64x64xf32>
    %37 = vector.extract_strided_slice %25 {offsets = [128, 0], sizes = [64, 32], strides = [1, 1]} : vector<576x32xbf16> to vector<64x32xbf16>
    %c2 = arith.constant 2 : index
    %c0_23 = arith.constant 0 : index
    %c0_24 = arith.constant 0 : index
    %38 = vector.load %arg7[%c2, %c0_23, %c0_24] : memref<9x32x64xbf16, #tpu.memory_space<vmem>>, vector<1x32x64xbf16>
    %39 = vector.shape_cast %38 : vector<1x32x64xbf16> to vector<32x64xbf16>
    %cst_25 = arith.constant dense<0.000000e+00> : vector<64x64xf32>
    %40 = tpu.matmul %37, %39, %cst_25 {dimension_numbers = #tpu.dot_dimension_numbers<[1], [0], [0], [1], [0, 0, 1, 1], [], []>} : vector<64x32xbf16>, vector<32x64xbf16>, vector<64x64xf32> -> vector<64x64xf32>
    %41 = arith.addf %36, %40 : vector<64x64xf32>
    %42 = vector.extract_strided_slice %25 {offsets = [192, 0], sizes = [64, 32], strides = [1, 1]} : vector<576x32xbf16> to vector<64x32xbf16>
    %c3 = arith.constant 3 : index
    %c0_26 = arith.constant 0 : index
    %c0_27 = arith.constant 0 : index
    %43 = vector.load %arg7[%c3, %c0_26, %c0_27] : memref<9x32x64xbf16, #tpu.memory_space<vmem>>, vector<1x32x64xbf16>
    %44 = vector.shape_cast %43 : vector<1x32x64xbf16> to vector<32x64xbf16>
    %cst_28 = arith.constant dense<0.000000e+00> : vector<64x64xf32>
    %45 = tpu.matmul %42, %44, %cst_28 {dimension_numbers = #tpu.dot_dimension_numbers<[1], [0], [0], [1], [0, 0, 1, 1], [], []>} : vector<64x32xbf16>, vector<32x64xbf16>, vector<64x64xf32> -> vector<64x64xf32>
    %46 = arith.addf %41, %45 : vector<64x64xf32>
    %47 = vector.extract_strided_slice %25 {offsets = [256, 0], sizes = [64, 32], strides = [1, 1]} : vector<576x32xbf16> to vector<64x32xbf16>
    %c4 = arith.constant 4 : index
    %c0_29 = arith.constant 0 : index
    %c0_30 = arith.constant 0 : index
    %48 = vector.load %arg7[%c4, %c0_29, %c0_30] : memref<9x32x64xbf16, #tpu.memory_space<vmem>>, vector<1x32x64xbf16>
    %49 = vector.shape_cast %48 : vector<1x32x64xbf16> to vector<32x64xbf16>
    %cst_31 = arith.constant dense<0.000000e+00> : vector<64x64xf32>
    %50 = tpu.matmul %47, %49, %cst_31 {dimension_numbers = #tpu.dot_dimension_numbers<[1], [0], [0], [1], [0, 0, 1, 1], [], []>} : vector<64x32xbf16>, vector<32x64xbf16>, vector<64x64xf32> -> vector<64x64xf32>
    %51 = arith.addf %46, %50 : vector<64x64xf32>
    %52 = vector.extract_strided_slice %25 {offsets = [320, 0], sizes = [64, 32], strides = [1, 1]} : vector<576x32xbf16> to vector<64x32xbf16>
    %c5 = arith.constant 5 : index
    %c0_32 = arith.constant 0 : index
    %c0_33 = arith.constant 0 : index
    %53 = vector.load %arg7[%c5, %c0_32, %c0_33] : memref<9x32x64xbf16, #tpu.memory_space<vmem>>, vector<1x32x64xbf16>
    %54 = vector.shape_cast %53 : vector<1x32x64xbf16> to vector<32x64xbf16>
    %cst_34 = arith.constant dense<0.000000e+00> : vector<64x64xf32>
    %55 = tpu.matmul %52, %54, %cst_34 {dimension_numbers = #tpu.dot_dimension_numbers<[1], [0], [0], [1], [0, 0, 1, 1], [], []>} : vector<64x32xbf16>, vector<32x64xbf16>, vector<64x64xf32> -> vector<64x64xf32>
    %56 = arith.addf %51, %55 : vector<64x64xf32>
    %57 = vector.extract_strided_slice %25 {offsets = [384, 0], sizes = [64, 32], strides = [1, 1]} : vector<576x32xbf16> to vector<64x32xbf16>
    %c6 = arith.constant 6 : index
    %c0_35 = arith.constant 0 : index
    %c0_36 = arith.constant 0 : index
    %58 = vector.load %arg7[%c6, %c0_35, %c0_36] : memref<9x32x64xbf16, #tpu.memory_space<vmem>>, vector<1x32x64xbf16>
    %59 = vector.shape_cast %58 : vector<1x32x64xbf16> to vector<32x64xbf16>
    %cst_37 = arith.constant dense<0.000000e+00> : vector<64x64xf32>
    %60 = tpu.matmul %57, %59, %cst_37 {dimension_numbers = #tpu.dot_dimension_numbers<[1], [0], [0], [1], [0, 0, 1, 1], [], []>} : vector<64x32xbf16>, vector<32x64xbf16>, vector<64x64xf32> -> vector<64x64xf32>
    %61 = arith.addf %56, %60 : vector<64x64xf32>
    %62 = vector.extract_strided_slice %25 {offsets = [448, 0], sizes = [64, 32], strides = [1, 1]} : vector<576x32xbf16> to vector<64x32xbf16>
    %c7 = arith.constant 7 : index
    %c0_38 = arith.constant 0 : index
    %c0_39 = arith.constant 0 : index
    %63 = vector.load %arg7[%c7, %c0_38, %c0_39] : memref<9x32x64xbf16, #tpu.memory_space<vmem>>, vector<1x32x64xbf16>
    %64 = vector.shape_cast %63 : vector<1x32x64xbf16> to vector<32x64xbf16>
    %cst_40 = arith.constant dense<0.000000e+00> : vector<64x64xf32>
    %65 = tpu.matmul %62, %64, %cst_40 {dimension_numbers = #tpu.dot_dimension_numbers<[1], [0], [0], [1], [0, 0, 1, 1], [], []>} : vector<64x32xbf16>, vector<32x64xbf16>, vector<64x64xf32> -> vector<64x64xf32>
    %66 = arith.addf %61, %65 : vector<64x64xf32>
    %67 = vector.extract_strided_slice %25 {offsets = [512, 0], sizes = [64, 32], strides = [1, 1]} : vector<576x32xbf16> to vector<64x32xbf16>
    %c8 = arith.constant 8 : index
    %c0_41 = arith.constant 0 : index
    %c0_42 = arith.constant 0 : index
    %68 = vector.load %arg7[%c8, %c0_41, %c0_42] : memref<9x32x64xbf16, #tpu.memory_space<vmem>>, vector<1x32x64xbf16>
    %69 = vector.shape_cast %68 : vector<1x32x64xbf16> to vector<32x64xbf16>
    %cst_43 = arith.constant dense<0.000000e+00> : vector<64x64xf32>
    %70 = tpu.matmul %67, %69, %cst_43 {dimension_numbers = #tpu.dot_dimension_numbers<[1], [0], [0], [1], [0, 0, 1, 1], [], []>} : vector<64x32xbf16>, vector<32x64xbf16>, vector<64x64xf32> -> vector<64x64xf32>
    %71 = arith.addf %66, %70 : vector<64x64xf32>
    %c0_44 = arith.constant 0 : index
    %c0_45 = arith.constant 0 : index
    %72 = vector.load %arg8[%c0_44, %c0_45] : memref<1x64xf32, #tpu.memory_space<vmem>>, vector<1x64xf32>
    %73 = vector.broadcast %72 : vector<1x64xf32> to vector<64x64xf32>
    %74 = arith.mulf %71, %73 : vector<64x64xf32>
    %c0_46 = arith.constant 0 : index
    %c0_47 = arith.constant 0 : index
    %75 = vector.load %arg9[%c0_46, %c0_47] : memref<1x64xf32, #tpu.memory_space<vmem>>, vector<1x64xf32>
    %76 = vector.broadcast %75 : vector<1x64xf32> to vector<64x64xf32>
    %77 = arith.addf %74, %76 : vector<64x64xf32>
    %cst_48 = arith.constant 0.000000e+00 : f32
    %78 = vector.broadcast %cst_48 : f32 to vector<64x64xf32>
    %79 = arith.maximumf %77, %78 : vector<64x64xf32>
    %80 = arith.truncf %79 : vector<64x64xf32> to vector<64x64xbf16>
    %c0_49 = arith.constant 0 : index
    %c0_50 = arith.constant 0 : index
    %81 = vector.load %arg10[%c0_49, %c0_50] : memref<64x64xbf16, #tpu.memory_space<vmem>>, vector<64x64xbf16>
    %cst_51 = arith.constant dense<0.000000e+00> : vector<64x64xf32>
    %82 = tpu.matmul %81, %80, %cst_51 {dimension_numbers = #tpu.dot_dimension_numbers<[1], [0], [0], [1], [0, 0, 1, 1], [], []>} : vector<64x64xbf16>, vector<64x64xbf16>, vector<64x64xf32> -> vector<64x64xf32>
    %83 = vector.extract_strided_slice %82 {offsets = [0, 0], sizes = [16, 64], strides = [1, 1]} : vector<64x64xf32> to vector<16x64xf32>
    %84 = vector.extract_strided_slice %82 {offsets = [16, 0], sizes = [16, 64], strides = [1, 1]} : vector<64x64xf32> to vector<16x64xf32>
    %85 = arith.maximumf %83, %84 : vector<16x64xf32>
    %86 = vector.extract_strided_slice %82 {offsets = [32, 0], sizes = [16, 64], strides = [1, 1]} : vector<64x64xf32> to vector<16x64xf32>
    %87 = vector.extract_strided_slice %82 {offsets = [48, 0], sizes = [16, 64], strides = [1, 1]} : vector<64x64xf32> to vector<16x64xf32>
    %88 = arith.maximumf %86, %87 : vector<16x64xf32>
    %89 = arith.maximumf %85, %88 : vector<16x64xf32>
    %90 = arith.truncf %89 : vector<16x64xf32> to vector<16x64xbf16>
    %c0_52 = arith.constant 0 : index
    %c0_53 = arith.constant 0 : index
    %91 = vector.load %arg11[%c0_52, %c0_53] : memref<64x8xbf16, #tpu.memory_space<vmem>>, vector<64x8xbf16>
    %cst_54 = arith.constant dense<0.000000e+00> : vector<16x8xf32>
    %92 = tpu.matmul %90, %91, %cst_54 {dimension_numbers = #tpu.dot_dimension_numbers<[1], [0], [0], [1], [0, 0, 1, 1], [], []>} : vector<16x64xbf16>, vector<64x8xbf16>, vector<16x8xf32> -> vector<16x8xf32>
    %c0_55 = arith.constant 0 : index
    %c0_56 = arith.constant 0 : index
    %93 = vector.load %arg12[%c0_55, %c0_56] : memref<1x8xf32, #tpu.memory_space<vmem>>, vector<1x8xf32>
    %94 = vector.broadcast %93 : vector<1x8xf32> to vector<16x8xf32>
    %95 = arith.addf %92, %94 : vector<16x8xf32>
    %c0_57 = arith.constant 0 : index
    %c0_58 = arith.constant 0 : index
    %96 = vector.load %arg13[%c0_57, %c0_58] : memref<64x8xbf16, #tpu.memory_space<vmem>>, vector<64x8xbf16>
    %cst_59 = arith.constant dense<0.000000e+00> : vector<16x8xf32>
    %97 = tpu.matmul %90, %96, %cst_59 {dimension_numbers = #tpu.dot_dimension_numbers<[1], [0], [0], [1], [0, 0, 1, 1], [], []>} : vector<16x64xbf16>, vector<64x8xbf16>, vector<16x8xf32> -> vector<16x8xf32>
    %c0_60 = arith.constant 0 : index
    %c0_61 = arith.constant 0 : index
    %98 = vector.load %arg14[%c0_60, %c0_61] : memref<1x8xf32, #tpu.memory_space<vmem>>, vector<1x8xf32>
    %99 = vector.broadcast %98 : vector<1x8xf32> to vector<16x8xf32>
    %100 = arith.addf %97, %99 : vector<16x8xf32>
    %c0_62 = arith.constant 0 : index
    %c0_63 = arith.constant 0 : index
    %101 = vector.load %arg15[%c0_62, %c0_63] : memref<64x64xbf16, #tpu.memory_space<vmem>>, vector<64x64xbf16>
    %cst_64 = arith.constant dense<0.000000e+00> : vector<16x64xf32>
    %102 = tpu.matmul %90, %101, %cst_64 {dimension_numbers = #tpu.dot_dimension_numbers<[1], [0], [0], [1], [0, 0, 1, 1], [], []>} : vector<16x64xbf16>, vector<64x64xbf16>, vector<16x64xf32> -> vector<16x64xf32>
    %c0_65 = arith.constant 0 : index
    %c0_66 = arith.constant 0 : index
    %103 = vector.load %arg16[%c0_65, %c0_66] : memref<1x64xf32, #tpu.memory_space<vmem>>, vector<1x64xf32>
    %104 = vector.broadcast %103 : vector<1x64xf32> to vector<16x64xf32>
    %105 = arith.addf %102, %104 : vector<16x64xf32>
    %106 = arith.truncf %95 : vector<16x8xf32> to vector<16x8xbf16>
    %107 = arith.truncf %100 : vector<16x8xf32> to vector<16x8xbf16>
    %cst_67 = arith.constant dense<0.000000e+00> : vector<16x16xf32>
    %108 = tpu.matmul %106, %107, %cst_67 {dimension_numbers = #tpu.dot_dimension_numbers<[1], [1], [0], [0], [0, 0, 1, 0], [], []>} : vector<16x8xbf16>, vector<16x8xbf16>, vector<16x16xf32> -> vector<16x16xf32>
    %cst_68 = arith.constant dense<0xFF800000> : vector<16xf32>
    %109 = vector.multi_reduction <maximumf>, %108, %cst_68 [1] : vector<16x16xf32> to vector<16xf32>
    %110 = vector.shape_cast %109 : vector<16xf32> to vector<16x1xf32>
    %111 = vector.broadcast %110 : vector<16x1xf32> to vector<16x16xf32>
    %112 = arith.subf %108, %111 : vector<16x16xf32>
    %113 = math.exp %112 : vector<16x16xf32>
    %cst_69 = arith.constant dense<0.000000e+00> : vector<16xf32>
    %114 = vector.multi_reduction <add>, %113, %cst_69 [1] : vector<16x16xf32> to vector<16xf32>
    %115 = vector.shape_cast %114 : vector<16xf32> to vector<16x1xf32>
    %116 = tpu.reciprocal %115 {approx = true} : vector<16x1xf32> -> vector<16x1xf32>
    %117 = vector.broadcast %116 : vector<16x1xf32> to vector<16x16xf32>
    %118 = arith.mulf %113, %117 : vector<16x16xf32>
    %119 = arith.truncf %118 : vector<16x16xf32> to vector<16x16xbf16>
    %120 = arith.truncf %105 : vector<16x64xf32> to vector<16x64xbf16>
    %cst_70 = arith.constant dense<0.000000e+00> : vector<16x64xf32>
    %121 = tpu.matmul %119, %120, %cst_70 {dimension_numbers = #tpu.dot_dimension_numbers<[1], [0], [0], [1], [0, 0, 1, 1], [], []>} : vector<16x16xbf16>, vector<16x64xbf16>, vector<16x64xf32> -> vector<16x64xf32>
    %c0_71 = arith.constant 0 : index
    %122 = memref.load %arg17[%c0_71] : memref<1xf32, #tpu.memory_space<smem>>
    %123 = vector.broadcast %122 : f32 to vector<16x64xf32>
    %124 = arith.mulf %123, %121 : vector<16x64xf32>
    %125 = arith.addf %124, %89 : vector<16x64xf32>
    %126 = arith.truncf %125 : vector<16x64xf32> to vector<16x64xbf16>
    %c0_72 = arith.constant 0 : index
    %c0_73 = arith.constant 0 : index
    %127 = vector.load %arg18[%c0_72, %c0_73] : memref<144x16xbf16, #tpu.memory_space<vmem>>, vector<144x16xbf16>
    %cst_74 = arith.constant dense<0.000000e+00> : vector<144x64xf32>
    %128 = tpu.matmul %127, %126, %cst_74 {dimension_numbers = #tpu.dot_dimension_numbers<[1], [0], [0], [1], [0, 0, 1, 1], [], []>} : vector<144x16xbf16>, vector<16x64xbf16>, vector<144x64xf32> -> vector<144x64xf32>
    %129 = arith.truncf %128 : vector<144x64xf32> to vector<144x64xbf16>
    %cst_75 = arith.constant 0.000000e+00 : f32
    %130 = vector.broadcast %cst_75 : f32 to vector<16x128xf32>
    %131 = vector.extract_strided_slice %129 {offsets = [0, 0], sizes = [16, 64], strides = [1, 1]} : vector<144x64xbf16> to vector<16x64xbf16>
    %c0_76 = arith.constant 0 : index
    %c0_77 = arith.constant 0 : index
    %c0_78 = arith.constant 0 : index
    %132 = vector.load %arg19[%c0_76, %c0_77, %c0_78] : memref<9x64x128xbf16, #tpu.memory_space<vmem>>, vector<1x64x128xbf16>
    %133 = vector.shape_cast %132 : vector<1x64x128xbf16> to vector<64x128xbf16>
    %cst_79 = arith.constant dense<0.000000e+00> : vector<16x128xf32>
    %134 = tpu.matmul %131, %133, %cst_79 {dimension_numbers = #tpu.dot_dimension_numbers<[1], [0], [0], [1], [0, 0, 1, 1], [], []>} : vector<16x64xbf16>, vector<64x128xbf16>, vector<16x128xf32> -> vector<16x128xf32>
    %135 = arith.addf %130, %134 : vector<16x128xf32>
    %136 = vector.extract_strided_slice %129 {offsets = [16, 0], sizes = [16, 64], strides = [1, 1]} : vector<144x64xbf16> to vector<16x64xbf16>
    %c1_80 = arith.constant 1 : index
    %c0_81 = arith.constant 0 : index
    %c0_82 = arith.constant 0 : index
    %137 = vector.load %arg19[%c1_80, %c0_81, %c0_82] : memref<9x64x128xbf16, #tpu.memory_space<vmem>>, vector<1x64x128xbf16>
    %138 = vector.shape_cast %137 : vector<1x64x128xbf16> to vector<64x128xbf16>
    %cst_83 = arith.constant dense<0.000000e+00> : vector<16x128xf32>
    %139 = tpu.matmul %136, %138, %cst_83 {dimension_numbers = #tpu.dot_dimension_numbers<[1], [0], [0], [1], [0, 0, 1, 1], [], []>} : vector<16x64xbf16>, vector<64x128xbf16>, vector<16x128xf32> -> vector<16x128xf32>
    %140 = arith.addf %135, %139 : vector<16x128xf32>
    %141 = vector.extract_strided_slice %129 {offsets = [32, 0], sizes = [16, 64], strides = [1, 1]} : vector<144x64xbf16> to vector<16x64xbf16>
    %c2_84 = arith.constant 2 : index
    %c0_85 = arith.constant 0 : index
    %c0_86 = arith.constant 0 : index
    %142 = vector.load %arg19[%c2_84, %c0_85, %c0_86] : memref<9x64x128xbf16, #tpu.memory_space<vmem>>, vector<1x64x128xbf16>
    %143 = vector.shape_cast %142 : vector<1x64x128xbf16> to vector<64x128xbf16>
    %cst_87 = arith.constant dense<0.000000e+00> : vector<16x128xf32>
    %144 = tpu.matmul %141, %143, %cst_87 {dimension_numbers = #tpu.dot_dimension_numbers<[1], [0], [0], [1], [0, 0, 1, 1], [], []>} : vector<16x64xbf16>, vector<64x128xbf16>, vector<16x128xf32> -> vector<16x128xf32>
    %145 = arith.addf %140, %144 : vector<16x128xf32>
    %146 = vector.extract_strided_slice %129 {offsets = [48, 0], sizes = [16, 64], strides = [1, 1]} : vector<144x64xbf16> to vector<16x64xbf16>
    %c3_88 = arith.constant 3 : index
    %c0_89 = arith.constant 0 : index
    %c0_90 = arith.constant 0 : index
    %147 = vector.load %arg19[%c3_88, %c0_89, %c0_90] : memref<9x64x128xbf16, #tpu.memory_space<vmem>>, vector<1x64x128xbf16>
    %148 = vector.shape_cast %147 : vector<1x64x128xbf16> to vector<64x128xbf16>
    %cst_91 = arith.constant dense<0.000000e+00> : vector<16x128xf32>
    %149 = tpu.matmul %146, %148, %cst_91 {dimension_numbers = #tpu.dot_dimension_numbers<[1], [0], [0], [1], [0, 0, 1, 1], [], []>} : vector<16x64xbf16>, vector<64x128xbf16>, vector<16x128xf32> -> vector<16x128xf32>
    %150 = arith.addf %145, %149 : vector<16x128xf32>
    %151 = vector.extract_strided_slice %129 {offsets = [64, 0], sizes = [16, 64], strides = [1, 1]} : vector<144x64xbf16> to vector<16x64xbf16>
    %c4_92 = arith.constant 4 : index
    %c0_93 = arith.constant 0 : index
    %c0_94 = arith.constant 0 : index
    %152 = vector.load %arg19[%c4_92, %c0_93, %c0_94] : memref<9x64x128xbf16, #tpu.memory_space<vmem>>, vector<1x64x128xbf16>
    %153 = vector.shape_cast %152 : vector<1x64x128xbf16> to vector<64x128xbf16>
    %cst_95 = arith.constant dense<0.000000e+00> : vector<16x128xf32>
    %154 = tpu.matmul %151, %153, %cst_95 {dimension_numbers = #tpu.dot_dimension_numbers<[1], [0], [0], [1], [0, 0, 1, 1], [], []>} : vector<16x64xbf16>, vector<64x128xbf16>, vector<16x128xf32> -> vector<16x128xf32>
    %155 = arith.addf %150, %154 : vector<16x128xf32>
    %156 = vector.extract_strided_slice %129 {offsets = [80, 0], sizes = [16, 64], strides = [1, 1]} : vector<144x64xbf16> to vector<16x64xbf16>
    %c5_96 = arith.constant 5 : index
    %c0_97 = arith.constant 0 : index
    %c0_98 = arith.constant 0 : index
    %157 = vector.load %arg19[%c5_96, %c0_97, %c0_98] : memref<9x64x128xbf16, #tpu.memory_space<vmem>>, vector<1x64x128xbf16>
    %158 = vector.shape_cast %157 : vector<1x64x128xbf16> to vector<64x128xbf16>
    %cst_99 = arith.constant dense<0.000000e+00> : vector<16x128xf32>
    %159 = tpu.matmul %156, %158, %cst_99 {dimension_numbers = #tpu.dot_dimension_numbers<[1], [0], [0], [1], [0, 0, 1, 1], [], []>} : vector<16x64xbf16>, vector<64x128xbf16>, vector<16x128xf32> -> vector<16x128xf32>
    %160 = arith.addf %155, %159 : vector<16x128xf32>
    %161 = vector.extract_strided_slice %129 {offsets = [96, 0], sizes = [16, 64], strides = [1, 1]} : vector<144x64xbf16> to vector<16x64xbf16>
    %c6_100 = arith.constant 6 : index
    %c0_101 = arith.constant 0 : index
    %c0_102 = arith.constant 0 : index
    %162 = vector.load %arg19[%c6_100, %c0_101, %c0_102] : memref<9x64x128xbf16, #tpu.memory_space<vmem>>, vector<1x64x128xbf16>
    %163 = vector.shape_cast %162 : vector<1x64x128xbf16> to vector<64x128xbf16>
    %cst_103 = arith.constant dense<0.000000e+00> : vector<16x128xf32>
    %164 = tpu.matmul %161, %163, %cst_103 {dimension_numbers = #tpu.dot_dimension_numbers<[1], [0], [0], [1], [0, 0, 1, 1], [], []>} : vector<16x64xbf16>, vector<64x128xbf16>, vector<16x128xf32> -> vector<16x128xf32>
    %165 = arith.addf %160, %164 : vector<16x128xf32>
    %166 = vector.extract_strided_slice %129 {offsets = [112, 0], sizes = [16, 64], strides = [1, 1]} : vector<144x64xbf16> to vector<16x64xbf16>
    %c7_104 = arith.constant 7 : index
    %c0_105 = arith.constant 0 : index
    %c0_106 = arith.constant 0 : index
    %167 = vector.load %arg19[%c7_104, %c0_105, %c0_106] : memref<9x64x128xbf16, #tpu.memory_space<vmem>>, vector<1x64x128xbf16>
    %168 = vector.shape_cast %167 : vector<1x64x128xbf16> to vector<64x128xbf16>
    %cst_107 = arith.constant dense<0.000000e+00> : vector<16x128xf32>
    %169 = tpu.matmul %166, %168, %cst_107 {dimension_numbers = #tpu.dot_dimension_numbers<[1], [0], [0], [1], [0, 0, 1, 1], [], []>} : vector<16x64xbf16>, vector<64x128xbf16>, vector<16x128xf32> -> vector<16x128xf32>
    %170 = arith.addf %165, %169 : vector<16x128xf32>
    %171 = vector.extract_strided_slice %129 {offsets = [128, 0], sizes = [16, 64], strides = [1, 1]} : vector<144x64xbf16> to vector<16x64xbf16>
    %c8_108 = arith.constant 8 : index
    %c0_109 = arith.constant 0 : index
    %c0_110 = arith.constant 0 : index
    %172 = vector.load %arg19[%c8_108, %c0_109, %c0_110] : memref<9x64x128xbf16, #tpu.memory_space<vmem>>, vector<1x64x128xbf16>
    %173 = vector.shape_cast %172 : vector<1x64x128xbf16> to vector<64x128xbf16>
    %cst_111 = arith.constant dense<0.000000e+00> : vector<16x128xf32>
    %174 = tpu.matmul %171, %173, %cst_111 {dimension_numbers = #tpu.dot_dimension_numbers<[1], [0], [0], [1], [0, 0, 1, 1], [], []>} : vector<16x64xbf16>, vector<64x128xbf16>, vector<16x128xf32> -> vector<16x128xf32>
    %175 = arith.addf %170, %174 : vector<16x128xf32>
    %c0_112 = arith.constant 0 : index
    %c0_113 = arith.constant 0 : index
    %176 = vector.load %arg20[%c0_112, %c0_113] : memref<1x128xf32, #tpu.memory_space<vmem>>, vector<1x128xf32>
    %177 = vector.broadcast %176 : vector<1x128xf32> to vector<16x128xf32>
    %178 = arith.mulf %175, %177 : vector<16x128xf32>
    %c0_114 = arith.constant 0 : index
    %c0_115 = arith.constant 0 : index
    %179 = vector.load %arg21[%c0_114, %c0_115] : memref<1x128xf32, #tpu.memory_space<vmem>>, vector<1x128xf32>
    %180 = vector.broadcast %179 : vector<1x128xf32> to vector<16x128xf32>
    %181 = arith.addf %178, %180 : vector<16x128xf32>
    %cst_116 = arith.constant 0.000000e+00 : f32
    %182 = vector.broadcast %cst_116 : f32 to vector<16x128xf32>
    %183 = arith.maximumf %181, %182 : vector<16x128xf32>
    %cst_117 = arith.constant dense<0.000000e+00> : vector<128xf32>
    %184 = vector.multi_reduction <add>, %183, %cst_117 [0] : vector<16x128xf32> to vector<128xf32>
    %185 = vector.shape_cast %184 : vector<128xf32> to vector<1x128xf32>
    %cst_118 = arith.constant 1.600000e+01 : f32
    %186 = vector.broadcast %cst_118 : f32 to vector<1x128xf32>
    %187 = arith.divf %185, %186 : vector<1x128xf32>
    %188 = vector.shape_cast %187 : vector<1x128xf32> to vector<1x128xf32>
    %189 = vector.broadcast %188 : vector<1x128xf32> to vector<8x128xf32>
    %c0_119 = arith.constant 0 : index
    %c0_120 = arith.constant 0 : index
    %c0_121 = arith.constant 0 : index
    %190 = vector.load %arg22[%c0_119, %c0_120, %c0_121] : memref<1x8x128xf32, #tpu.memory_space<vmem>>, vector<1x8x128xf32>
    %191 = vector.shape_cast %190 : vector<1x8x128xf32> to vector<8x128xf32>
    %192 = vector.shape_cast %189 : vector<8x128xf32> to vector<1x8x128xf32>
    tpu.vector_store %arg22[%c0_119, %c0_120, %c0_121], %192 {strides = array<i32>} : memref<1x8x128xf32, #tpu.memory_space<vmem>>, vector<1x8x128xf32>,
    return
  }
  func.func @transform_0(%arg0: i32) -> (i32, i32, i32) {
    %c0_i32 = arith.constant 0 : i32
    %c0_i32_0 = arith.constant 0 : i32
    %c0_i32_1 = arith.constant 0 : i32
    return %arg0, %c0_i32, %c0_i32_0 : i32, i32, i32
  }
  func.func @transform_1(%arg0: i32) -> (i32, i32) {
    %c0_i32 = arith.constant 0 : i32
    %c0_i32_0 = arith.constant 0 : i32
    %c0_i32_1 = arith.constant 0 : i32
    return %c0_i32, %c0_i32_0 : i32, i32
  }
  func.func @transform_2(%arg0: i32) -> (i32, i32) {
    %c0_i32 = arith.constant 0 : i32
    %c0_i32_0 = arith.constant 0 : i32
    %c0_i32_1 = arith.constant 0 : i32
    return %c0_i32, %c0_i32_0 : i32, i32
  }
  func.func @transform_3(%arg0: i32) -> (i32, i32) {
    %c0_i32 = arith.constant 0 : i32
    %c0_i32_0 = arith.constant 0 : i32
    %c0_i32_1 = arith.constant 0 : i32
    return %c0_i32, %c0_i32_0 : i32, i32
  }
  func.func @transform_4(%arg0: i32) -> (i32, i32) {
    %c0_i32 = arith.constant 0 : i32
    %c0_i32_0 = arith.constant 0 : i32
    %c0_i32_1 = arith.constant 0 : i32
    return %c0_i32, %c0_i32_0 : i32, i32
  }
  func.func @transform_5(%arg0: i32) -> (i32, i32) {
    %c0_i32 = arith.constant 0 : i32
    %c0_i32_0 = arith.constant 0 : i32
    %c0_i32_1 = arith.constant 0 : i32
    return %c0_i32, %c0_i32_0 : i32, i32
  }
  func.func @transform_6(%arg0: i32) -> (i32, i32, i32) {
    %c0_i32 = arith.constant 0 : i32
    %c0_i32_0 = arith.constant 0 : i32
    %c0_i32_1 = arith.constant 0 : i32
    %c0_i32_2 = arith.constant 0 : i32
    return %c0_i32, %c0_i32_0, %c0_i32_1 : i32, i32, i32
  }
  func.func @transform_7(%arg0: i32) -> (i32, i32) {
    %c0_i32 = arith.constant 0 : i32
    %c0_i32_0 = arith.constant 0 : i32
    %c0_i32_1 = arith.constant 0 : i32
    return %c0_i32, %c0_i32_0 : i32, i32
  }
  func.func @transform_8(%arg0: i32) -> (i32, i32) {
    %c0_i32 = arith.constant 0 : i32
    %c0_i32_0 = arith.constant 0 : i32
    %c0_i32_1 = arith.constant 0 : i32
    return %c0_i32, %c0_i32_0 : i32, i32
  }
  func.func @transform_9(%arg0: i32) -> (i32, i32) {
    %c0_i32 = arith.constant 0 : i32
    %c0_i32_0 = arith.constant 0 : i32
    %c0_i32_1 = arith.constant 0 : i32
    return %c0_i32, %c0_i32_0 : i32, i32
  }
  func.func @transform_10(%arg0: i32) -> (i32, i32) {
    %c0_i32 = arith.constant 0 : i32
    %c0_i32_0 = arith.constant 0 : i32
    %c0_i32_1 = arith.constant 0 : i32
    return %c0_i32, %c0_i32_0 : i32, i32
  }
  func.func @transform_11(%arg0: i32) -> (i32, i32) {
    %c0_i32 = arith.constant 0 : i32
    %c0_i32_0 = arith.constant 0 : i32
    %c0_i32_1 = arith.constant 0 : i32
    return %c0_i32, %c0_i32_0 : i32, i32
  }
  func.func @transform_12(%arg0: i32) -> (i32, i32) {
    %c0_i32 = arith.constant 0 : i32
    %c0_i32_0 = arith.constant 0 : i32
    %c0_i32_1 = arith.constant 0 : i32
    return %c0_i32, %c0_i32_0 : i32, i32
  }
  func.func @transform_13(%arg0: i32) -> (i32, i32) {
    %c0_i32 = arith.constant 0 : i32
    %c0_i32_0 = arith.constant 0 : i32
    %c0_i32_1 = arith.constant 0 : i32
    return %c0_i32, %c0_i32_0 : i32, i32
  }
  func.func @transform_14(%arg0: i32) -> (i32, i32) {
    %c0_i32 = arith.constant 0 : i32
    %c0_i32_0 = arith.constant 0 : i32
    %c0_i32_1 = arith.constant 0 : i32
    return %c0_i32, %c0_i32_0 : i32, i32
  }
  func.func @transform_15(%arg0: i32) -> (i32, i32) {
    %c0_i32 = arith.constant 0 : i32
    %c0_i32_0 = arith.constant 0 : i32
    %c0_i32_1 = arith.constant 0 : i32
    return %c0_i32, %c0_i32_0 : i32, i32
  }
  func.func @transform_16(%arg0: i32) -> i32 {
    %c0_i32 = arith.constant 0 : i32
    %c0_i32_0 = arith.constant 0 : i32
    return %c0_i32 : i32
  }
  func.func @transform_17(%arg0: i32) -> (i32, i32) {
    %c0_i32 = arith.constant 0 : i32
    %c0_i32_0 = arith.constant 0 : i32
    %c0_i32_1 = arith.constant 0 : i32
    return %c0_i32, %c0_i32_0 : i32, i32
  }
  func.func @transform_18(%arg0: i32) -> (i32, i32, i32) {
    %c0_i32 = arith.constant 0 : i32
    %c0_i32_0 = arith.constant 0 : i32
    %c0_i32_1 = arith.constant 0 : i32
    %c0_i32_2 = arith.constant 0 : i32
    return %c0_i32, %c0_i32_0, %c0_i32_1 : i32, i32, i32
  }
  func.func @transform_19(%arg0: i32) -> (i32, i32) {
    %c0_i32 = arith.constant 0 : i32
    %c0_i32_0 = arith.constant 0 : i32
    %c0_i32_1 = arith.constant 0 : i32
    return %c0_i32, %c0_i32_0 : i32, i32
  }
  func.func @transform_20(%arg0: i32) -> (i32, i32) {
    %c0_i32 = arith.constant 0 : i32
    %c0_i32_0 = arith.constant 0 : i32
    %c0_i32_1 = arith.constant 0 : i32
    return %c0_i32, %c0_i32_0 : i32, i32
  }
  func.func @transform_21(%arg0: i32) -> (i32, i32, i32) {
    %c0_i32 = arith.constant 0 : i32
    %c0_i32_0 = arith.constant 0 : i32
    %c0_i32_1 = arith.constant 0 : i32
    return %arg0, %c0_i32, %c0_i32_0 : i32, i32, i32
  }
}

</mosaic_0001>

<llo_original>
// kernel: gating_cnn_with_attention.1
$region0: #{gating_cnn_with_attention.1}
  #allocation0 [shape = 'u32[]', space=smem, size = 0x4, offset = 0x4, fixed_abs, tag = 'smem constant byte address 0x4 - core index']
  #allocation1 [shape = 'u32[144,128]{1,0:T(1,128)}', space=vmem, size = 0x12000, scoped, tag = 'internal scratch']
  #allocation2 [shape = 'f32[1]{0:T(128)S(6)}', space=smem, size = 0x200, scoped, tag = 'scoped memory for gating_cnn_with_attention.1']
  %s0 = inlined_call_operand.vmem [shape: bf16[2,256,32], index: 0, kind: input, shape index: {}]
  %s1 = inlined_call_operand.vmem [shape: bf16[32,32], index: 1, kind: input, shape index: {}]
  %s2 = inlined_call_operand.vmem [shape: f32[1,32], index: 2, kind: input, shape index: {}]
  %s3 = inlined_call_operand.vmem [shape: f32[1,32], index: 3, kind: input, shape index: {}]
  %s4 = inlined_call_operand.vmem [shape: bf16[256,256], index: 4, kind: input, shape index: {}]
  %s5 = inlined_call_operand.vmem [shape: bf16[576,64], index: 5, kind: input, shape index: {}]
  %s6 = inlined_call_operand.vmem [shape: bf16[9,32,64], index: 6, kind: input, shape index: {}]
  %s7 = inlined_call_operand.vmem [shape: f32[1,64], index: 7, kind: input, shape index: {}]
  %s8 = inlined_call_operand.vmem [shape: f32[1,64], index: 8, kind: input, shape index: {}]
  %s9 = inlined_call_operand.vmem [shape: bf16[64,64], index: 9, kind: input, shape index: {}]
  %s10 = inlined_call_operand.vmem [shape: bf16[64,8], index: 10, kind: input, shape index: {}]
  %s11 = inlined_call_operand.vmem [shape: f32[1,8], index: 11, kind: input, shape index: {}]
  %s12 = inlined_call_operand.vmem [shape: bf16[64,8], index: 12, kind: input, shape index: {}]
  %s13 = inlined_call_operand.vmem [shape: f32[1,8], index: 13, kind: input, shape index: {}]
  %s14 = inlined_call_operand.vmem [shape: bf16[64,64], index: 14, kind: input, shape index: {}]
  %s15 = inlined_call_operand.vmem [shape: f32[1,64], index: 15, kind: input, shape index: {}]
  %s16 = inlined_call_operand.<no memory space> [shape: f32[1], index: 16, kind: input, shape index: {}]
  %s17 = inlined_call_operand.vmem [shape: bf16[144,16], index: 17, kind: input, shape index: {}]
  %s18 = inlined_call_operand.vmem [shape: bf16[9,64,128], index: 18, kind: input, shape index: {}]
  %s19 = inlined_call_operand.vmem [shape: f32[1,128], index: 19, kind: input, shape index: {}]
  %s20 = inlined_call_operand.vmem [shape: f32[1,128], index: 20, kind: input, shape index: {}]
  %s21 = inlined_call_operand.vmem [shape: f32[2,8,128], index: 21, kind: output, shape index: {}]
  %s22 = sld [smem:[#allocation0]]
  $region117: #{gating_cnn_with_attention.1} parent=0
    _
  %s24 = ssub.s32 1, %s22
  %s25 = scalar_select 0, %s24, %s22
  %26 = sst [smem:[#allocation2]] %s16
  loop: start=0, step=1, limit=4
  $region2: #{gating_cnn_with_attention.1} parent=0 // loop_pre_header
    _
  $region3: #{gating_cnn_with_attention.1} parent=0 // loop_header
    %s28 = sphi 0, %s32
    %p29 = scmp.ge.s32.totalorder %s28, 4
    %s38 = sphi 0, %s40
    %s41 = sphi 0, %s38
    %s42 = sphi 0, %s41
    %s58 = sphi 0, %s42
    %s62 = sphi 0, %s62
    %s64 = sphi 0, %s62
    %s65 = sphi 0, %s64
    %s79 = sphi 0, %s65
    %s83 = sphi 0, %s83
    %s85 = sphi 0, %s83
    %s86 = sphi 0, %s85
    %s100 = sphi 0, %s86
    %s104 = sphi 0, %s104
    %s106 = sphi 0, %s104
    %s107 = sphi 0, %s106
    %s121 = sphi 0, %s107
    %s125 = sphi 0, %s125
    %s127 = sphi 0, %s125
    %s128 = sphi 0, %s127
    %s142 = sphi 0, %s128
    %s146 = sphi 0, %s146
    %s148 = sphi 0, %s146
    %s149 = sphi 0, %s148
    %s163 = sphi 0, %s149
    %s167 = sphi 0, %s167
    %s169 = sphi 0, %s167
    %s170 = sphi 0, %s169
    %s184 = sphi 0, %s170
    %s188 = sphi 0, %s188
    %s190 = sphi 0, %s188
    %s191 = sphi 0, %s190
    %s205 = sphi 0, %s191
    %s209 = sphi 0, %s209
    %s211 = sphi 0, %s209
    %s212 = sphi 0, %s211
    %s226 = sphi 0, %s212
    %s230 = sphi 0, %s230
    %s232 = sphi 0, %s230
    %s233 = sphi 0, %s232
    %s247 = sphi 0, %s233
    %s251 = sphi 0, %s251
    %s253 = sphi 0, %s251
    %s254 = sphi 0, %s253
    %s268 = sphi 0, %s254
    %s272 = sphi 0, %s272
    %s274 = sphi 0, %s272
    %s275 = sphi 0, %s274
    %s289 = sphi 0, %s275
    %s293 = sphi 0, %s293
    %s295 = sphi 0, %s293
    %s296 = sphi 0, %s295
    %s310 = sphi 0, %s296
    %s314 = sphi 0, %s314
    %s316 = sphi 0, %s314
    %s317 = sphi 0, %s316
    %s331 = sphi 0, %s317
    %s335 = sphi 0, %s335
    %s337 = sphi 0, %s335
    %s338 = sphi 0, %s337
    %s352 = sphi 0, %s338
    %s356 = sphi 0, %s356
    %s358 = sphi 0, %s356
    %s359 = sphi 0, %s358
    %s373 = sphi 0, %s359
    %s377 = sphi 0, %s377
    %s379 = sphi 0, %s377
    %s380 = sphi 0, %s379
    %s394 = sphi 0, %s380
    %s398 = sphi 0, %s398
    %s400 = sphi 0, %s398
    %s401 = sphi 0, %s400
    %s415 = sphi 0, %s401
    %s419 = sphi 0, %s419
    %s421 = sphi 0, %s419
    %s422 = sphi 0, %s421
    %s436 = sphi 0, %s422
    %s440 = sphi 0, %s440
    %s442 = sphi 0, %s440
    %s443 = sphi 0, %s442
    %s457 = sphi 0, %s443
    %s461 = sphi 0, %s461
    %s463 = sphi 0, %s461
    %s464 = sphi 0, %s463
    %s478 = sphi 0, %s464
    %s484 = sphi 0, %s486
    %s487 = sphi 0, %s484
    %s488 = sphi 0, %s487
    %s504 = sphi 0, %s488
  $region4: #{gating_cnn_with_attention.1} parent=0 // loop_header_branch
    %31 = sbr.rel (%p29) target = $region8
  $region5: #{gating_cnn_with_attention.1} parent=0 // loop_body
    %s33 = ssub.s32 %s28, 1
    %s34 = ssub.s32 %s28, 2
    %s35 = sadd.s32 %s28, 1
    %s36 = ssub.s32 %s28, %s35
    %p37 = scmp.eq.s32.totalorder %s36, 0
    %s39 = sadd.s32 %s38, 1
    %s40 = scalar_select %p37, %s38, %s39
    %p43 = pneg %p37
    %p44 = scmp.eq.s32.totalorder %s28, 1
    %p45 = por %p43, %p44
    %p46 = scmp.ne.s32.totalorder %s38, %s41
    %p47 = scmp.eq.s32.totalorder %s28, 0
    %p48 = por %p46, %p47
    %p49 = scmp.ne.s32.totalorder %s38, %s41
    %p50 = scmp.eq.s32.totalorder %s33, 1
    %p51 = por %p49, %p50
    %p52 = scmp.ne.s32.totalorder %s41, %s42
    %p53 = scmp.eq.s32.totalorder %s33, 0
    %p54 = por %p52, %p53
    %p55 = scmp.ne.s32.totalorder %s41, %s42
    %p56 = scmp.eq.s32.totalorder %s34, 1
    %p57 = por %p55, %p56
    %p59 = scmp.ne.s32.totalorder %s42, %s58
    %p60 = scmp.eq.s32.totalorder %s34, 0
    %p61 = por %p59, %p60
    %s63 = sadd.s32 %s62, 1
    %p66 = scmp.eq.s32.totalorder %s28, 1
    %p67 = scmp.ne.s32.totalorder %s62, %s64
    %p68 = scmp.eq.s32.totalorder %s28, 0
    %p69 = por %p67, %p68
    %p70 = scmp.ne.s32.totalorder %s62, %s64
    %p71 = scmp.eq.s32.totalorder %s33, 1
    %p72 = por %p70, %p71
    %p73 = scmp.ne.s32.totalorder %s64, %s65
    %p74 = scmp.eq.s32.totalorder %s33, 0
    %p75 = por %p73, %p74
    %p76 = scmp.ne.s32.totalorder %s64, %s65
    %p77 = scmp.eq.s32.totalorder %s34, 1
    %p78 = por %p76, %p77
    %p80 = scmp.ne.s32.totalorder %s65, %s79
    %p81 = scmp.eq.s32.totalorder %s34, 0
    %p82 = por %p80, %p81
    %s84 = sadd.s32 %s83, 1
    %p87 = scmp.eq.s32.totalorder %s28, 1
    %p88 = scmp.ne.s32.totalorder %s83, %s85
    %p89 = scmp.eq.s32.totalorder %s28, 0
    %p90 = por %p88, %p89
    %p91 = scmp.ne.s32.totalorder %s83, %s85
    %p92 = scmp.eq.s32.totalorder %s33, 1
    %p93 = por %p91, %p92
    %p94 = scmp.ne.s32.totalorder %s85, %s86
    %p95 = scmp.eq.s32.totalorder %s33, 0
    %p96 = por %p94, %p95
    %p97 = scmp.ne.s32.totalorder %s85, %s86
    %p98 = scmp.eq.s32.totalorder %s34, 1
    %p99 = por %p97, %p98
    %p101 = scmp.ne.s32.totalorder %s86, %s100
    %p102 = scmp.eq.s32.totalorder %s34, 0
    %p103 = por %p101, %p102
    %s105 = sadd.s32 %s104, 1
    %p108 = scmp.eq.s32.totalorder %s28, 1
    %p109 = scmp.ne.s32.totalorder %s104, %s106
    %p110 = scmp.eq.s32.totalorder %s28, 0
    %p111 = por %p109, %p110
    %p112 = scmp.ne.s32.totalorder %s104, %s106
    %p113 = scmp.eq.s32.totalorder %s33, 1
    %p114 = por %p112, %p113
    %p115 = scmp.ne.s32.totalorder %s106, %s107
    %p116 = scmp.eq.s32.totalorder %s33, 0
    %p117 = por %p115, %p116
    %p118 = scmp.ne.s32.totalorder %s106, %s107
    %p119 = scmp.eq.s32.totalorder %s34, 1
    %p120 = por %p118, %p119
    %p122 = scmp.ne.s32.totalorder %s107, %s121
    %p123 = scmp.eq.s32.totalorder %s34, 0
    %p124 = por %p122, %p123
    %s126 = sadd.s32 %s125, 1
    %p129 = scmp.eq.s32.totalorder %s28, 1
    %p130 = scmp.ne.s32.totalorder %s125, %s127
    %p131 = scmp.eq.s32.totalorder %s28, 0
    %p132 = por %p130, %p131
    %p133 = scmp.ne.s32.totalorder %s125, %s127
    %p134 = scmp.eq.s32.totalorder %s33, 1
    %p135 = por %p133, %p134
    %p136 = scmp.ne.s32.totalorder %s127, %s128
    %p137 = scmp.eq.s32.totalorder %s33, 0
    %p138 = por %p136, %p137
    %p139 = scmp.ne.s32.totalorder %s127, %s128
    %p140 = scmp.eq.s32.totalorder %s34, 1
    %p141 = por %p139, %p140
    %p143 = scmp.ne.s32.totalorder %s128, %s142
    %p144 = scmp.eq.s32.totalorder %s34, 0
    %p145 = por %p143, %p144
    %s147 = sadd.s32 %s146, 1
    %p150 = scmp.eq.s32.totalorder %s28, 1
    %p151 = scmp.ne.s32.totalorder %s146, %s148
    %p152 = scmp.eq.s32.totalorder %s28, 0
    %p153 = por %p151, %p152
    %p154 = scmp.ne.s32.totalorder %s146, %s148
    %p155 = scmp.eq.s32.totalorder %s33, 1
    %p156 = por %p154, %p155
    %p157 = scmp.ne.s32.totalorder %s148, %s149
    %p158 = scmp.eq.s32.totalorder %s33, 0
    %p159 = por %p157, %p158
    %p160 = scmp.ne.s32.totalorder %s148, %s149
    %p161 = scmp.eq.s32.totalorder %s34, 1
    %p162 = por %p160, %p161
    %p164 = scmp.ne.s32.totalorder %s149, %s163
    %p165 = scmp.eq.s32.totalorder %s34, 0
    %p166 = por %p164, %p165
    %s168 = sadd.s32 %s167, 1
    %p171 = scmp.eq.s32.totalorder %s28, 1
    %p172 = scmp.ne.s32.totalorder %s167, %s169
    %p173 = scmp.eq.s32.totalorder %s28, 0
    %p174 = por %p172, %p173
    %p175 = scmp.ne.s32.totalorder %s167, %s169
    %p176 = scmp.eq.s32.totalorder %s33, 1
    %p177 = por %p175, %p176
    %p178 = scmp.ne.s32.totalorder %s169, %s170
    %p179 = scmp.eq.s32.totalorder %s33, 0
    %p180 = por %p178, %p179
    %p181 = scmp.ne.s32.totalorder %s169, %s170
    %p182 = scmp.eq.s32.totalorder %s34, 1
    %p183 = por %p181, %p182
    %p185 = scmp.ne.s32.totalorder %s170, %s184
    %p186 = scmp.eq.s32.totalorder %s34, 0
    %p187 = por %p185, %p186
    %s189 = sadd.s32 %s188, 1
    %p192 = scmp.eq.s32.totalorder %s28, 1
    %p193 = scmp.ne.s32.totalorder %s188, %s190
    %p194 = scmp.eq.s32.totalorder %s28, 0
    %p195 = por %p193, %p194
    %p196 = scmp.ne.s32.totalorder %s188, %s190
    %p197 = scmp.eq.s32.totalorder %s33, 1
    %p198 = por %p196, %p197
    %p199 = scmp.ne.s32.totalorder %s190, %s191
    %p200 = scmp.eq.s32.totalorder %s33, 0
    %p201 = por %p199, %p200
    %p202 = scmp.ne.s32.totalorder %s190, %s191
    %p203 = scmp.eq.s32.totalorder %s34, 1
    %p204 = por %p202, %p203
    %p206 = scmp.ne.s32.totalorder %s191, %s205
    %p207 = scmp.eq.s32.totalorder %s34, 0
    %p208 = por %p206, %p207
    %s210 = sadd.s32 %s209, 1
    %p213 = scmp.eq.s32.totalorder %s28, 1
    %p214 = scmp.ne.s32.totalorder %s209, %s211
    %p215 = scmp.eq.s32.totalorder %s28, 0
    %p216 = por %p214, %p215
    %p217 = scmp.ne.s32.totalorder %s209, %s211
    %p218 = scmp.eq.s32.totalorder %s33, 1
    %p219 = por %p217, %p218
    %p220 = scmp.ne.s32.totalorder %s211, %s212
    %p221 = scmp.eq.s32.totalorder %s33, 0
    %p222 = por %p220, %p221
    %p223 = scmp.ne.s32.totalorder %s211, %s212
    %p224 = scmp.eq.s32.totalorder %s34, 1
    %p225 = por %p223, %p224
    %p227 = scmp.ne.s32.totalorder %s212, %s226
    %p228 = scmp.eq.s32.totalorder %s34, 0
    %p229 = por %p227, %p228
    %s231 = sadd.s32 %s230, 1
    %p234 = scmp.eq.s32.totalorder %s28, 1
    %p235 = scmp.ne.s32.totalorder %s230, %s232
    %p236 = scmp.eq.s32.totalorder %s28, 0
    %p237 = por %p235, %p236
    %p238 = scmp.ne.s32.totalorder %s230, %s232
    %p239 = scmp.eq.s32.totalorder %s33, 1
    %p240 = por %p238, %p239
    %p241 = scmp.ne.s32.totalorder %s232, %s233
    %p242 = scmp.eq.s32.totalorder %s33, 0
    %p243 = por %p241, %p242
    %p244 = scmp.ne.s32.totalorder %s232, %s233
    %p245 = scmp.eq.s32.totalorder %s34, 1
    %p246 = por %p244, %p245
    %p248 = scmp.ne.s32.totalorder %s233, %s247
    %p249 = scmp.eq.s32.totalorder %s34, 0
    %p250 = por %p248, %p249
    %s252 = sadd.s32 %s251, 1
    %p255 = scmp.eq.s32.totalorder %s28, 1
    %p256 = scmp.ne.s32.totalorder %s251, %s253
    %p257 = scmp.eq.s32.totalorder %s28, 0
    %p258 = por %p256, %p257
    %p259 = scmp.ne.s32.totalorder %s251, %s253
    %p260 = scmp.eq.s32.totalorder %s33, 1
    %p261 = por %p259, %p260
    %p262 = scmp.ne.s32.totalorder %s253, %s254
    %p263 = scmp.eq.s32.totalorder %s33, 0
    %p264 = por %p262, %p263
    %p265 = scmp.ne.s32.totalorder %s253, %s254
    %p266 = scmp.eq.s32.totalorder %s34, 1
    %p267 = por %p265, %p266
    %p269 = scmp.ne.s32.totalorder %s254, %s268
    %p270 = scmp.eq.s32.totalorder %s34, 0
    %p271 = por %p269, %p270
    %s273 = sadd.s32 %s272, 1
    %p276 = scmp.eq.s32.totalorder %s28, 1
    %p277 = scmp.ne.s32.totalorder %s272, %s274
    %p278 = scmp.eq.s32.totalorder %s28, 0
    %p279 = por %p277, %p278
    %p280 = scmp.ne.s32.totalorder %s272, %s274
    %p281 = scmp.eq.s32.totalorder %s33, 1
    %p282 = por %p280, %p281
    %p283 = scmp.ne.s32.totalorder %s274, %s275
    %p284 = scmp.eq.s32.totalorder %s33, 0
    %p285 = por %p283, %p284
    %p286 = scmp.ne.s32.totalorder %s274, %s275
    %p287 = scmp.eq.s32.totalorder %s34, 1
    %p288 = por %p286, %p287
    %p290 = scmp.ne.s32.totalorder %s275, %s289
    %p291 = scmp.eq.s32.totalorder %s34, 0
    %p292 = por %p290, %p291
    %s294 = sadd.s32 %s293, 1
    %p297 = scmp.eq.s32.totalorder %s28, 1
    %p298 = scmp.ne.s32.totalorder %s293, %s295
    %p299 = scmp.eq.s32.totalorder %s28, 0
    %p300 = por %p298, %p299
    %p301 = scmp.ne.s32.totalorder %s293, %s295
    %p302 = scmp.eq.s32.totalorder %s33, 1
    %p303 = por %p301, %p302
    %p304 = scmp.ne.s32.totalorder %s295, %s296
    %p305 = scmp.eq.s32.totalorder %s33, 0
    %p306 = por %p304, %p305
    %p307 = scmp.ne.s32.totalorder %s295, %s296
    %p308 = scmp.eq.s32.totalorder %s34, 1
    %p309 = por %p307, %p308
    %p311 = scmp.ne.s32.totalorder %s296, %s310
    %p312 = scmp.eq.s32.totalorder %s34, 0
    %p313 = por %p311, %p312
    %s315 = sadd.s32 %s314, 1
    %p318 = scmp.eq.s32.totalorder %s28, 1
    %p319 = scmp.ne.s32.totalorder %s314, %s316
    %p320 = scmp.eq.s32.totalorder %s28, 0
    %p321 = por %p319, %p320
    %p322 = scmp.ne.s32.totalorder %s314, %s316
    %p323 = scmp.eq.s32.totalorder %s33, 1
    %p324 = por %p322, %p323
    %p325 = scmp.ne.s32.totalorder %s316, %s317
    %p326 = scmp.eq.s32.totalorder %s33, 0
    %p327 = por %p325, %p326
    %p328 = scmp.ne.s32.totalorder %s316, %s317
    %p329 = scmp.eq.s32.totalorder %s34, 1
    %p330 = por %p328, %p329
    %p332 = scmp.ne.s32.totalorder %s317, %s331
    %p333 = scmp.eq.s32.totalorder %s34, 0
    %p334 = por %p332, %p333
    %s336 = sadd.s32 %s335, 1
    %p339 = scmp.eq.s32.totalorder %s28, 1
    %p340 = scmp.ne.s32.totalorder %s335, %s337
    %p341 = scmp.eq.s32.totalorder %s28, 0
    %p342 = por %p340, %p341
    %p343 = scmp.ne.s32.totalorder %s335, %s337
    %p344 = scmp.eq.s32.totalorder %s33, 1
    %p345 = por %p343, %p344
    %p346 = scmp.ne.s32.totalorder %s337, %s338
    %p347 = scmp.eq.s32.totalorder %s33, 0
    %p348 = por %p346, %p347
    %p349 = scmp.ne.s32.totalorder %s337, %s338
    %p350 = scmp.eq.s32.totalorder %s34, 1
    %p351 = por %p349, %p350
    %p353 = scmp.ne.s32.totalorder %s338, %s352
    %p354 = scmp.eq.s32.totalorder %s34, 0
    %p355 = por %p353, %p354
    %s357 = sadd.s32 %s356, 1
    %p360 = scmp.eq.s32.totalorder %s28, 1
    %p361 = scmp.ne.s32.totalorder %s356, %s358
    %p362 = scmp.eq.s32.totalorder %s28, 0
    %p363 = por %p361, %p362
    %p364 = scmp.ne.s32.totalorder %s356, %s358
    %p365 = scmp.eq.s32.totalorder %s33, 1
    %p366 = por %p364, %p365
    %p367 = scmp.ne.s32.totalorder %s358, %s359
    %p368 = scmp.eq.s32.totalorder %s33, 0
    %p369 = por %p367, %p368
    %p370 = scmp.ne.s32.totalorder %s358, %s359
    %p371 = scmp.eq.s32.totalorder %s34, 1
    %p372 = por %p370, %p371
    %p374 = scmp.ne.s32.totalorder %s359, %s373
    %p375 = scmp.eq.s32.totalorder %s34, 0
    %p376 = por %p374, %p375
    %s378 = sadd.s32 %s377, 1
    %p381 = scmp.eq.s32.totalorder %s28, 1
    %p382 = scmp.ne.s32.totalorder %s377, %s379
    %p383 = scmp.eq.s32.totalorder %s28, 0
    %p384 = por %p382, %p383
    %p385 = scmp.ne.s32.totalorder %s377, %s379
    %p386 = scmp.eq.s32.totalorder %s33, 1
    %p387 = por %p385, %p386
    %p388 = scmp.ne.s32.totalorder %s379, %s380
    %p389 = scmp.eq.s32.totalorder %s33, 0
    %p390 = por %p388, %p389
    %p391 = scmp.ne.s32.totalorder %s379, %s380
    %p392 = scmp.eq.s32.totalorder %s34, 1
    %p393 = por %p391, %p392
    %p395 = scmp.ne.s32.totalorder %s380, %s394
    %p396 = scmp.eq.s32.totalorder %s34, 0
    %p397 = por %p395, %p396
    %s399 = sadd.s32 %s398, 1
    %p402 = scmp.eq.s32.totalorder %s28, 1
    %p403 = scmp.ne.s32.totalorder %s398, %s400
    %p404 = scmp.eq.s32.totalorder %s28, 0
    %p405 = por %p403, %p404
    %p406 = scmp.ne.s32.totalorder %s398, %s400
    %p407 = scmp.eq.s32.totalorder %s33, 1
    %p408 = por %p406, %p407
    %p409 = scmp.ne.s32.totalorder %s400, %s401
    %p410 = scmp.eq.s32.totalorder %s33, 0
    %p411 = por %p409, %p410
    %p412 = scmp.ne.s32.totalorder %s400, %s401
    %p413 = scmp.eq.s32.totalorder %s34, 1
    %p414 = por %p412, %p413
    %p416 = scmp.ne.s32.totalorder %s401, %s415
    %p417 = scmp.eq.s32.totalorder %s34, 0
    %p418 = por %p416, %p417
    %s420 = sadd.s32 %s419, 1
    %p423 = scmp.eq.s32.totalorder %s28, 1
    %p424 = scmp.ne.s32.totalorder %s419, %s421
    %p425 = scmp.eq.s32.totalorder %s28, 0
    %p426 = por %p424, %p425
    %p427 = scmp.ne.s32.totalorder %s419, %s421
    %p428 = scmp.eq.s32.totalorder %s33, 1
    %p429 = por %p427, %p428
    %p430 = scmp.ne.s32.totalorder %s421, %s422
    %p431 = scmp.eq.s32.totalorder %s33, 0
    %p432 = por %p430, %p431
    %p433 = scmp.ne.s32.totalorder %s421, %s422
    %p434 = scmp.eq.s32.totalorder %s34, 1
    %p435 = por %p433, %p434
    %p437 = scmp.ne.s32.totalorder %s422, %s436
    %p438 = scmp.eq.s32.totalorder %s34, 0
    %p439 = por %p437, %p438
    %s441 = sadd.s32 %s440, 1
    %p444 = scmp.eq.s32.totalorder %s28, 1
    %p445 = scmp.ne.s32.totalorder %s440, %s442
    %p446 = scmp.eq.s32.totalorder %s28, 0
    %p447 = por %p445, %p446
    %p448 = scmp.ne.s32.totalorder %s440, %s442
    %p449 = scmp.eq.s32.totalorder %s33, 1
    %p450 = por %p448, %p449
    %p451 = scmp.ne.s32.totalorder %s442, %s443
    %p452 = scmp.eq.s32.totalorder %s33, 0
    %p453 = por %p451, %p452
    %p454 = scmp.ne.s32.totalorder %s442, %s443
    %p455 = scmp.eq.s32.totalorder %s34, 1
    %p456 = por %p454, %p455
    %p458 = scmp.ne.s32.totalorder %s443, %s457
    %p459 = scmp.eq.s32.totalorder %s34, 0
    %p460 = por %p458, %p459
    %s462 = sadd.s32 %s461, 1
    %p465 = scmp.eq.s32.totalorder %s28, 1
    %p466 = scmp.ne.s32.totalorder %s461, %s463
    %p467 = scmp.eq.s32.totalorder %s28, 0
    %p468 = por %p466, %p467
    %p469 = scmp.ne.s32.totalorder %s461, %s463
    %p470 = scmp.eq.s32.totalorder %s33, 1
    %p471 = por %p469, %p470
    %p472 = scmp.ne.s32.totalorder %s463, %s464
    %p473 = scmp.eq.s32.totalorder %s33, 0
    %p474 = por %p472, %p473
    %p475 = scmp.ne.s32.totalorder %s463, %s464
    %p476 = scmp.eq.s32.totalorder %s34, 1
    %p477 = por %p475, %p476
    %p479 = scmp.ne.s32.totalorder %s464, %s478
    %p480 = scmp.eq.s32.totalorder %s34, 0
    %p481 = por %p479, %p480
    %s482 = ssub.s32 %s28, %s35
    %p483 = scmp.eq.s32.totalorder %s482, 0
    %s485 = sadd.s32 %s484, 1
    %s486 = scalar_select %p483, %s484, %s485
    %p489 = pneg %p483
    %p490 = scmp.eq.s32.totalorder %s28, 1
    %p491 = por %p489, %p490
    %p492 = scmp.ne.s32.totalorder %s484, %s487
    %p493 = scmp.eq.s32.totalorder %s28, 0
    %p494 = por %p492, %p493
    %p495 = scmp.ne.s32.totalorder %s484, %s487
    %p496 = scmp.eq.s32.totalorder %s33, 1
    %p497 = por %p495, %p496
    %p498 = scmp.ne.s32.totalorder %s487, %s488
    %p499 = scmp.eq.s32.totalorder %s33, 0
    %p500 = por %p498, %p499
    %p501 = scmp.ne.s32.totalorder %s487, %s488
    %p502 = scmp.eq.s32.totalorder %s34, 1
    %p503 = por %p501, %p502
    %p505 = scmp.ne.s32.totalorder %s488, %s504
    %p506 = scmp.eq.s32.totalorder %s34, 0
    %p507 = por %p505, %p506
    %p508 = scmp.le.s32.totalorder 1, %s28
    %p509 = scmp.lt.s32.totalorder %s28, 3
    %p510 = pnand %p508, %p509
    %p511 = pneg %p510
    // Predicated region
    $region9: #{gating_cnn_with_attention.1} parent=5 // pred_check
      _
    $region10: #{gating_cnn_with_attention.1} parent=5 // pred_check_branch
      %513 = sbr.rel (%p510) target = $region12
    $region11: #{gating_cnn_with_attention.1} parent=5 // pred_region
      %s514 = ssub.s32 %s28, 1
      // Predicated region
      $region13: #{gating_cnn_with_attention.1} parent=11 // pred_check
        %p515 = pneg %p75
      $region14: #{gating_cnn_with_attention.1} parent=11 // pred_check_branch
        %517 = sbr.rel (%p515) target = $region16
      $region15: #{gating_cnn_with_attention.1} parent=11 // pred_region
        _
      $region16: #{gating_cnn_with_attention.1} parent=11 // pred_fallthru
        _
      // Predicated region
      $region17: #{gating_cnn_with_attention.1} parent=11 // pred_check
        %p518 = pneg %p96
      $region18: #{gating_cnn_with_attention.1} parent=11 // pred_check_branch
        %520 = sbr.rel (%p518) target = $region20
      $region19: #{gating_cnn_with_attention.1} parent=11 // pred_region
        _
      $region20: #{gating_cnn_with_attention.1} parent=11 // pred_fallthru
        _
      // Predicated region
      $region21: #{gating_cnn_with_attention.1} parent=11 // pred_check
        %p521 = pneg %p117
      $region22: #{gating_cnn_with_attention.1} parent=11 // pred_check_branch
        %523 = sbr.rel (%p521) target = $region24
      $region23: #{gating_cnn_with_attention.1} parent=11 // pred_region
        _
      $region24: #{gating_cnn_with_attention.1} parent=11 // pred_fallthru
        _
      // Predicated region
      $region25: #{gating_cnn_with_attention.1} parent=11 // pred_check
        %p524 = pneg %p138
      $region26: #{gating_cnn_with_attention.1} parent=11 // pred_check_branch
        %526 = sbr.rel (%p524) target = $region28
      $region27: #{gating_cnn_with_attention.1} parent=11 // pred_region
        _
      $region28: #{gating_cnn_with_attention.1} parent=11 // pred_fallthru
        _
      // Predicated region
      $region29: #{gating_cnn_with_attention.1} parent=11 // pred_check
        %p527 = pneg %p159
      $region30: #{gating_cnn_with_attention.1} parent=11 // pred_check_branch
        %529 = sbr.rel (%p527) target = $region32
      $region31: #{gating_cnn_with_attention.1} parent=11 // pred_region
        _
      $region32: #{gating_cnn_with_attention.1} parent=11 // pred_fallthru
        _
      // Predicated region
      $region33: #{gating_cnn_with_attention.1} parent=11 // pred_check
        %p530 = pneg %p180
      $region34: #{gating_cnn_with_attention.1} parent=11 // pred_check_branch
        %532 = sbr.rel (%p530) target = $region36
      $region35: #{gating_cnn_with_attention.1} parent=11 // pred_region
        _
      $region36: #{gating_cnn_with_attention.1} parent=11 // pred_fallthru
        _
      // Predicated region
      $region37: #{gating_cnn_with_attention.1} parent=11 // pred_check
        %p533 = pneg %p201
      $region38: #{gating_cnn_with_attention.1} parent=11 // pred_check_branch
        %535 = sbr.rel (%p533) target = $region40
      $region39: #{gating_cnn_with_attention.1} parent=11 // pred_region
        _
      $region40: #{gating_cnn_with_attention.1} parent=11 // pred_fallthru
        _
      // Predicated region
      $region41: #{gating_cnn_with_attention.1} parent=11 // pred_check
        %p536 = pneg %p222
      $region42: #{gating_cnn_with_attention.1} parent=11 // pred_check_branch
        %538 = sbr.rel (%p536) target = $region44
      $region43: #{gating_cnn_with_attention.1} parent=11 // pred_region
        _
      $region44: #{gating_cnn_with_attention.1} parent=11 // pred_fallthru
        _
      // Predicated region
      $region45: #{gating_cnn_with_attention.1} parent=11 // pred_check
        %p539 = pneg %p243
      $region46: #{gating_cnn_with_attention.1} parent=11 // pred_check_branch
        %541 = sbr.rel (%p539) target = $region48
      $region47: #{gating_cnn_with_attention.1} parent=11 // pred_region
        _
      $region48: #{gating_cnn_with_attention.1} parent=11 // pred_fallthru
        _
      // Predicated region
      $region49: #{gating_cnn_with_attention.1} parent=11 // pred_check
        %p542 = pneg %p264
      $region50: #{gating_cnn_with_attention.1} parent=11 // pred_check_branch
        %544 = sbr.rel (%p542) target = $region52
      $region51: #{gating_cnn_with_attention.1} parent=11 // pred_region
        _
      $region52: #{gating_cnn_with_attention.1} parent=11 // pred_fallthru
        _
      // Predicated region
      $region53: #{gating_cnn_with_attention.1} parent=11 // pred_check
        %p545 = pneg %p285
      $region54: #{gating_cnn_with_attention.1} parent=11 // pred_check_branch
        %547 = sbr.rel (%p545) target = $region56
      $region55: #{gating_cnn_with_attention.1} parent=11 // pred_region
        _
      $region56: #{gating_cnn_with_attention.1} parent=11 // pred_fallthru
        _
      // Predicated region
      $region57: #{gating_cnn_with_attention.1} parent=11 // pred_check
        %p548 = pneg %p306
      $region58: #{gating_cnn_with_attention.1} parent=11 // pred_check_branch
        %550 = sbr.rel (%p548) target = $region60
      $region59: #{gating_cnn_with_attention.1} parent=11 // pred_region
        _
      $region60: #{gating_cnn_with_attention.1} parent=11 // pred_fallthru
        _
      // Predicated region
      $region61: #{gating_cnn_with_attention.1} parent=11 // pred_check
        %p551 = pneg %p327
      $region62: #{gating_cnn_with_attention.1} parent=11 // pred_check_branch
        %553 = sbr.rel (%p551) target = $region64
      $region63: #{gating_cnn_with_attention.1} parent=11 // pred_region
        _
      $region64: #{gating_cnn_with_attention.1} parent=11 // pred_fallthru
        _
      // Predicated region
      $region65: #{gating_cnn_with_attention.1} parent=11 // pred_check
        %p554 = pneg %p348
      $region66: #{gating_cnn_with_attention.1} parent=11 // pred_check_branch
        %556 = sbr.rel (%p554) target = $region68
      $region67: #{gating_cnn_with_attention.1} parent=11 // pred_region
        _
      $region68: #{gating_cnn_with_attention.1} parent=11 // pred_fallthru
        _
      // Predicated region
      $region69: #{gating_cnn_with_attention.1} parent=11 // pred_check
        %p557 = pneg %p369
      $region70: #{gating_cnn_with_attention.1} parent=11 // pred_check_branch
        %559 = sbr.rel (%p557) target = $region72
      $region71: #{gating_cnn_with_attention.1} parent=11 // pred_region
        _
      $region72: #{gating_cnn_with_attention.1} parent=11 // pred_fallthru
        _
      // Predicated region
      $region73: #{gating_cnn_with_attention.1} parent=11 // pred_check
        %p560 = pneg %p390
      $region74: #{gating_cnn_with_attention.1} parent=11 // pred_check_branch
        %562 = sbr.rel (%p560) target = $region76
      $region75: #{gating_cnn_with_attention.1} parent=11 // pred_region
        _
      $region76: #{gating_cnn_with_attention.1} parent=11 // pred_fallthru
        _
      // Predicated region
      $region77: #{gating_cnn_with_attention.1} parent=11 // pred_check
        %p563 = pneg %p411
      $region78: #{gating_cnn_with_attention.1} parent=11 // pred_check_branch
        %565 = sbr.rel (%p563) target = $region80
      $region79: #{gating_cnn_with_attention.1} parent=11 // pred_region
        _
      $region80: #{gating_cnn_with_attention.1} parent=11 // pred_fallthru
        _
      // Predicated region
      $region81: #{gating_cnn_with_attention.1} parent=11 // pred_check
        %p566 = pneg %p432
      $region82: #{gating_cnn_with_attention.1} parent=11 // pred_check_branch
        %568 = sbr.rel (%p566) target = $region84
      $region83: #{gating_cnn_with_attention.1} parent=11 // pred_region
        _
      $region84: #{gating_cnn_with_attention.1} parent=11 // pred_fallthru
        _
      // Predicated region
      $region85: #{gating_cnn_with_attention.1} parent=11 // pred_check
        %p569 = pneg %p453
      $region86: #{gating_cnn_with_attention.1} parent=11 // pred_check_branch
        %571 = sbr.rel (%p569) target = $region88
      $region87: #{gating_cnn_with_attention.1} parent=11 // pred_region
        _
      $region88: #{gating_cnn_with_attention.1} parent=11 // pred_fallthru
        _
      // Predicated region
      $region89: #{gating_cnn_with_attention.1} parent=11 // pred_check
        %p572 = pneg %p474
      $region90: #{gating_cnn_with_attention.1} parent=11 // pred_check_branch
        %574 = sbr.rel (%p572) target = $region92
      $region91: #{gating_cnn_with_attention.1} parent=11 // pred_region
        _
      $region92: #{gating_cnn_with_attention.1} parent=11 // pred_fallthru
        _
    $region12: #{gating_cnn_with_attention.1} parent=5 // pred_fallthru
      _
    %p575 = scmp.lt.s32.totalorder %s28, 2
    // Predicated region
    $region93: #{gating_cnn_with_attention.1} parent=5 // pred_check
      %p576 = pneg %p575
    $region94: #{gating_cnn_with_attention.1} parent=5 // pred_check_branch
      %578 = sbr.rel (%p576) target = $region96
    $region95: #{gating_cnn_with_attention.1} parent=5 // pred_region
      // Predicated region
      $region97: #{gating_cnn_with_attention.1} parent=95 // pred_check
        %p579 = pneg %p48
      $region98: #{gating_cnn_with_attention.1} parent=95 // pred_check_branch
        %581 = sbr.rel (%p579) target = $region100
      $region99: #{gating_cnn_with_attention.1} parent=95 // pred_region
        %p582 = scmp.lt.s32.totalorder %s28, 1
        %s583 = scalar_select %p582, %s28, 1
        %s584 = smul.addr %s583, 32
        %s585 = smul.addr %s584, 4
        %s586 = scalar_lea.vmem %s0, %s585
      $region100: #{gating_cnn_with_attention.1} parent=95 // pred_fallthru
        _
    $region96: #{gating_cnn_with_attention.1} parent=5 // pred_fallthru
      _
    %p587 = scmp.le.s32.totalorder 1, %s28
    %p588 = scmp.lt.s32.totalorder %s28, 3
    %p589 = pnand %p587, %p588
    %p590 = pneg %p589
    // Predicated region
    $region101: #{gating_cnn_with_attention.1} parent=5 // pred_check
      _
    $region102: #{gating_cnn_with_attention.1} parent=5 // pred_check_branch
      %592 = sbr.rel (%p589) target = $region104
    $region103: #{gating_cnn_with_attention.1} parent=5 // pred_region
      %s593 = ssub.s32 %s28, 1
      %p594 = scmp.lt.s32.totalorder %s33, 1
      %s595 = scalar_select %p594, %s33, 1
      %s596 = smul.addr %s595, 32
      %s597 = smul.addr %s596, 4
      %s598 = scalar_lea.vmem %s0, %s597
      %p599 = pneg %p54
      %p600 = pneg %p51
      %p601 = pneg %p75
      %p602 = pneg %p72
      %p603 = pneg %p96
      %p604 = pneg %p93
      %p605 = pneg %p117
      %p606 = pneg %p114
      %p607 = pneg %p138
      %p608 = pneg %p135
      %p609 = pneg %p159
      %p610 = pneg %p156
      %p611 = pneg %p180
      %p612 = pneg %p177
      %p613 = pneg %p201
      %p614 = pneg %p198
      %p615 = pneg %p222
      %p616 = pneg %p219
      %p617 = pneg %p243
      %p618 = pneg %p240
      %p619 = pneg %p264
      %p620 = pneg %p261
      %p621 = pneg %p285
      %p622 = pneg %p282
      %p623 = pneg %p306
      %p624 = pneg %p303
      %p625 = pneg %p327
      %p626 = pneg %p324
      %p627 = pneg %p348
      %p628 = pneg %p345
      %p629 = pneg %p369
      %p630 = pneg %p366
      %p631 = pneg %p390
      %p632 = pneg %p387
      %p633 = pneg %p411
      %p634 = pneg %p408
      %p635 = pneg %p432
      %p636 = pneg %p429
      %p637 = pneg %p453
      %p638 = pneg %p450
      %p639 = pneg %p474
      %p640 = pneg %p471
      %p641 = pneg %p500
      %p642 = pneg %p497
      %p643 = scmp.lt.s32.totalorder %s33, 1
      %s644 = scalar_select %p643, %s33, 1
      %s645 = smul.addr %s644, 8
      %s646 = scalar_lea.vmem %s21, %s645
      %p647 = scmp.lt.s32.totalorder %s33, 1
      %s648 = scalar_select %p647, %s33, 1
      %s649 = smul.addr %s648, 32
      %s650 = smul.addr %s649, 4
      %s651 = scalar_lea.vmem %s0, %s650
      %p652 = scmp.lt.s32.totalorder %s33, 1
      %s653 = scalar_select %p652, %s33, 1
      %s654 = smul.addr %s653, 8
      %s655 = scalar_lea.vmem %s21, %s654
      %v657 = vld [vmem:[%s651] sm:$0xf]
      %v658 = vld [vmem:[%s651 + $0x4] sm:$0xf]
      %v659 = vld [vmem:[%s651 + $0x8] sm:$0xf]
      %v660 = vld [vmem:[%s651 + $0xc] sm:$0xf]
      %v661 = vld [vmem:[%s651 + $0x10] sm:$0xf]
      %v662 = vld [vmem:[%s651 + $0x14] sm:$0xf]
      %v663 = vld [vmem:[%s651 + $0x18] sm:$0xf]
      %v664 = vld [vmem:[%s651 + $0x1c] sm:$0xf]
      %v665 = vld [vmem:[%s651 + $0x20] sm:$0xf]
      %v666 = vld [vmem:[%s651 + $0x24] sm:$0xf]
      %v667 = vld [vmem:[%s651 + $0x28] sm:$0xf]
      %v668 = vld [vmem:[%s651 + $0x2c] sm:$0xf]
      %v669 = vld [vmem:[%s651 + $0x30] sm:$0xf]
      %v670 = vld [vmem:[%s651 + $0x34] sm:$0xf]
      %v671 = vld [vmem:[%s651 + $0x38] sm:$0xf]
      %v672 = vld [vmem:[%s651 + $0x3c] sm:$0xf]
      %v673 = vld [vmem:[%s651 + $0x40] sm:$0xf]
      %v674 = vld [vmem:[%s651 + $0x44] sm:$0xf]
      %v675 = vld [vmem:[%s651 + $0x48] sm:$0xf]
      %v676 = vld [vmem:[%s651 + $0x4c] sm:$0xf]
      %v677 = vld [vmem:[%s651 + $0x50] sm:$0xf]
      %v678 = vld [vmem:[%s651 + $0x54] sm:$0xf]
      %v679 = vld [vmem:[%s651 + $0x58] sm:$0xf]
      %v680 = vld [vmem:[%s651 + $0x5c] sm:$0xf]
      %v681 = vld [vmem:[%s651 + $0x60] sm:$0xf]
      %v682 = vld [vmem:[%s651 + $0x64] sm:$0xf]
      %v683 = vld [vmem:[%s651 + $0x68] sm:$0xf]
      %v684 = vld [vmem:[%s651 + $0x6c] sm:$0xf]
      %v685 = vld [vmem:[%s651 + $0x70] sm:$0xf]
      %v686 = vld [vmem:[%s651 + $0x74] sm:$0xf]
      %v687 = vld [vmem:[%s651 + $0x78] sm:$0xf]
      %v688 = vld [vmem:[%s651 + $0x7c] sm:$0xf]
      %v689 = vld [vmem:[%s1] sm:$0xf]
      %v690 = vld [vmem:[%s1 + $0x4] sm:$0xf]
      %v691 = vld [vmem:[%s1 + $0x8] sm:$0xf]
      %v692 = vld [vmem:[%s1 + $0xc] sm:$0xf]
      %v725 = vunpack.c.l.b16 %v657
      %v726 = vunpack.c.l.b16 %v658
      %v727 = vunpack.c.l.b16 %v659
      %v728 = vunpack.c.l.b16 %v660
      %v729 = vunpack.c.l.b16 %v661
      %v730 = vunpack.c.l.b16 %v662
      %v731 = vunpack.c.l.b16 %v663
      %v732 = vunpack.c.l.b16 %v664
      %v733 = vunpack.c.l.b16 %v665
      %v734 = vunpack.c.l.b16 %v666
      %v735 = vunpack.c.l.b16 %v667
      %v736 = vunpack.c.l.b16 %v668
      %v737 = vunpack.c.l.b16 %v669
      %v738 = vunpack.c.l.b16 %v670
      %v739 = vunpack.c.l.b16 %v671
      %v740 = vunpack.c.l.b16 %v672
      %v741 = vunpack.c.l.b16 %v673
      %v742 = vunpack.c.l.b16 %v674
      %v743 = vunpack.c.l.b16 %v675
      %v744 = vunpack.c.l.b16 %v676
      %v745 = vunpack.c.l.b16 %v677
      %v746 = vunpack.c.l.b16 %v678
      %v747 = vunpack.c.l.b16 %v679
      %v748 = vunpack.c.l.b16 %v680
      %v749 = vunpack.c.l.b16 %v681
      %v750 = vunpack.c.l.b16 %v682
      %v751 = vunpack.c.l.b16 %v683
      %v752 = vunpack.c.l.b16 %v684
      %v753 = vunpack.c.l.b16 %v685
      %v754 = vunpack.c.l.b16 %v686
      %v755 = vunpack.c.l.b16 %v687
      %v756 = vunpack.c.l.b16 %v688
      %v757 = vpack.c.b16 %v726, %v725
      %v758 = vpack.c.b16 %v728, %v727
      %v759 = vpack.c.b16 %v730, %v729
      %v760 = vpack.c.b16 %v732, %v731
      %v761 = vpack.c.b16 %v734, %v733
      %v762 = vpack.c.b16 %v736, %v735
      %v763 = vpack.c.b16 %v738, %v737
      %v764 = vpack.c.b16 %v740, %v739
      %v765 = vpack.c.b16 %v742, %v741
      %v766 = vpack.c.b16 %v744, %v743
      %v767 = vpack.c.b16 %v746, %v745
      %v768 = vpack.c.b16 %v748, %v747
      %v769 = vpack.c.b16 %v750, %v749
      %v770 = vpack.c.b16 %v752, %v751
      %v771 = vpack.c.b16 %v754, %v753
      %v772 = vpack.c.b16 %v756, %v755
      %v777 = vunpack.c.l.b16 %v689
      %v778 = vunpack.c.l.b16 %v690
      %v779 = vunpack.c.l.b16 %v691
      %v780 = vunpack.c.l.b16 %v692
      %v781 = vpack.c.b16 %v778, %v777
      %v782 = vpack.c.b16 %v780, %v779
      %vm785 = vcmask 261120
      %v787 = vsel %vm785, %v757, 0
      %v790 = vsel %vm785, %v758, 0
      %v793 = vsel %vm785, %v759, 0
      %v796 = vsel %vm785, %v760, 0
      %v799 = vsel %vm785, %v761, 0
      %v802 = vsel %vm785, %v762, 0
      %v805 = vsel %vm785, %v763, 0
      %v808 = vsel %vm785, %v764, 0
      %v811 = vsel %vm785, %v765, 0
      %v814 = vsel %vm785, %v766, 0
      %v817 = vsel %vm785, %v767, 0
      %v820 = vsel %vm785, %v768, 0
      %v823 = vsel %vm785, %v769, 0
      %v826 = vsel %vm785, %v770, 0
      %v829 = vsel %vm785, %v771, 0
      %v832 = vsel %vm785, %v772, 0
      %834 = vmatprep.subr.bf16.mxu0 0
      %835 = vmatpush1.bf16.msra.mxu0 %v781
      %836 = vmatprep.subr.bf16.mxu0 0
      %837 = vmatpush1.bf16.msra.mxu0 %v782
      %838 = vmatprep.subr.bf16.mxu0 0
      %839 = vmatpush1.bf16.msra.mxu0 0
      %840 = vmatprep.subr.bf16.mxu0 0
      %841 = vmatpush1.bf16.msra.mxu0 0
      %842 = vmatprep.subr.bf16.mxu0 0
      %843 = vmatpush1.bf16.msra.mxu0 0
      %844 = vmatprep.subr.bf16.mxu0 0
      %845 = vmatpush1.bf16.msra.mxu0 0
      %846 = vmatprep.subr.bf16.mxu0 0
      %847 = vmatpush1.bf16.msra.mxu0 0
      %848 = vmatprep.subr.bf16.mxu0 0
      %849 = vmatpush1.bf16.msra.mxu0 0
      %850 = vmatprep.subr.bf16.mxu0 0
      %851 = vmatpush1.bf16.msra.mxu0 0
      %852 = vmatprep.subr.bf16.mxu0 0
      %853 = vmatpush1.bf16.msra.mxu0 0
      %854 = vmatprep.subr.bf16.mxu0 0
      %855 = vmatpush1.bf16.msra.mxu0 0
      %856 = vmatprep.subr.bf16.mxu0 0
      %857 = vmatpush1.bf16.msra.mxu0 0
      %858 = vmatprep.subr.bf16.mxu0 0
      %859 = vmatpush1.bf16.msra.mxu0 0
      %860 = vmatprep.subr.bf16.mxu0 0
      %861 = vmatpush1.bf16.msra.mxu0 0
      %862 = vmatprep.subr.bf16.mxu0 0
      %863 = vmatpush1.bf16.msra.mxu0 0
      %864 = vmatprep.subr.bf16.mxu0 0
      %865 = vmatpush1.bf16.msra.mxu0 0
      %866 = vmatprep.mubr.bf16.mxu0 0
      %867 = vmatmul.mubr.bf16.gmra.mrb[0].mxu0 %v787
      %v868 = vpop.f32.mrb[0].mxu0
      %v869 = vadd.f32 0.0, %v868
      %v870 = vpop.f32.mrb[0].mxu0
      %v871 = vpop.f32.mrb[0].mxu0
      %v872 = vadd.f32 0.0, %v871
      %v873 = vpop.f32.mrb[0].mxu0
      %874 = vmatprep.mubr.bf16.mxu0 0
      %875 = vmatmul.mubr.bf16.gmra.mrb[0].mxu0 %v790
      %v876 = vpop.f32.mrb[0].mxu0
      %v877 = vadd.f32 0.0, %v876
      %v878 = vpop.f32.mrb[0].mxu0
      %v879 = vpop.f32.mrb[0].mxu0
      %v880 = vadd.f32 0.0, %v879
      %v881 = vpop.f32.mrb[0].mxu0
      %882 = vmatprep.mubr.bf16.mxu0 0
      %883 = vmatmul.mubr.bf16.gmra.mrb[0].mxu0 %v793
      %v884 = vpop.f32.mrb[0].mxu0
      %v885 = vadd.f32 0.0, %v884
      %v886 = vpop.f32.mrb[0].mxu0
      %v887 = vpop.f32.mrb[0].mxu0
      %v888 = vadd.f32 0.0, %v887
      %v889 = vpop.f32.mrb[0].mxu0
      %890 = vmatprep.mubr.bf16.mxu0 0
      %891 = vmatmul.mubr.bf16.gmra.mrb[0].mxu0 %v796
      %v892 = vpop.f32.mrb[0].mxu0
      %v893 = vadd.f32 0.0, %v892
      %v894 = vpop.f32.mrb[0].mxu0
      %v895 = vpop.f32.mrb[0].mxu0
      %v896 = vadd.f32 0.0, %v895
      %v897 = vpop.f32.mrb[0].mxu0
      %898 = vmatprep.mubr.bf16.mxu0 0
      %899 = vmatmul.mubr.bf16.gmra.mrb[0].mxu0 %v799
      %v900 = vpop.f32.mrb[0].mxu0
      %v901 = vadd.f32 0.0, %v900
      %v902 = vpop.f32.mrb[0].mxu0
      %v903 = vpop.f32.mrb[0].mxu0
      %v904 = vadd.f32 0.0, %v903
      %v905 = vpop.f32.mrb[0].mxu0
      %906 = vmatprep.mubr.bf16.mxu0 0
      %907 = vmatmul.mubr.bf16.gmra.mrb[0].mxu0 %v802
      %v908 = vpop.f32.mrb[0].mxu0
      %v909 = vadd.f32 0.0, %v908
      %v910 = vpop.f32.mrb[0].mxu0
      %v911 = vpop.f32.mrb[0].mxu0
      %v912 = vadd.f32 0.0, %v911
      %v913 = vpop.f32.mrb[0].mxu0
      %914 = vmatprep.mubr.bf16.mxu0 0
      %915 = vmatmul.mubr.bf16.gmra.mrb[0].mxu0 %v805
      %v916 = vpop.f32.mrb[0].mxu0
      %v917 = vadd.f32 0.0, %v916
      %v918 = vpop.f32.mrb[0].mxu0
      %v919 = vpop.f32.mrb[0].mxu0
      %v920 = vadd.f32 0.0, %v919
      %v921 = vpop.f32.mrb[0].mxu0
      %922 = vmatprep.mubr.bf16.mxu0 0
      %923 = vmatmul.mubr.bf16.gmra.mrb[0].mxu0 %v808
      %v924 = vpop.f32.mrb[0].mxu0
      %v925 = vadd.f32 0.0, %v924
      %v926 = vpop.f32.mrb[0].mxu0
      %v927 = vpop.f32.mrb[0].mxu0
      %v928 = vadd.f32 0.0, %v927
      %v929 = vpop.f32.mrb[0].mxu0
      %930 = vmatprep.mubr.bf16.mxu0 0
      %931 = vmatmul.mubr.bf16.gmra.mrb[0].mxu0 %v811
      %v932 = vpop.f32.mrb[0].mxu0
      %v933 = vadd.f32 0.0, %v932
      %v934 = vpop.f32.mrb[0].mxu0
      %v935 = vpop.f32.mrb[0].mxu0
      %v936 = vadd.f32 0.0, %v935
      %v937 = vpop.f32.mrb[0].mxu0
      %938 = vmatprep.mubr.bf16.mxu0 0
      %939 = vmatmul.mubr.bf16.gmra.mrb[0].mxu0 %v814
      %v940 = vpop.f32.mrb[0].mxu0
      %v941 = vadd.f32 0.0, %v940
      %v942 = vpop.f32.mrb[0].mxu0
      %v943 = vpop.f32.mrb[0].mxu0
      %v944 = vadd.f32 0.0, %v943
      %v945 = vpop.f32.mrb[0].mxu0
      %946 = vmatprep.mubr.bf16.mxu0 0
      %947 = vmatmul.mubr.bf16.gmra.mrb[0].mxu0 %v817
      %v948 = vpop.f32.mrb[0].mxu0
      %v949 = vadd.f32 0.0, %v948
      %v950 = vpop.f32.mrb[0].mxu0
      %v951 = vpop.f32.mrb[0].mxu0
      %v952 = vadd.f32 0.0, %v951
      %v953 = vpop.f32.mrb[0].mxu0
      %954 = vmatprep.mubr.bf16.mxu0 0
      %955 = vmatmul.mubr.bf16.gmra.mrb[0].mxu0 %v820
      %v956 = vpop.f32.mrb[0].mxu0
      %v957 = vadd.f32 0.0, %v956
      %v958 = vpop.f32.mrb[0].mxu0
      %v959 = vpop.f32.mrb[0].mxu0
      %v960 = vadd.f32 0.0, %v959
      %v961 = vpop.f32.mrb[0].mxu0
      %962 = vmatprep.mubr.bf16.mxu0 0
      %963 = vmatmul.mubr.bf16.gmra.mrb[0].mxu0 %v823
      %v964 = vpop.f32.mrb[0].mxu0
      %v965 = vadd.f32 0.0, %v964
      %v966 = vpop.f32.mrb[0].mxu0
      %v967 = vpop.f32.mrb[0].mxu0
      %v968 = vadd.f32 0.0, %v967
      %v969 = vpop.f32.mrb[0].mxu0
      %970 = vmatprep.mubr.bf16.mxu0 0
      %971 = vmatmul.mubr.bf16.gmra.mrb[0].mxu0 %v826
      %v972 = vpop.f32.mrb[0].mxu0
      %v973 = vadd.f32 0.0, %v972
      %v974 = vpop.f32.mrb[0].mxu0
      %v975 = vpop.f32.mrb[0].mxu0
      %v976 = vadd.f32 0.0, %v975
      %v977 = vpop.f32.mrb[0].mxu0
      %978 = vmatprep.mubr.bf16.mxu0 0
      %979 = vmatmul.mubr.bf16.gmra.mrb[0].mxu0 %v829
      %v980 = vpop.f32.mrb[0].mxu0
      %v981 = vadd.f32 0.0, %v980
      %v982 = vpop.f32.mrb[0].mxu0
      %v983 = vpop.f32.mrb[0].mxu0
      %v984 = vadd.f32 0.0, %v983
      %v985 = vpop.f32.mrb[0].mxu0
      %986 = vmatprep.mubr.bf16.mxu0 0
      %987 = vmatmul.mubr.bf16.gmra.mrb[0].mxu0 %v832
      %v988 = vpop.f32.mrb[0].mxu0
      %v989 = vadd.f32 0.0, %v988
      %v990 = vpop.f32.mrb[0].mxu0
      %v991 = vpop.f32.mrb[0].mxu0
      %v992 = vadd.f32 0.0, %v991
      %v993 = vpop.f32.mrb[0].mxu0
      %994 = vdwg.mxu0
      %v995 = vld [vmem:[%s2] sm:$0x1]
      %v997 = vlaneseq
      %v998 = vshrl.u32 %v997, 7
      %v999 = vsub.s32 0, %v998
      %v1000 = vrot.slane %v995, %v999
      %v1002 = vmul.f32 %v869, %v1000
      %v1003 = vmul.f32 %v872, %v1000
      %v1004 = vmul.f32 %v877, %v1000
      %v1005 = vmul.f32 %v880, %v1000
      %v1006 = vmul.f32 %v885, %v1000
      %v1007 = vmul.f32 %v888, %v1000
      %v1008 = vmul.f32 %v893, %v1000
      %v1009 = vmul.f32 %v896, %v1000
      %v1010 = vmul.f32 %v901, %v1000
      %v1011 = vmul.f32 %v904, %v1000
      %v1012 = vmul.f32 %v909, %v1000
      %v1013 = vmul.f32 %v912, %v1000
      %v1014 = vmul.f32 %v917, %v1000
      %v1015 = vmul.f32 %v920, %v1000
      %v1016 = vmul.f32 %v925, %v1000
      %v1017 = vmul.f32 %v928, %v1000
      %v1018 = vmul.f32 %v933, %v1000
      %v1019 = vmul.f32 %v936, %v1000
      %v1020 = vmul.f32 %v941, %v1000
      %v1021 = vmul.f32 %v944, %v1000
      %v1022 = vmul.f32 %v949, %v1000
      %v1023 = vmul.f32 %v952, %v1000
      %v1024 = vmul.f32 %v957, %v1000
      %v1025 = vmul.f32 %v960, %v1000
      %v1026 = vmul.f32 %v965, %v1000
      %v1027 = vmul.f32 %v968, %v1000
      %v1028 = vmul.f32 %v973, %v1000
      %v1029 = vmul.f32 %v976, %v1000
      %v1030 = vmul.f32 %v981, %v1000
      %v1031 = vmul.f32 %v984, %v1000
      %v1032 = vmul.f32 %v989, %v1000
      %v1033 = vmul.f32 %v992, %v1000
      %v1034 = vld [vmem:[%s3] sm:$0x1]
      %v1036 = vlaneseq
      %v1037 = vshrl.u32 %v1036, 7
      %v1038 = vsub.s32 0, %v1037
      %v1039 = vrot.slane %v1034, %v1038
      %v1041 = vadd.f32 %v1002, %v1039
      %v1042 = vadd.f32 %v1003, %v1039
      %v1043 = vadd.f32 %v1004, %v1039
      %v1044 = vadd.f32 %v1005, %v1039
      %v1045 = vadd.f32 %v1006, %v1039
      %v1046 = vadd.f32 %v1007, %v1039
      %v1047 = vadd.f32 %v1008, %v1039
      %v1048 = vadd.f32 %v1009, %v1039
      %v1049 = vadd.f32 %v1010, %v1039
      %v1050 = vadd.f32 %v1011, %v1039
      %v1051 = vadd.f32 %v1012, %v1039
      %v1052 = vadd.f32 %v1013, %v1039
      %v1053 = vadd.f32 %v1014, %v1039
      %v1054 = vadd.f32 %v1015, %v1039
      %v1055 = vadd.f32 %v1016, %v1039
      %v1056 = vadd.f32 %v1017, %v1039
      %v1057 = vadd.f32 %v1018, %v1039
      %v1058 = vadd.f32 %v1019, %v1039
      %v1059 = vadd.f32 %v1020, %v1039
      %v1060 = vadd.f32 %v1021, %v1039
      %v1061 = vadd.f32 %v1022, %v1039
      %v1062 = vadd.f32 %v1023, %v1039
      %v1063 = vadd.f32 %v1024, %v1039
      %v1064 = vadd.f32 %v1025, %v1039
      %v1065 = vadd.f32 %v1026, %v1039
      %v1066 = vadd.f32 %v1027, %v1039
      %v1067 = vadd.f32 %v1028, %v1039
      %v1068 = vadd.f32 %v1029, %v1039
      %v1069 = vadd.f32 %v1030, %v1039
      %v1070 = vadd.f32 %v1031, %v1039
      %v1071 = vadd.f32 %v1032, %v1039
      %v1072 = vadd.f32 %v1033, %v1039
      %v1073 = vmax.f32 %v1041, 0.0
      %v1074 = vmax.f32 %v1042, 0.0
      %v1075 = vmax.f32 %v1043, 0.0
      %v1076 = vmax.f32 %v1044, 0.0
      %v1077 = vmax.f32 %v1045, 0.0
      %v1078 = vmax.f32 %v1046, 0.0
      %v1079 = vmax.f32 %v1047, 0.0
      %v1080 = vmax.f32 %v1048, 0.0
      %v1081 = vmax.f32 %v1049, 0.0
      %v1082 = vmax.f32 %v1050, 0.0
      %v1083 = vmax.f32 %v1051, 0.0
      %v1084 = vmax.f32 %v1052, 0.0
      %v1085 = vmax.f32 %v1053, 0.0
      %v1086 = vmax.f32 %v1054, 0.0
      %v1087 = vmax.f32 %v1055, 0.0
      %v1088 = vmax.f32 %v1056, 0.0
      %v1089 = vmax.f32 %v1057, 0.0
      %v1090 = vmax.f32 %v1058, 0.0
      %v1091 = vmax.f32 %v1059, 0.0
      %v1092 = vmax.f32 %v1060, 0.0
      %v1093 = vmax.f32 %v1061, 0.0
      %v1094 = vmax.f32 %v1062, 0.0
      %v1095 = vmax.f32 %v1063, 0.0
      %v1096 = vmax.f32 %v1064, 0.0
      %v1097 = vmax.f32 %v1065, 0.0
      %v1098 = vmax.f32 %v1066, 0.0
      %v1099 = vmax.f32 %v1067, 0.0
      %v1100 = vmax.f32 %v1068, 0.0
      %v1101 = vmax.f32 %v1069, 0.0
      %v1102 = vmax.f32 %v1070, 0.0
      %v1103 = vmax.f32 %v1071, 0.0
      %v1104 = vmax.f32 %v1072, 0.0
      %v1105 = vpack.c.bf16 %v1074, %v1073
      %v1106 = vpack.c.bf16 %v1076, %v1075
      %v1107 = vpack.c.bf16 %v1078, %v1077
      %v1108 = vpack.c.bf16 %v1080, %v1079
      %v1109 = vpack.c.bf16 %v1082, %v1081
      %v1110 = vpack.c.bf16 %v1084, %v1083
      %v1111 = vpack.c.bf16 %v1086, %v1085
      %v1112 = vpack.c.bf16 %v1088, %v1087
      %v1113 = vpack.c.bf16 %v1090, %v1089
      %v1114 = vpack.c.bf16 %v1092, %v1091
      %v1115 = vpack.c.bf16 %v1094, %v1093
      %v1116 = vpack.c.bf16 %v1096, %v1095
      %v1117 = vpack.c.bf16 %v1098, %v1097
      %v1118 = vpack.c.bf16 %v1100, %v1099
      %v1119 = vpack.c.bf16 %v1102, %v1101
      %v1120 = vpack.c.bf16 %v1104, %v1103
      %v1121 = vld [vmem:[%s4] sm:$0xff]
      %v1122 = vld [vmem:[%s4 + $0x8] sm:$0xff]
      %v1123 = vld [vmem:[%s4 + $0x10] sm:$0xff]
      %v1124 = vld [vmem:[%s4 + $0x18] sm:$0xff]
      %v1125 = vld [vmem:[%s4 + $0x20] sm:$0xff]
      %v1126 = vld [vmem:[%s4 + $0x28] sm:$0xff]
      %v1127 = vld [vmem:[%s4 + $0x30] sm:$0xff]
      %v1128 = vld [vmem:[%s4 + $0x38] sm:$0xff]
      %v1129 = vld [vmem:[%s4 + $0x40] sm:$0xff]
      %v1130 = vld [vmem:[%s4 + $0x48] sm:$0xff]
      %v1131 = vld [vmem:[%s4 + $0x50] sm:$0xff]
      %v1132 = vld [vmem:[%s4 + $0x58] sm:$0xff]
      %v1133 = vld [vmem:[%s4 + $0x60] sm:$0xff]
      %v1134 = vld [vmem:[%s4 + $0x68] sm:$0xff]
      %v1135 = vld [vmem:[%s4 + $0x70] sm:$0xff]
      %v1136 = vld [vmem:[%s4 + $0x78] sm:$0xff]
      %v1137 = vld [vmem:[%s4 + $0x80] sm:$0xff]
      %v1138 = vld [vmem:[%s4 + $0x88] sm:$0xff]
      %v1139 = vld [vmem:[%s4 + $0x90] sm:$0xff]
      %v1140 = vld [vmem:[%s4 + $0x98] sm:$0xff]
      %v1141 = vld [vmem:[%s4 + $0xa0] sm:$0xff]
      %v1142 = vld [vmem:[%s4 + $0xa8] sm:$0xff]
      %v1143 = vld [vmem:[%s4 + $0xb0] sm:$0xff]
      %v1144 = vld [vmem:[%s4 + $0xb8] sm:$0xff]
      %v1145 = vld [vmem:[%s4 + $0xc0] sm:$0xff]
      %v1146 = vld [vmem:[%s4 + $0xc8] sm:$0xff]
      %v1147 = vld [vmem:[%s4 + $0xd0] sm:$0xff]
      %v1148 = vld [vmem:[%s4 + $0xd8] sm:$0xff]
      %v1149 = vld [vmem:[%s4 + $0xe0] sm:$0xff]
      %v1150 = vld [vmem:[%s4 + $0xe8] sm:$0xff]
      %v1151 = vld [vmem:[%s4 + $0xf0] sm:$0xff]
      %v1152 = vld [vmem:[%s4 + $0xf8] sm:$0xff]
      %v1185 = vunpack.c.l.b16 %v1121
      %v1186 = vunpack.c.h.b16 %v1121
      %v1187 = vunpack.c.l.b16 %v1122
      %v1188 = vunpack.c.h.b16 %v1122
      %v1189 = vunpack.c.l.b16 %v1123
      %v1190 = vunpack.c.h.b16 %v1123
      %v1191 = vunpack.c.l.b16 %v1124
      %v1192 = vunpack.c.h.b16 %v1124
      %v1193 = vunpack.c.l.b16 %v1125
      %v1194 = vunpack.c.h.b16 %v1125
      %v1195 = vunpack.c.l.b16 %v1126
      %v1196 = vunpack.c.h.b16 %v1126
      %v1197 = vunpack.c.l.b16 %v1127
      %v1198 = vunpack.c.h.b16 %v1127
      %v1199 = vunpack.c.l.b16 %v1128
      %v1200 = vunpack.c.h.b16 %v1128
      %v1201 = vunpack.c.l.b16 %v1129
      %v1202 = vunpack.c.h.b16 %v1129
      %v1203 = vunpack.c.l.b16 %v1130
      %v1204 = vunpack.c.h.b16 %v1130
      %v1205 = vunpack.c.l.b16 %v1131
      %v1206 = vunpack.c.h.b16 %v1131
      %v1207 = vunpack.c.l.b16 %v1132
      %v1208 = vunpack.c.h.b16 %v1132
      %v1209 = vunpack.c.l.b16 %v1133
      %v1210 = vunpack.c.h.b16 %v1133
      %v1211 = vunpack.c.l.b16 %v1134
      %v1212 = vunpack.c.h.b16 %v1134
      %v1213 = vunpack.c.l.b16 %v1135
      %v1214 = vunpack.c.h.b16 %v1135
      %v1215 = vunpack.c.l.b16 %v1136
      %v1216 = vunpack.c.h.b16 %v1136
      %v1217 = vunpack.c.l.b16 %v1137
      %v1218 = vunpack.c.h.b16 %v1137
      %v1219 = vunpack.c.l.b16 %v1138
      %v1220 = vunpack.c.h.b16 %v1138
      %v1221 = vunpack.c.l.b16 %v1139
      %v1222 = vunpack.c.h.b16 %v1139
      %v1223 = vunpack.c.l.b16 %v1140
      %v1224 = vunpack.c.h.b16 %v1140
      %v1225 = vunpack.c.l.b16 %v1141
      %v1226 = vunpack.c.h.b16 %v1141
      %v1227 = vunpack.c.l.b16 %v1142
      %v1228 = vunpack.c.h.b16 %v1142
      %v1229 = vunpack.c.l.b16 %v1143
      %v1230 = vunpack.c.h.b16 %v1143
      %v1231 = vunpack.c.l.b16 %v1144
      %v1232 = vunpack.c.h.b16 %v1144
      %v1233 = vunpack.c.l.b16 %v1145
      %v1234 = vunpack.c.h.b16 %v1145
      %v1235 = vunpack.c.l.b16 %v1146
      %v1236 = vunpack.c.h.b16 %v1146
      %v1237 = vunpack.c.l.b16 %v1147
      %v1238 = vunpack.c.h.b16 %v1147
      %v1239 = vunpack.c.l.b16 %v1148
      %v1240 = vunpack.c.h.b16 %v1148
      %v1241 = vunpack.c.l.b16 %v1149
      %v1242 = vunpack.c.h.b16 %v1149
      %v1243 = vunpack.c.l.b16 %v1150
      %v1244 = vunpack.c.h.b16 %v1150
      %v1245 = vunpack.c.l.b16 %v1151
      %v1246 = vunpack.c.h.b16 %v1151
      %v1247 = vunpack.c.l.b16 %v1152
      %v1248 = vunpack.c.h.b16 %v1152
      %v1249 = vpack.c.b16 %v1187, %v1185
      %v1250 = vpack.c.b16 %v1188, %v1186
      %v1251 = vpack.c.b16 %v1191, %v1189
      %v1252 = vpack.c.b16 %v1192, %v1190
      %v1253 = vpack.c.b16 %v1195, %v1193
      %v1254 = vpack.c.b16 %v1196, %v1194
      %v1255 = vpack.c.b16 %v1199, %v1197
      %v1256 = vpack.c.b16 %v1200, %v1198
      %v1257 = vpack.c.b16 %v1203, %v1201
      %v1258 = vpack.c.b16 %v1204, %v1202
      %v1259 = vpack.c.b16 %v1207, %v1205
      %v1260 = vpack.c.b16 %v1208, %v1206
      %v1261 = vpack.c.b16 %v1211, %v1209
      %v1262 = vpack.c.b16 %v1212, %v1210
      %v1263 = vpack.c.b16 %v1215, %v1213
      %v1264 = vpack.c.b16 %v1216, %v1214
      %v1265 = vpack.c.b16 %v1219, %v1217
      %v1266 = vpack.c.b16 %v1220, %v1218
      %v1267 = vpack.c.b16 %v1223, %v1221
      %v1268 = vpack.c.b16 %v1224, %v1222
      %v1269 = vpack.c.b16 %v1227, %v1225
      %v1270 = vpack.c.b16 %v1228, %v1226
      %v1271 = vpack.c.b16 %v1231, %v1229
      %v1272 = vpack.c.b16 %v1232, %v1230
      %v1273 = vpack.c.b16 %v1235, %v1233
      %v1274 = vpack.c.b16 %v1236, %v1234
      %v1275 = vpack.c.b16 %v1239, %v1237
      %v1276 = vpack.c.b16 %v1240, %v1238
      %v1277 = vpack.c.b16 %v1243, %v1241
      %v1278 = vpack.c.b16 %v1244, %v1242
      %v1279 = vpack.c.b16 %v1247, %v1245
      %v1280 = vpack.c.b16 %v1248, %v1246
      %1313 = vmatprep.subr.bf16.mxu0 0
      %1314 = vmatpush1.bf16.msra.mxu0 %v1105
      %1315 = vmatprep.subr.bf16.mxu0 0
      %1316 = vmatpush1.bf16.msra.mxu0 %v1106
      %1317 = vmatprep.subr.bf16.mxu0 0
      %1318 = vmatpush1.bf16.msra.mxu0 %v1107
      %1319 = vmatprep.subr.bf16.mxu0 0
      %1320 = vmatpush1.bf16.msra.mxu0 %v1108
      %1321 = vmatprep.subr.bf16.mxu0 0
      %1322 = vmatpush1.bf16.msra.mxu0 %v1109
      %1323 = vmatprep.subr.bf16.mxu0 0
      %1324 = vmatpush1.bf16.msra.mxu0 %v1110
      %1325 = vmatprep.subr.bf16.mxu0 0
      %1326 = vmatpush1.bf16.msra.mxu0 %v1111
      %1327 = vmatprep.subr.bf16.mxu0 0
      %1328 = vmatpush1.bf16.msra.mxu0 %v1112
      %1329 = vmatprep.subr.bf16.mxu0 0
      %1330 = vmatpush1.bf16.msra.mxu0 %v1113
      %1331 = vmatprep.subr.bf16.mxu0 0
      %1332 = vmatpush1.bf16.msra.mxu0 %v1114
      %1333 = vmatprep.subr.bf16.mxu0 0
      %1334 = vmatpush1.bf16.msra.mxu0 %v1115
      %1335 = vmatprep.subr.bf16.mxu0 0
      %1336 = vmatpush1.bf16.msra.mxu0 %v1116
      %1337 = vmatprep.subr.bf16.mxu0 0
      %1338 = vmatpush1.bf16.msra.mxu0 %v1117
      %1339 = vmatprep.subr.bf16.mxu0 0
      %1340 = vmatpush1.bf16.msra.mxu0 %v1118
      %1341 = vmatprep.subr.bf16.mxu0 0
      %1342 = vmatpush1.bf16.msra.mxu0 %v1119
      %1343 = vmatprep.subr.bf16.mxu0 0
      %1344 = vmatpush1.bf16.msra.mxu0 %v1120
      %1345 = vmatprep.mubr.bf16.mxu0 %v1250
      %1346 = vmatmul.mubr.bf16.gmra.mrb[0].mxu0 %v1249
      %v1347 = vpop.f32.mrb[0].mxu0
      %v1348 = vadd.f32 0.0, %v1347
      %v1349 = vpop.f32.mrb[0].mxu0
      %v1350 = vpop.f32.mrb[0].mxu0
      %v1351 = vadd.f32 0.0, %v1350
      %v1352 = vpop.f32.mrb[0].mxu0
      %1353 = vmatprep.mubr.bf16.mxu0 %v1252
      %1354 = vmatmul.mubr.bf16.gmra.mrb[0].mxu0 %v1251
      %v1355 = vpop.f32.mrb[0].mxu0
      %v1356 = vadd.f32 0.0, %v1355
      %v1357 = vpop.f32.mrb[0].mxu0
      %v1358 = vpop.f32.mrb[0].mxu0
      %v1359 = vadd.f32 0.0, %v1358
      %v1360 = vpop.f32.mrb[0].mxu0
      %1361 = vmatprep.mubr.bf16.mxu0 %v1254
      %1362 = vmatmul.mubr.bf16.gmra.mrb[0].mxu0 %v1253
      %v1363 = vpop.f32.mrb[0].mxu0
      %v1364 = vadd.f32 0.0, %v1363
      %v1365 = vpop.f32.mrb[0].mxu0
      %v1366 = vpop.f32.mrb[0].mxu0
      %v1367 = vadd.f32 0.0, %v1366
      %v1368 = vpop.f32.mrb[0].mxu0
      %1369 = vmatprep.mubr.bf16.mxu0 %v1256
      %1370 = vmatmul.mubr.bf16.gmra.mrb[0].mxu0 %v1255
      %v1371 = vpop.f32.mrb[0].mxu0
      %v1372 = vadd.f32 0.0, %v1371
      %v1373 = vpop.f32.mrb[0].mxu0
      %v1374 = vpop.f32.mrb[0].mxu0
      %v1375 = vadd.f32 0.0, %v1374
      %v1376 = vpop.f32.mrb[0].mxu0
      %1377 = vmatprep.mubr.bf16.mxu0 %v1258
      %1378 = vmatmul.mubr.bf16.gmra.mrb[0].mxu0 %v1257
      %v1379 = vpop.f32.mrb[0].mxu0
      %v1380 = vadd.f32 0.0, %v1379
      %v1381 = vpop.f32.mrb[0].mxu0
      %v1382 = vpop.f32.mrb[0].mxu0
      %v1383 = vadd.f32 0.0, %v1382
      %v1384 = vpop.f32.mrb[0].mxu0
      %1385 = vmatprep.mubr.bf16.mxu0 %v1260
      %1386 = vmatmul.mubr.bf16.gmra.mrb[0].mxu0 %v1259
      %v1387 = vpop.f32.mrb[0].mxu0
      %v1388 = vadd.f32 0.0, %v1387
      %v1389 = vpop.f32.mrb[0].mxu0
      %v1390 = vpop.f32.mrb[0].mxu0
      %v1391 = vadd.f32 0.0, %v1390
      %v1392 = vpop.f32.mrb[0].mxu0
      %1393 = vmatprep.mubr.bf16.mxu0 %v1262
      %1394 = vmatmul.mubr.bf16.gmra.mrb[0].mxu0 %v1261
      %v1395 = vpop.f32.mrb[0].mxu0
      %v1396 = vadd.f32 0.0, %v1395
      %v1397 = vpop.f32.mrb[0].mxu0
      %v1398 = vpop.f32.mrb[0].mxu0
      %v1399 = vadd.f32 0.0, %v1398
      %v1400 = vpop.f32.mrb[0].mxu0
      %1401 = vmatprep.mubr.bf16.mxu0 %v1264
      %1402 = vmatmul.mubr.bf16.gmra.mrb[0].mxu0 %v1263
      %v1403 = vpop.f32.mrb[0].mxu0
      %v1404 = vadd.f32 0.0, %v1403
      %v1405 = vpop.f32.mrb[0].mxu0
      %v1406 = vpop.f32.mrb[0].mxu0
      %v1407 = vadd.f32 0.0, %v1406
      %v1408 = vpop.f32.mrb[0].mxu0
      %1409 = vmatprep.mubr.bf16.mxu0 %v1266
      %1410 = vmatmul.mubr.bf16.gmra.mrb[0].mxu0 %v1265
      %v1411 = vpop.f32.mrb[0].mxu0
      %v1412 = vadd.f32 0.0, %v1411
      %v1413 = vpop.f32.mrb[0].mxu0
      %v1414 = vpop.f32.mrb[0].mxu0
      %v1415 = vadd.f32 0.0, %v1414
      %v1416 = vpop.f32.mrb[0].mxu0
      %1417 = vmatprep.mubr.bf16.mxu0 %v1268
      %1418 = vmatmul.mubr.bf16.gmra.mrb[0].mxu0 %v1267
      %v1419 = vpop.f32.mrb[0].mxu0
      %v1420 = vadd.f32 0.0, %v1419
      %v1421 = vpop.f32.mrb[0].mxu0
      %v1422 = vpop.f32.mrb[0].mxu0
      %v1423 = vadd.f32 0.0, %v1422
      %v1424 = vpop.f32.mrb[0].mxu0
      %1425 = vmatprep.mubr.bf16.mxu0 %v1270
      %1426 = vmatmul.mubr.bf16.gmra.mrb[0].mxu0 %v1269
      %v1427 = vpop.f32.mrb[0].mxu0
      %v1428 = vadd.f32 0.0, %v1427
      %v1429 = vpop.f32.mrb[0].mxu0
      %v1430 = vpop.f32.mrb[0].mxu0
      %v1431 = vadd.f32 0.0, %v1430
      %v1432 = vpop.f32.mrb[0].mxu0
      %1433 = vmatprep.mubr.bf16.mxu0 %v1272
      %1434 = vmatmul.mubr.bf16.gmra.mrb[0].mxu0 %v1271
      %v1435 = vpop.f32.mrb[0].mxu0
      %v1436 = vadd.f32 0.0, %v1435
      %v1437 = vpop.f32.mrb[0].mxu0
      %v1438 = vpop.f32.mrb[0].mxu0
      %v1439 = vadd.f32 0.0, %v1438
      %v1440 = vpop.f32.mrb[0].mxu0
      %1441 = vmatprep.mubr.bf16.mxu0 %v1274
      %1442 = vmatmul.mubr.bf16.gmra.mrb[0].mxu0 %v1273
      %v1443 = vpop.f32.mrb[0].mxu0
      %v1444 = vadd.f32 0.0, %v1443
      %v1445 = vpop.f32.mrb[0].mxu0
      %v1446 = vpop.f32.mrb[0].mxu0
      %v1447 = vadd.f32 0.0, %v1446
      %v1448 = vpop.f32.mrb[0].mxu0
      %1449 = vmatprep.mubr.bf16.mxu0 %v1276
      %1450 = vmatmul.mubr.bf16.gmra.mrb[0].mxu0 %v1275
      %v1451 = vpop.f32.mrb[0].mxu0
      %v1452 = vadd.f32 0.0, %v1451
      %v1453 = vpop.f32.mrb[0].mxu0
      %v1454 = vpop.f32.mrb[0].mxu0
      %v1455 = vadd.f32 0.0, %v1454
      %v1456 = vpop.f32.mrb[0].mxu0
      %1457 = vmatprep.mubr.bf16.mxu0 %v1278
      %1458 = vmatmul.mubr.bf16.gmra.mrb[0].mxu0 %v1277
      %v1459 = vpop.f32.mrb[0].mxu0
      %v1460 = vadd.f32 0.0, %v1459
      %v1461 = vpop.f32.mrb[0].mxu0
      %v1462 = vpop.f32.mrb[0].mxu0
      %v1463 = vadd.f32 0.0, %v1462
      %v1464 = vpop.f32.mrb[0].mxu0
      %1465 = vmatprep.mubr.bf16.mxu0 %v1280
      %1466 = vmatmul.mubr.bf16.gmra.mrb[0].mxu0 %v1279
      %v1467 = vpop.f32.mrb[0].mxu0
      %v1468 = vadd.f32 0.0, %v1467
      %v1469 = vpop.f32.mrb[0].mxu0
      %v1470 = vpop.f32.mrb[0].mxu0
      %v1471 = vadd.f32 0.0, %v1470
      %v1472 = vpop.f32.mrb[0].mxu0
      %1473 = vdwg.mxu0
      %v1474 = vmax.f32 %v1348, %v1380
      %v1475 = vmax.f32 %v1351, %v1383
      %v1476 = vmax.f32 %v1356, %v1388
      %v1477 = vmax.f32 %v1359, %v1391
      %v1478 = vmax.f32 %v1364, %v1396
      %v1479 = vmax.f32 %v1367, %v1399
      %v1480 = vmax.f32 %v1372, %v1404
      %v1481 = vmax.f32 %v1375, %v1407
      %v1482 = vmax.f32 %v1412, %v1444
      %v1483 = vmax.f32 %v1415, %v1447
      %v1484 = vmax.f32 %v1420, %v1452
      %v1485 = vmax.f32 %v1423, %v1455
      %v1486 = vmax.f32 %v1428, %v1460
      %v1487 = vmax.f32 %v1431, %v1463
      %v1488 = vmax.f32 %v1436, %v1468
      %v1489 = vmax.f32 %v1439, %v1471
      %v1490 = vmax.f32 %v1474, %v1482
      %v1491 = vmax.f32 %v1475, %v1483
      %v1492 = vmax.f32 %v1476, %v1484
      %v1493 = vmax.f32 %v1477, %v1485
      %v1494 = vmax.f32 %v1478, %v1486
      %v1495 = vmax.f32 %v1479, %v1487
      %v1496 = vmax.f32 %v1480, %v1488
      %v1497 = vmax.f32 %v1481, %v1489
      %v1498 = vpack.c.bf16 %v1491, %v1490
      %v1499 = vpack.c.bf16 %v1493, %v1492
      %v1500 = vpack.c.bf16 %v1495, %v1494
      %v1501 = vpack.c.bf16 %v1497, %v1496
      %v1502 = vld [vmem:[%s5] sm:$0xf]
      %v1503 = vld [vmem:[%s5 + $0x4] sm:$0xf]
      %v1504 = vld [vmem:[%s5 + $0x8] sm:$0xf]
      %v1505 = vld [vmem:[%s5 + $0xc] sm:$0xf]
      %v1506 = vld [vmem:[%s5 + $0x10] sm:$0xf]
      %v1507 = vld [vmem:[%s5 + $0x14] sm:$0xf]
      %v1508 = vld [vmem:[%s5 + $0x18] sm:$0xf]
      %v1509 = vld [vmem:[%s5 + $0x1c] sm:$0xf]
      %v1510 = vld [vmem:[%s5 + $0x20] sm:$0xf]
      %v1511 = vld [vmem:[%s5 + $0x24] sm:$0xf]
      %v1512 = vld [vmem:[%s5 + $0x28] sm:$0xf]
      %v1513 = vld [vmem:[%s5 + $0x2c] sm:$0xf]
      %v1514 = vld [vmem:[%s5 + $0x30] sm:$0xf]
      %v1515 = vld [vmem:[%s5 + $0x34] sm:$0xf]
      %v1516 = vld [vmem:[%s5 + $0x38] sm:$0xf]
      %v1517 = vld [vmem:[%s5 + $0x3c] sm:$0xf]
      %v1518 = vld [vmem:[%s5 + $0x40] sm:$0xf]
      %v1519 = vld [vmem:[%s5 + $0x44] sm:$0xf]
      %v1520 = vld [vmem:[%s5 + $0x48] sm:$0xf]
      %v1521 = vld [vmem:[%s5 + $0x4c] sm:$0xf]
      %v1522 = vld [vmem:[%s5 + $0x50] sm:$0xf]
      %v1523 = vld [vmem:[%s5 + $0x54] sm:$0xf]
      %v1524 = vld [vmem:[%s5 + $0x58] sm:$0xf]
      %v1525 = vld [vmem:[%s5 + $0x5c] sm:$0xf]
      %v1526 = vld [vmem:[%s5 + $0x60] sm:$0xf]
      %v1527 = vld [vmem:[%s5 + $0x64] sm:$0xf]
      %v1528 = vld [vmem:[%s5 + $0x68] sm:$0xf]
      %v1529 = vld [vmem:[%s5 + $0x6c] sm:$0xf]
      %v1530 = vld [vmem:[%s5 + $0x70] sm:$0xf]
      %v1531 = vld [vmem:[%s5 + $0x74] sm:$0xf]
      %v1532 = vld [vmem:[%s5 + $0x78] sm:$0xf]
      %v1533 = vld [vmem:[%s5 + $0x7c] sm:$0xf]
      %v1534 = vld [vmem:[%s5 + $0x80] sm:$0xf]
      %v1535 = vld [vmem:[%s5 + $0x84] sm:$0xf]
      %v1536 = vld [vmem:[%s5 + $0x88] sm:$0xf]
      %v1537 = vld [vmem:[%s5 + $0x8c] sm:$0xf]
      %v1538 = vld [vmem:[%s5 + $0x90] sm:$0xf]
      %v1539 = vld [vmem:[%s5 + $0x94] sm:$0xf]
      %v1540 = vld [vmem:[%s5 + $0x98] sm:$0xf]
      %v1541 = vld [vmem:[%s5 + $0x9c] sm:$0xf]
      %v1542 = vld [vmem:[%s5 + $0xa0] sm:$0xf]
      %v1543 = vld [vmem:[%s5 + $0xa4] sm:$0xf]
      %v1544 = vld [vmem:[%s5 + $0xa8] sm:$0xf]
      %v1545 = vld [vmem:[%s5 + $0xac] sm:$0xf]
      %v1546 = vld [vmem:[%s5 + $0xb0] sm:$0xf]
      %v1547 = vld [vmem:[%s5 + $0xb4] sm:$0xf]
      %v1548 = vld [vmem:[%s5 + $0xb8] sm:$0xf]
      %v1549 = vld [vmem:[%s5 + $0xbc] sm:$0xf]
      %v1550 = vld [vmem:[%s5 + $0xc0] sm:$0xf]
      %v1551 = vld [vmem:[%s5 + $0xc4] sm:$0xf]
      %v1552 = vld [vmem:[%s5 + $0xc8] sm:$0xf]
      %v1553 = vld [vmem:[%s5 + $0xcc] sm:$0xf]
      %v1554 = vld [vmem:[%s5 + $0xd0] sm:$0xf]
      %v1555 = vld [vmem:[%s5 + $0xd4] sm:$0xf]
      %v1556 = vld [vmem:[%s5 + $0xd8] sm:$0xf]
      %v1557 = vld [vmem:[%s5 + $0xdc] sm:$0xf]
      %v1558 = vld [vmem:[%s5 + $0xe0] sm:$0xf]
      %v1559 = vld [vmem:[%s5 + $0xe4] sm:$0xf]
      %v1560 = vld [vmem:[%s5 + $0xe8] sm:$0xf]
      %v1561 = vld [vmem:[%s5 + $0xec] sm:$0xf]
      %v1562 = vld [vmem:[%s5 + $0xf0] sm:$0xf]
      %v1563 = vld [vmem:[%s5 + $0xf4] sm:$0xf]
      %v1564 = vld [vmem:[%s5 + $0xf8] sm:$0xf]
      %v1565 = vld [vmem:[%s5 + $0xfc] sm:$0xf]
      %v1566 = vld [vmem:[%s5 + $0x100] sm:$0xf]
      %v1567 = vld [vmem:[%s5 + $0x104] sm:$0xf]
      %v1568 = vld [vmem:[%s5 + $0x108] sm:$0xf]
      %v1569 = vld [vmem:[%s5 + $0x10c] sm:$0xf]
      %v1570 = vld [vmem:[%s5 + $0x110] sm:$0xf]
      %v1571 = vld [vmem:[%s5 + $0x114] sm:$0xf]
      %v1572 = vld [vmem:[%s5 + $0x118] sm:$0xf]
      %v1573 = vld [vmem:[%s5 + $0x11c] sm:$0xf]
      %v1646 = vunpack.c.l.b16 %v1502
      %v1647 = vunpack.c.l.b16 %v1503
      %v1648 = vunpack.c.l.b16 %v1504
      %v1649 = vunpack.c.l.b16 %v1505
      %v1650 = vunpack.c.l.b16 %v1506
      %v1651 = vunpack.c.l.b16 %v1507
      %v1652 = vunpack.c.l.b16 %v1508
      %v1653 = vunpack.c.l.b16 %v1509
      %v1654 = vunpack.c.l.b16 %v1510
      %v1655 = vunpack.c.l.b16 %v1511
      %v1656 = vunpack.c.l.b16 %v1512
      %v1657 = vunpack.c.l.b16 %v1513
      %v1658 = vunpack.c.l.b16 %v1514
      %v1659 = vunpack.c.l.b16 %v1515
      %v1660 = vunpack.c.l.b16 %v1516
      %v1661 = vunpack.c.l.b16 %v1517
      %v1662 = vunpack.c.l.b16 %v1518
      %v1663 = vunpack.c.l.b16 %v1519
      %v1664 = vunpack.c.l.b16 %v1520
      %v1665 = vunpack.c.l.b16 %v1521
      %v1666 = vunpack.c.l.b16 %v1522
      %v1667 = vunpack.c.l.b16 %v1523
      %v1668 = vunpack.c.l.b16 %v1524
      %v1669 = vunpack.c.l.b16 %v1525
      %v1670 = vunpack.c.l.b16 %v1526
      %v1671 = vunpack.c.l.b16 %v1527
      %v1672 = vunpack.c.l.b16 %v1528
      %v1673 = vunpack.c.l.b16 %v1529
      %v1674 = vunpack.c.l.b16 %v1530
      %v1675 = vunpack.c.l.b16 %v1531
      %v1676 = vunpack.c.l.b16 %v1532
      %v1677 = vunpack.c.l.b16 %v1533
      %v1678 = vunpack.c.l.b16 %v1534
      %v1679 = vunpack.c.l.b16 %v1535
      %v1680 = vunpack.c.l.b16 %v1536
      %v1681 = vunpack.c.l.b16 %v1537
      %v1682 = vunpack.c.l.b16 %v1538
      %v1683 = vunpack.c.l.b16 %v1539
      %v1684 = vunpack.c.l.b16 %v1540
      %v1685 = vunpack.c.l.b16 %v1541
      %v1686 = vunpack.c.l.b16 %v1542
      %v1687 = vunpack.c.l.b16 %v1543
      %v1688 = vunpack.c.l.b16 %v1544
      %v1689 = vunpack.c.l.b16 %v1545
      %v1690 = vunpack.c.l.b16 %v1546
      %v1691 = vunpack.c.l.b16 %v1547
      %v1692 = vunpack.c.l.b16 %v1548
      %v1693 = vunpack.c.l.b16 %v1549
      %v1694 = vunpack.c.l.b16 %v1550
      %v1695 = vunpack.c.l.b16 %v1551
      %v1696 = vunpack.c.l.b16 %v1552
      %v1697 = vunpack.c.l.b16 %v1553
      %v1698 = vunpack.c.l.b16 %v1554
      %v1699 = vunpack.c.l.b16 %v1555
      %v1700 = vunpack.c.l.b16 %v1556
      %v1701 = vunpack.c.l.b16 %v1557
      %v1702 = vunpack.c.l.b16 %v1558
      %v1703 = vunpack.c.l.b16 %v1559
      %v1704 = vunpack.c.l.b16 %v1560
      %v1705 = vunpack.c.l.b16 %v1561
      %v1706 = vunpack.c.l.b16 %v1562
      %v1707 = vunpack.c.l.b16 %v1563
      %v1708 = vunpack.c.l.b16 %v1564
      %v1709 = vunpack.c.l.b16 %v1565
      %v1710 = vunpack.c.l.b16 %v1566
      %v1711 = vunpack.c.l.b16 %v1567
      %v1712 = vunpack.c.l.b16 %v1568
      %v1713 = vunpack.c.l.b16 %v1569
      %v1714 = vunpack.c.l.b16 %v1570
      %v1715 = vunpack.c.l.b16 %v1571
      %v1716 = vunpack.c.l.b16 %v1572
      %v1717 = vunpack.c.l.b16 %v1573
      %v1718 = vpack.c.b16 %v1647, %v1646
      %v1719 = vpack.c.b16 %v1649, %v1648
      %v1720 = vpack.c.b16 %v1651, %v1650
      %v1721 = vpack.c.b16 %v1653, %v1652
      %v1722 = vpack.c.b16 %v1655, %v1654
      %v1723 = vpack.c.b16 %v1657, %v1656
      %v1724 = vpack.c.b16 %v1659, %v1658
      %v1725 = vpack.c.b16 %v1661, %v1660
      %v1726 = vpack.c.b16 %v1663, %v1662
      %v1727 = vpack.c.b16 %v1665, %v1664
      %v1728 = vpack.c.b16 %v1667, %v1666
      %v1729 = vpack.c.b16 %v1669, %v1668
      %v1730 = vpack.c.b16 %v1671, %v1670
      %v1731 = vpack.c.b16 %v1673, %v1672
      %v1732 = vpack.c.b16 %v1675, %v1674
      %v1733 = vpack.c.b16 %v1677, %v1676
      %v1734 = vpack.c.b16 %v1679, %v1678
      %v1735 = vpack.c.b16 %v1681, %v1680
      %v1736 = vpack.c.b16 %v1683, %v1682
      %v1737 = vpack.c.b16 %v1685, %v1684
      %v1738 = vpack.c.b16 %v1687, %v1686
      %v1739 = vpack.c.b16 %v1689, %v1688
      %v1740 = vpack.c.b16 %v1691, %v1690
      %v1741 = vpack.c.b16 %v1693, %v1692
      %v1742 = vpack.c.b16 %v1695, %v1694
      %v1743 = vpack.c.b16 %v1697, %v1696
      %v1744 = vpack.c.b16 %v1699, %v1698
      %v1745 = vpack.c.b16 %v1701, %v1700
      %v1746 = vpack.c.b16 %v1703, %v1702
      %v1747 = vpack.c.b16 %v1705, %v1704
      %v1748 = vpack.c.b16 %v1707, %v1706
      %v1749 = vpack.c.b16 %v1709, %v1708
      %v1750 = vpack.c.b16 %v1711, %v1710
      %v1751 = vpack.c.b16 %v1713, %v1712
      %v1752 = vpack.c.b16 %v1715, %v1714
      %v1753 = vpack.c.b16 %v1717, %v1716
      %vm1754 = vcmask 523264
      %v1756 = vsel %vm1754, %v1718, 0
      %v1759 = vsel %vm1754, %v1719, 0
      %v1762 = vsel %vm1754, %v1720, 0
      %v1765 = vsel %vm1754, %v1721, 0
      %v1768 = vsel %vm1754, %v1722, 0
      %v1771 = vsel %vm1754, %v1723, 0
      %v1774 = vsel %vm1754, %v1724, 0
      %v1777 = vsel %vm1754, %v1725, 0
      %v1780 = vsel %vm1754, %v1726, 0
      %v1783 = vsel %vm1754, %v1727, 0
      %v1786 = vsel %vm1754, %v1728, 0
      %v1789 = vsel %vm1754, %v1729, 0
      %v1792 = vsel %vm1754, %v1730, 0
      %v1795 = vsel %vm1754, %v1731, 0
      %v1798 = vsel %vm1754, %v1732, 0
      %v1801 = vsel %vm1754, %v1733, 0
      %v1804 = vsel %vm1754, %v1734, 0
      %v1807 = vsel %vm1754, %v1735, 0
      %v1810 = vsel %vm1754, %v1736, 0
      %v1813 = vsel %vm1754, %v1737, 0
      %v1816 = vsel %vm1754, %v1738, 0
      %v1819 = vsel %vm1754, %v1739, 0
      %v1822 = vsel %vm1754, %v1740, 0
      %v1825 = vsel %vm1754, %v1741, 0
      %v1828 = vsel %vm1754, %v1742, 0
      %v1831 = vsel %vm1754, %v1743, 0
      %v1834 = vsel %vm1754, %v1744, 0
      %v1837 = vsel %vm1754, %v1745, 0
      %v1840 = vsel %vm1754, %v1746, 0
      %v1843 = vsel %vm1754, %v1747, 0
      %v1846 = vsel %vm1754, %v1748, 0
      %v1849 = vsel %vm1754, %v1749, 0
      %v1852 = vsel %vm1754, %v1750, 0
      %v1855 = vsel %vm1754, %v1751, 0
      %v1858 = vsel %vm1754, %v1752, 0
      %v1861 = vsel %vm1754, %v1753, 0
      %1863 = vmatprep.subr.bf16.mxu0 0
      %1864 = vmatpush1.bf16.msra.mxu0 %v1498
      %1865 = vmatprep.subr.bf16.mxu0 0
      %1866 = vmatpush1.bf16.msra.mxu0 %v1499
      %1867 = vmatprep.subr.bf16.mxu0 0
      %1868 = vmatpush1.bf16.msra.mxu0 %v1500
      %1869 = vmatprep.subr.bf16.mxu0 0
      %1870 = vmatpush1.bf16.msra.mxu0 %v1501
      %1871 = vmatprep.subr.bf16.mxu0 0
      %1872 = vmatpush1.bf16.msra.mxu0 0
      %1873 = vmatprep.subr.bf16.mxu0 0
      %1874 = vmatpush1.bf16.msra.mxu0 0
      %1875 = vmatprep.subr.bf16.mxu0 0
      %1876 = vmatpush1.bf16.msra.mxu0 0
      %1877 = vmatprep.subr.bf16.mxu0 0
      %1878 = vmatpush1.bf16.msra.mxu0 0
      %1879 = vmatprep.subr.bf16.mxu0 0
      %1880 = vmatpush1.bf16.msra.mxu0 0
      %1881 = vmatprep.subr.bf16.mxu0 0
      %1882 = vmatpush1.bf16.msra.mxu0 0
      %1883 = vmatprep.subr.bf16.mxu0 0
      %1884 = vmatpush1.bf16.msra.mxu0 0
      %1885 = vmatprep.subr.bf16.mxu0 0
      %1886 = vmatpush1.bf16.msra.mxu0 0
      %1887 = vmatprep.subr.bf16.mxu0 0
      %1888 = vmatpush1.bf16.msra.mxu0 0
      %1889 = vmatprep.subr.bf16.mxu0 0
      %1890 = vmatpush1.bf16.msra.mxu0 0
      %1891 = vmatprep.subr.bf16.mxu0 0
      %1892 = vmatpush1.bf16.msra.mxu0 0
      %1893 = vmatprep.subr.bf16.mxu0 0
      %1894 = vmatpush1.bf16.msra.mxu0 0
      %1895 = vmatprep.mubr.bf16.mxu0 0
      %1896 = vmatmul.mubr.bf16.gmra.mrb[0].mxu0 %v1756
      %v1897 = vpop.f32.mrb[0].mxu0
      %v1898 = vadd.f32 0.0, %v1897
      %v1899 = vpop.f32.mrb[0].mxu0
      %v1900 = vpop.f32.mrb[0].mxu0
      %v1901 = vadd.f32 0.0, %v1900
      %v1902 = vpop.f32.mrb[0].mxu0
      %1903 = vmatprep.mubr.bf16.mxu0 0
      %1904 = vmatmul.mubr.bf16.gmra.mrb[0].mxu0 %v1759
      %v1905 = vpop.f32.mrb[0].mxu0
      %v1906 = vadd.f32 0.0, %v1905
      %v1907 = vpop.f32.mrb[0].mxu0
      %v1908 = vpop.f32.mrb[0].mxu0
      %v1909 = vadd.f32 0.0, %v1908
      %v1910 = vpop.f32.mrb[0].mxu0
      %1911 = vmatprep.mubr.bf16.mxu0 0
      %1912 = vmatmul.mubr.bf16.gmra.mrb[0].mxu0 %v1762
      %v1913 = vpop.f32.mrb[0].mxu0
      %v1914 = vadd.f32 0.0, %v1913
      %v1915 = vpop.f32.mrb[0].mxu0
      %v1916 = vpop.f32.mrb[0].mxu0
      %v1917 = vadd.f32 0.0, %v1916
      %v1918 = vpop.f32.mrb[0].mxu0
      %1919 = vmatprep.mubr.bf16.mxu0 0
      %1920 = vmatmul.mubr.bf16.gmra.mrb[0].mxu0 %v1765
      %v1921 = vpop.f32.mrb[0].mxu0
      %v1922 = vadd.f32 0.0, %v1921
      %v1923 = vpop.f32.mrb[0].mxu0
      %v1924 = vpop.f32.mrb[0].mxu0
      %v1925 = vadd.f32 0.0, %v1924
      %v1926 = vpop.f32.mrb[0].mxu0
      %1927 = vmatprep.mubr.bf16.mxu0 0
      %1928 = vmatmul.mubr.bf16.gmra.mrb[0].mxu0 %v1768
      %v1929 = vpop.f32.mrb[0].mxu0
      %v1930 = vadd.f32 0.0, %v1929
      %v1931 = vpop.f32.mrb[0].mxu0
      %v1932 = vpop.f32.mrb[0].mxu0
      %v1933 = vadd.f32 0.0, %v1932
      %v1934 = vpop.f32.mrb[0].mxu0
      %1935 = vmatprep.mubr.bf16.mxu0 0
      %1936 = vmatmul.mubr.bf16.gmra.mrb[0].mxu0 %v1771
      %v1937 = vpop.f32.mrb[0].mxu0
      %v1938 = vadd.f32 0.0, %v1937
      %v1939 = vpop.f32.mrb[0].mxu0
      %v1940 = vpop.f32.mrb[0].mxu0
      %v1941 = vadd.f32 0.0, %v1940
      %v1942 = vpop.f32.mrb[0].mxu0
      %1943 = vmatprep.mubr.bf16.mxu0 0
      %1944 = vmatmul.mubr.bf16.gmra.mrb[0].mxu0 %v1774
      %v1945 = vpop.f32.mrb[0].mxu0
      %v1946 = vadd.f32 0.0, %v1945
      %v1947 = vpop.f32.mrb[0].mxu0
      %v1948 = vpop.f32.mrb[0].mxu0
      %v1949 = vadd.f32 0.0, %v1948
      %v1950 = vpop.f32.mrb[0].mxu0
      %1951 = vmatprep.mubr.bf16.mxu0 0
      %1952 = vmatmul.mubr.bf16.gmra.mrb[0].mxu0 %v1777
      %v1953 = vpop.f32.mrb[0].mxu0
      %v1954 = vadd.f32 0.0, %v1953
      %v1955 = vpop.f32.mrb[0].mxu0
      %v1956 = vpop.f32.mrb[0].mxu0
      %v1957 = vadd.f32 0.0, %v1956
      %v1958 = vpop.f32.mrb[0].mxu0
      %1959 = vmatprep.mubr.bf16.mxu0 0
      %1960 = vmatmul.mubr.bf16.gmra.mrb[0].mxu0 %v1780
      %v1961 = vpop.f32.mrb[0].mxu0
      %v1962 = vadd.f32 0.0, %v1961
      %v1963 = vpop.f32.mrb[0].mxu0
      %v1964 = vpop.f32.mrb[0].mxu0
      %v1965 = vadd.f32 0.0, %v1964
      %v1966 = vpop.f32.mrb[0].mxu0
      %1967 = vmatprep.mubr.bf16.mxu0 0
      %1968 = vmatmul.mubr.bf16.gmra.mrb[0].mxu0 %v1783
      %v1969 = vpop.f32.mrb[0].mxu0
      %v1970 = vadd.f32 0.0, %v1969
      %v1971 = vpop.f32.mrb[0].mxu0
      %v1972 = vpop.f32.mrb[0].mxu0
      %v1973 = vadd.f32 0.0, %v1972
      %v1974 = vpop.f32.mrb[0].mxu0
      %1975 = vmatprep.mubr.bf16.mxu0 0
      %1976 = vmatmul.mubr.bf16.gmra.mrb[0].mxu0 %v1786
      %v1977 = vpop.f32.mrb[0].mxu0
      %v1978 = vadd.f32 0.0, %v1977
      %v1979 = vpop.f32.mrb[0].mxu0
      %v1980 = vpop.f32.mrb[0].mxu0
      %v1981 = vadd.f32 0.0, %v1980
      %v1982 = vpop.f32.mrb[0].mxu0
      %1983 = vmatprep.mubr.bf16.mxu0 0
      %1984 = vmatmul.mubr.bf16.gmra.mrb[0].mxu0 %v1789
      %v1985 = vpop.f32.mrb[0].mxu0
      %v1986 = vadd.f32 0.0, %v1985
      %v1987 = vpop.f32.mrb[0].mxu0
      %v1988 = vpop.f32.mrb[0].mxu0
      %v1989 = vadd.f32 0.0, %v1988
      %v1990 = vpop.f32.mrb[0].mxu0
      %1991 = vmatprep.mubr.bf16.mxu0 0
      %1992 = vmatmul.mubr.bf16.gmra.mrb[0].mxu0 %v1792
      %v1993 = vpop.f32.mrb[0].mxu0
      %v1994 = vadd.f32 0.0, %v1993
      %v1995 = vpop.f32.mrb[0].mxu0
      %v1996 = vpop.f32.mrb[0].mxu0
      %v1997 = vadd.f32 0.0, %v1996
      %v1998 = vpop.f32.mrb[0].mxu0
      %1999 = vmatprep.mubr.bf16.mxu0 0
      %2000 = vmatmul.mubr.bf16.gmra.mrb[0].mxu0 %v1795
      %v2001 = vpop.f32.mrb[0].mxu0
      %v2002 = vadd.f32 0.0, %v2001
      %v2003 = vpop.f32.mrb[0].mxu0
      %v2004 = vpop.f32.mrb[0].mxu0
      %v2005 = vadd.f32 0.0, %v2004
      %v2006 = vpop.f32.mrb[0].mxu0
      %2007 = vmatprep.mubr.bf16.mxu0 0
      %2008 = vmatmul.mubr.bf16.gmra.mrb[0].mxu0 %v1798
      %v2009 = vpop.f32.mrb[0].mxu0
      %v2010 = vadd.f32 0.0, %v2009
      %v2011 = vpop.f32.mrb[0].mxu0
      %v2012 = vpop.f32.mrb[0].mxu0
      %v2013 = vadd.f32 0.0, %v2012
      %v2014 = vpop.f32.mrb[0].mxu0
      %2015 = vmatprep.mubr.bf16.mxu0 0
      %2016 = vmatmul.mubr.bf16.gmra.mrb[0].mxu0 %v1801
      %v2017 = vpop.f32.mrb[0].mxu0
      %v2018 = vadd.f32 0.0, %v2017
      %v2019 = vpop.f32.mrb[0].mxu0
      %v2020 = vpop.f32.mrb[0].mxu0
      %v2021 = vadd.f32 0.0, %v2020
      %v2022 = vpop.f32.mrb[0].mxu0
      %2023 = vmatprep.mubr.bf16.mxu0 0
      %2024 = vmatmul.mubr.bf16.gmra.mrb[0].mxu0 %v1804
      %v2025 = vpop.f32.mrb[0].mxu0
      %v2026 = vadd.f32 0.0, %v2025
      %v2027 = vpop.f32.mrb[0].mxu0
      %v2028 = vpop.f32.mrb[0].mxu0
      %v2029 = vadd.f32 0.0, %v2028
      %v2030 = vpop.f32.mrb[0].mxu0
      %2031 = vmatprep.mubr.bf16.mxu0 0
      %2032 = vmatmul.mubr.bf16.gmra.mrb[0].mxu0 %v1807
      %v2033 = vpop.f32.mrb[0].mxu0
      %v2034 = vadd.f32 0.0, %v2033
      %v2035 = vpop.f32.mrb[0].mxu0
      %v2036 = vpop.f32.mrb[0].mxu0
      %v2037 = vadd.f32 0.0, %v2036
      %v2038 = vpop.f32.mrb[0].mxu0
      %2039 = vmatprep.mubr.bf16.mxu0 0
      %2040 = vmatmul.mubr.bf16.gmra.mrb[0].mxu0 %v1810
      %v2041 = vpop.f32.mrb[0].mxu0
      %v2042 = vadd.f32 0.0, %v2041
      %v2043 = vpop.f32.mrb[0].mxu0
      %v2044 = vpop.f32.mrb[0].mxu0
      %v2045 = vadd.f32 0.0, %v2044
      %v2046 = vpop.f32.mrb[0].mxu0
      %2047 = vmatprep.mubr.bf16.mxu0 0
      %2048 = vmatmul.mubr.bf16.gmra.mrb[0].mxu0 %v1813
      %v2049 = vpop.f32.mrb[0].mxu0
      %v2050 = vadd.f32 0.0, %v2049
      %v2051 = vpop.f32.mrb[0].mxu0
      %v2052 = vpop.f32.mrb[0].mxu0
      %v2053 = vadd.f32 0.0, %v2052
      %v2054 = vpop.f32.mrb[0].mxu0
      %2055 = vmatprep.mubr.bf16.mxu0 0
      %2056 = vmatmul.mubr.bf16.gmra.mrb[0].mxu0 %v1816
      %v2057 = vpop.f32.mrb[0].mxu0
      %v2058 = vadd.f32 0.0, %v2057
      %v2059 = vpop.f32.mrb[0].mxu0
      %v2060 = vpop.f32.mrb[0].mxu0
      %v2061 = vadd.f32 0.0, %v2060
      %v2062 = vpop.f32.mrb[0].mxu0
      %2063 = vmatprep.mubr.bf16.mxu0 0
      %2064 = vmatmul.mubr.bf16.gmra.mrb[0].mxu0 %v1819
      %v2065 = vpop.f32.mrb[0].mxu0
      %v2066 = vadd.f32 0.0, %v2065
      %v2067 = vpop.f32.mrb[0].mxu0
      %v2068 = vpop.f32.mrb[0].mxu0
      %v2069 = vadd.f32 0.0, %v2068
      %v2070 = vpop.f32.mrb[0].mxu0
      %2071 = vmatprep.mubr.bf16.mxu0 0
      %2072 = vmatmul.mubr.bf16.gmra.mrb[0].mxu0 %v1822
      %v2073 = vpop.f32.mrb[0].mxu0
      %v2074 = vadd.f32 0.0, %v2073
      %v2075 = vpop.f32.mrb[0].mxu0
      %v2076 = vpop.f32.mrb[0].mxu0
      %v2077 = vadd.f32 0.0, %v2076
      %v2078 = vpop.f32.mrb[0].mxu0
      %2079 = vmatprep.mubr.bf16.mxu0 0
      %2080 = vmatmul.mubr.bf16.gmra.mrb[0].mxu0 %v1825
      %v2081 = vpop.f32.mrb[0].mxu0
      %v2082 = vadd.f32 0.0, %v2081
      %v2083 = vpop.f32.mrb[0].mxu0
      %v2084 = vpop.f32.mrb[0].mxu0
      %v2085 = vadd.f32 0.0, %v2084
      %v2086 = vpop.f32.mrb[0].mxu0
      %2087 = vmatprep.mubr.bf16.mxu0 0
      %2088 = vmatmul.mubr.bf16.gmra.mrb[0].mxu0 %v1828
      %v2089 = vpop.f32.mrb[0].mxu0
      %v2090 = vadd.f32 0.0, %v2089
      %v2091 = vpop.f32.mrb[0].mxu0
      %v2092 = vpop.f32.mrb[0].mxu0
      %v2093 = vadd.f32 0.0, %v2092
      %v2094 = vpop.f32.mrb[0].mxu0
      %2095 = vmatprep.mubr.bf16.mxu0 0
      %2096 = vmatmul.mubr.bf16.gmra.mrb[0].mxu0 %v1831
      %v2097 = vpop.f32.mrb[0].mxu0
      %v2098 = vadd.f32 0.0, %v2097
      %v2099 = vpop.f32.mrb[0].mxu0
      %v2100 = vpop.f32.mrb[0].mxu0
      %v2101 = vadd.f32 0.0, %v2100
      %v2102 = vpop.f32.mrb[0].mxu0
      %2103 = vmatprep.mubr.bf16.mxu0 0
      %2104 = vmatmul.mubr.bf16.gmra.mrb[0].mxu0 %v1834
      %v2105 = vpop.f32.mrb[0].mxu0
      %v2106 = vadd.f32 0.0, %v2105
      %v2107 = vpop.f32.mrb[0].mxu0
      %v2108 = vpop.f32.mrb[0].mxu0
      %v2109 = vadd.f32 0.0, %v2108
      %v2110 = vpop.f32.mrb[0].mxu0
      %2111 = vmatprep.mubr.bf16.mxu0 0
      %2112 = vmatmul.mubr.bf16.gmra.mrb[0].mxu0 %v1837
      %v2113 = vpop.f32.mrb[0].mxu0
      %v2114 = vadd.f32 0.0, %v2113
      %v2115 = vpop.f32.mrb[0].mxu0
      %v2116 = vpop.f32.mrb[0].mxu0
      %v2117 = vadd.f32 0.0, %v2116
      %v2118 = vpop.f32.mrb[0].mxu0
      %2119 = vmatprep.mubr.bf16.mxu0 0
      %2120 = vmatmul.mubr.bf16.gmra.mrb[0].mxu0 %v1840
      %v2121 = vpop.f32.mrb[0].mxu0
      %v2122 = vadd.f32 0.0, %v2121
      %v2123 = vpop.f32.mrb[0].mxu0
      %v2124 = vpop.f32.mrb[0].mxu0
      %v2125 = vadd.f32 0.0, %v2124
      %v2126 = vpop.f32.mrb[0].mxu0
      %2127 = vmatprep.mubr.bf16.mxu0 0
      %2128 = vmatmul.mubr.bf16.gmra.mrb[0].mxu0 %v1843
      %v2129 = vpop.f32.mrb[0].mxu0
      %v2130 = vadd.f32 0.0, %v2129
      %v2131 = vpop.f32.mrb[0].mxu0
      %v2132 = vpop.f32.mrb[0].mxu0
      %v2133 = vadd.f32 0.0, %v2132
      %v2134 = vpop.f32.mrb[0].mxu0
      %2135 = vmatprep.mubr.bf16.mxu0 0
      %2136 = vmatmul.mubr.bf16.gmra.mrb[0].mxu0 %v1846
      %v2137 = vpop.f32.mrb[0].mxu0
      %v2138 = vadd.f32 0.0, %v2137
      %v2139 = vpop.f32.mrb[0].mxu0
      %v2140 = vpop.f32.mrb[0].mxu0
      %v2141 = vadd.f32 0.0, %v2140
      %v2142 = vpop.f32.mrb[0].mxu0
      %2143 = vmatprep.mubr.bf16.mxu0 0
      %2144 = vmatmul.mubr.bf16.gmra.mrb[0].mxu0 %v1849
      %v2145 = vpop.f32.mrb[0].mxu0
      %v2146 = vadd.f32 0.0, %v2145
      %v2147 = vpop.f32.mrb[0].mxu0
      %v2148 = vpop.f32.mrb[0].mxu0
      %v2149 = vadd.f32 0.0, %v2148
      %v2150 = vpop.f32.mrb[0].mxu0
      %2151 = vmatprep.mubr.bf16.mxu0 0
      %2152 = vmatmul.mubr.bf16.gmra.mrb[0].mxu0 %v1852
      %v2153 = vpop.f32.mrb[0].mxu0
      %v2154 = vadd.f32 0.0, %v2153
      %v2155 = vpop.f32.mrb[0].mxu0
      %v2156 = vpop.f32.mrb[0].mxu0
      %v2157 = vadd.f32 0.0, %v2156
      %v2158 = vpop.f32.mrb[0].mxu0
      %2159 = vmatprep.mubr.bf16.mxu0 0
      %2160 = vmatmul.mubr.bf16.gmra.mrb[0].mxu0 %v1855
      %v2161 = vpop.f32.mrb[0].mxu0
      %v2162 = vadd.f32 0.0, %v2161
      %v2163 = vpop.f32.mrb[0].mxu0
      %v2164 = vpop.f32.mrb[0].mxu0
      %v2165 = vadd.f32 0.0, %v2164
      %v2166 = vpop.f32.mrb[0].mxu0
      %2167 = vmatprep.mubr.bf16.mxu0 0
      %2168 = vmatmul.mubr.bf16.gmra.mrb[0].mxu0 %v1858
      %v2169 = vpop.f32.mrb[0].mxu0
      %v2170 = vadd.f32 0.0, %v2169
      %v2171 = vpop.f32.mrb[0].mxu0
      %v2172 = vpop.f32.mrb[0].mxu0
      %v2173 = vadd.f32 0.0, %v2172
      %v2174 = vpop.f32.mrb[0].mxu0
      %2175 = vmatprep.mubr.bf16.mxu0 0
      %2176 = vmatmul.mubr.bf16.gmra.mrb[0].mxu0 %v1861
      %v2177 = vpop.f32.mrb[0].mxu0
      %v2178 = vadd.f32 0.0, %v2177
      %v2179 = vpop.f32.mrb[0].mxu0
      %v2180 = vpop.f32.mrb[0].mxu0
      %v2181 = vadd.f32 0.0, %v2180
      %v2182 = vpop.f32.mrb[0].mxu0
      %2183 = vdwg.mxu0
      %v2184 = vpack.c.bf16 %v1901, %v1898
      %v2185 = vpack.c.bf16 %v1909, %v1906
      %v2186 = vpack.c.bf16 %v1917, %v1914
      %v2187 = vpack.c.bf16 %v1925, %v1922
      %v2188 = vpack.c.bf16 %v1933, %v1930
      %v2189 = vpack.c.bf16 %v1941, %v1938
      %v2190 = vpack.c.bf16 %v1949, %v1946
      %v2191 = vpack.c.bf16 %v1957, %v1954
      %v2192 = vpack.c.bf16 %v1965, %v1962
      %v2193 = vpack.c.bf16 %v1973, %v1970
      %v2194 = vpack.c.bf16 %v1981, %v1978
      %v2195 = vpack.c.bf16 %v1989, %v1986
      %v2196 = vpack.c.bf16 %v1997, %v1994
      %v2197 = vpack.c.bf16 %v2005, %v2002
      %v2198 = vpack.c.bf16 %v2013, %v2010
      %v2199 = vpack.c.bf16 %v2021, %v2018
      %v2200 = vpack.c.bf16 %v2029, %v2026
      %v2201 = vpack.c.bf16 %v2037, %v2034
      %v2202 = vpack.c.bf16 %v2045, %v2042
      %v2203 = vpack.c.bf16 %v2053, %v2050
      %v2204 = vpack.c.bf16 %v2061, %v2058
      %v2205 = vpack.c.bf16 %v2069, %v2066
      %v2206 = vpack.c.bf16 %v2077, %v2074
      %v2207 = vpack.c.bf16 %v2085, %v2082
      %v2208 = vpack.c.bf16 %v2093, %v2090
      %v2209 = vpack.c.bf16 %v2101, %v2098
      %v2210 = vpack.c.bf16 %v2109, %v2106
      %v2211 = vpack.c.bf16 %v2117, %v2114
      %v2212 = vpack.c.bf16 %v2125, %v2122
      %v2213 = vpack.c.bf16 %v2133, %v2130
      %v2214 = vpack.c.bf16 %v2141, %v2138
      %v2215 = vpack.c.bf16 %v2149, %v2146
      %v2216 = vpack.c.bf16 %v2157, %v2154
      %v2217 = vpack.c.bf16 %v2165, %v2162
      %v2218 = vpack.c.bf16 %v2173, %v2170
      %v2219 = vpack.c.bf16 %v2181, %v2178
      %v2220 = vld [vmem:[%s6] sm:$0xf]
      %v2221 = vld [vmem:[%s6 + $0x4] sm:$0xf]
      %v2222 = vld [vmem:[%s6 + $0x8] sm:$0xf]
      %v2223 = vld [vmem:[%s6 + $0xc] sm:$0xf]
      %s2224 = scalar_lea.vmem %s6, 16
      %v2225 = vld [vmem:[%s2224] sm:$0xf]
      %v2226 = vld [vmem:[%s2224 + $0x4] sm:$0xf]
      %v2227 = vld [vmem:[%s2224 + $0x8] sm:$0xf]
      %v2228 = vld [vmem:[%s2224 + $0xc] sm:$0xf]
      %v2233 = vunpack.c.l.b16 %v2225
      %v2234 = vunpack.c.l.b16 %v2226
      %v2235 = vunpack.c.l.b16 %v2227
      %v2236 = vunpack.c.l.b16 %v2228
      %v2237 = vpack.c.b16 %v2234, %v2233
      %v2238 = vpack.c.b16 %v2236, %v2235
      %v2242 = vsel %vm785, %v2188, 0
      %v2245 = vsel %vm785, %v2189, 0
      %v2248 = vsel %vm785, %v2190, 0
      %v2251 = vsel %vm785, %v2191, 0
      %2253 = vmatprep.subr.bf16.mxu0 0
      %2254 = vmatpush1.bf16.msra.mxu0 %v2237
      %2255 = vmatprep.subr.bf16.mxu0 0
      %2256 = vmatpush1.bf16.msra.mxu0 %v2238
      %2257 = vmatprep.subr.bf16.mxu0 0
      %2258 = vmatpush1.bf16.msra.mxu0 0
      %2259 = vmatprep.subr.bf16.mxu0 0
      %2260 = vmatpush1.bf16.msra.mxu0 0
      %2261 = vmatprep.subr.bf16.mxu0 0
      %2262 = vmatpush1.bf16.msra.mxu0 0
      %2263 = vmatprep.subr.bf16.mxu0 0
      %2264 = vmatpush1.bf16.msra.mxu0 0
      %2265 = vmatprep.subr.bf16.mxu0 0
      %2266 = vmatpush1.bf16.msra.mxu0 0
      %2267 = vmatprep.subr.bf16.mxu0 0
      %2268 = vmatpush1.bf16.msra.mxu0 0
      %2269 = vmatprep.subr.bf16.mxu0 0
      %2270 = vmatpush1.bf16.msra.mxu0 0
      %2271 = vmatprep.subr.bf16.mxu0 0
      %2272 = vmatpush1.bf16.msra.mxu0 0
      %2273 = vmatprep.subr.bf16.mxu0 0
      %2274 = vmatpush1.bf16.msra.mxu0 0
      %2275 = vmatprep.subr.bf16.mxu0 0
      %2276 = vmatpush1.bf16.msra.mxu0 0
      %2277 = vmatprep.subr.bf16.mxu0 0
      %2278 = vmatpush1.bf16.msra.mxu0 0
      %2279 = vmatprep.subr.bf16.mxu0 0
      %2280 = vmatpush1.bf16.msra.mxu0 0
      %2281 = vmatprep.subr.bf16.mxu0 0
      %2282 = vmatpush1.bf16.msra.mxu0 0
      %2283 = vmatprep.subr.bf16.mxu0 0
      %2284 = vmatpush1.bf16.msra.mxu0 0
      %2285 = vmatprep.mubr.bf16.mxu0 0
      %2286 = vmatmul.mubr.bf16.gmra.mrb[0].mxu0 %v2242
      %v2287 = vpop.f32.mrb[0].mxu0
      %v2288 = vadd.f32 0.0, %v2287
      %v2289 = vpop.f32.mrb[0].mxu0
      %v2290 = vpop.f32.mrb[0].mxu0
      %v2291 = vadd.f32 0.0, %v2290
      %v2292 = vpop.f32.mrb[0].mxu0
      %2293 = vmatprep.mubr.bf16.mxu0 0
      %2294 = vmatmul.mubr.bf16.gmra.mrb[0].mxu0 %v2245
      %v2295 = vpop.f32.mrb[0].mxu0
      %v2296 = vadd.f32 0.0, %v2295
      %v2297 = vpop.f32.mrb[0].mxu0
      %v2298 = vpop.f32.mrb[0].mxu0
      %v2299 = vadd.f32 0.0, %v2298
      %v2300 = vpop.f32.mrb[0].mxu0
      %2301 = vmatprep.mubr.bf16.mxu0 0
      %2302 = vmatmul.mubr.bf16.gmra.mrb[0].mxu0 %v2248
      %v2303 = vpop.f32.mrb[0].mxu0
      %v2304 = vadd.f32 0.0, %v2303
      %v2305 = vpop.f32.mrb[0].mxu0
      %v2306 = vpop.f32.mrb[0].mxu0
      %v2307 = vadd.f32 0.0, %v2306
      %v2308 = vpop.f32.mrb[0].mxu0
      %2309 = vmatprep.mubr.bf16.mxu0 0
      %2310 = vmatmul.mubr.bf16.gmra.mrb[0].mxu0 %v2251
      %v2311 = vpop.f32.mrb[0].mxu0
      %v2312 = vadd.f32 0.0, %v2311
      %v2313 = vpop.f32.mrb[0].mxu0
      %v2314 = vpop.f32.mrb[0].mxu0
      %v2315 = vadd.f32 0.0, %v2314
      %v2316 = vpop.f32.mrb[0].mxu0
      %2317 = vdwg.mxu0
      %v2322 = vunpack.c.l.b16 %v2220
      %v2323 = vunpack.c.l.b16 %v2221
      %v2324 = vunpack.c.l.b16 %v2222
      %v2325 = vunpack.c.l.b16 %v2223
      %v2326 = vpack.c.b16 %v2323, %v2322
      %v2327 = vpack.c.b16 %v2325, %v2324
      %v2331 = vsel %vm785, %v2184, 0
      %v2334 = vsel %vm785, %v2185, 0
      %v2337 = vsel %vm785, %v2186, 0
      %v2340 = vsel %vm785, %v2187, 0
      %2342 = vmatprep.subr.bf16.mxu0 0
      %2343 = vmatpush1.bf16.msra.mxu0 %v2326
      %2344 = vmatprep.subr.bf16.mxu0 0
      %2345 = vmatpush1.bf16.msra.mxu0 %v2327
      %2346 = vmatprep.subr.bf16.mxu0 0
      %2347 = vmatpush1.bf16.msra.mxu0 0
      %2348 = vmatprep.subr.bf16.mxu0 0
      %2349 = vmatpush1.bf16.msra.mxu0 0
      %2350 = vmatprep.subr.bf16.mxu0 0
      %2351 = vmatpush1.bf16.msra.mxu0 0
      %2352 = vmatprep.subr.bf16.mxu0 0
      %2353 = vmatpush1.bf16.msra.mxu0 0
      %2354 = vmatprep.subr.bf16.mxu0 0
      %2355 = vmatpush1.bf16.msra.mxu0 0
      %2356 = vmatprep.subr.bf16.mxu0 0
      %2357 = vmatpush1.bf16.msra.mxu0 0
      %2358 = vmatprep.subr.bf16.mxu0 0
      %2359 = vmatpush1.bf16.msra.mxu0 0
      %2360 = vmatprep.subr.bf16.mxu0 0
      %2361 = vmatpush1.bf16.msra.mxu0 0
      %2362 = vmatprep.subr.bf16.mxu0 0
      %2363 = vmatpush1.bf16.msra.mxu0 0
      %2364 = vmatprep.subr.bf16.mxu0 0
      %2365 = vmatpush1.bf16.msra.mxu0 0
      %2366 = vmatprep.subr.bf16.mxu0 0
      %2367 = vmatpush1.bf16.msra.mxu0 0
      %2368 = vmatprep.subr.bf16.mxu0 0
      %2369 = vmatpush1.bf16.msra.mxu0 0
      %2370 = vmatprep.subr.bf16.mxu0 0
      %2371 = vmatpush1.bf16.msra.mxu0 0
      %2372 = vmatprep.subr.bf16.mxu0 0
      %2373 = vmatpush1.bf16.msra.mxu0 0
      %2374 = vmatprep.mubr.bf16.mxu0 0
      %2375 = vmatmul.mubr.bf16.gmra.mrb[0].mxu0 %v2331
      %v2376 = vpop.f32.mrb[0].mxu0
      %v2377 = vadd.f32 %v2288, %v2376
      %v2378 = vpop.f32.mrb[0].mxu0
      %v2379 = vpop.f32.mrb[0].mxu0
      %v2380 = vadd.f32 %v2291, %v2379
      %v2381 = vpop.f32.mrb[0].mxu0
      %2382 = vmatprep.mubr.bf16.mxu0 0
      %2383 = vmatmul.mubr.bf16.gmra.mrb[0].mxu0 %v2334
      %v2384 = vpop.f32.mrb[0].mxu0
      %v2385 = vadd.f32 %v2296, %v2384
      %v2386 = vpop.f32.mrb[0].mxu0
      %v2387 = vpop.f32.mrb[0].mxu0
      %v2388 = vadd.f32 %v2299, %v2387
      %v2389 = vpop.f32.mrb[0].mxu0
      %2390 = vmatprep.mubr.bf16.mxu0 0
      %2391 = vmatmul.mubr.bf16.gmra.mrb[0].mxu0 %v2337
      %v2392 = vpop.f32.mrb[0].mxu0
      %v2393 = vadd.f32 %v2304, %v2392
      %v2394 = vpop.f32.mrb[0].mxu0
      %v2395 = vpop.f32.mrb[0].mxu0
      %v2396 = vadd.f32 %v2307, %v2395
      %v2397 = vpop.f32.mrb[0].mxu0
      %2398 = vmatprep.mubr.bf16.mxu0 0
      %2399 = vmatmul.mubr.bf16.gmra.mrb[0].mxu0 %v2340
      %v2400 = vpop.f32.mrb[0].mxu0
      %v2401 = vadd.f32 %v2312, %v2400
      %v2402 = vpop.f32.mrb[0].mxu0
      %v2403 = vpop.f32.mrb[0].mxu0
      %v2404 = vadd.f32 %v2315, %v2403
      %v2405 = vpop.f32.mrb[0].mxu0
      %2406 = vdwg.mxu0
      %s2407 = scalar_lea.vmem %s6, 32
      %v2408 = vld [vmem:[%s2407] sm:$0xf]
      %v2409 = vld [vmem:[%s2407 + $0x4] sm:$0xf]
      %v2410 = vld [vmem:[%s2407 + $0x8] sm:$0xf]
      %v2411 = vld [vmem:[%s2407 + $0xc] sm:$0xf]
      %v2416 = vunpack.c.l.b16 %v2408
      %v2417 = vunpack.c.l.b16 %v2409
      %v2418 = vunpack.c.l.b16 %v2410
      %v2419 = vunpack.c.l.b16 %v2411
      %v2420 = vpack.c.b16 %v2417, %v2416
      %v2421 = vpack.c.b16 %v2419, %v2418
      %v2425 = vsel %vm785, %v2192, 0
      %v2428 = vsel %vm785, %v2193, 0
      %v2431 = vsel %vm785, %v2194, 0
      %v2434 = vsel %vm785, %v2195, 0
      %2436 = vmatprep.subr.bf16.mxu0 0
      %2437 = vmatpush1.bf16.msra.mxu0 %v2420
      %2438 = vmatprep.subr.bf16.mxu0 0
      %2439 = vmatpush1.bf16.msra.mxu0 %v2421
      %2440 = vmatprep.subr.bf16.mxu0 0
      %2441 = vmatpush1.bf16.msra.mxu0 0
      %2442 = vmatprep.subr.bf16.mxu0 0
      %2443 = vmatpush1.bf16.msra.mxu0 0
      %2444 = vmatprep.subr.bf16.mxu0 0
      %2445 = vmatpush1.bf16.msra.mxu0 0
      %2446 = vmatprep.subr.bf16.mxu0 0
      %2447 = vmatpush1.bf16.msra.mxu0 0
      %2448 = vmatprep.subr.bf16.mxu0 0
      %2449 = vmatpush1.bf16.msra.mxu0 0
      %2450 = vmatprep.subr.bf16.mxu0 0
      %2451 = vmatpush1.bf16.msra.mxu0 0
      %2452 = vmatprep.subr.bf16.mxu0 0
      %2453 = vmatpush1.bf16.msra.mxu0 0
      %2454 = vmatprep.subr.bf16.mxu0 0
      %2455 = vmatpush1.bf16.msra.mxu0 0
      %2456 = vmatprep.subr.bf16.mxu0 0
      %2457 = vmatpush1.bf16.msra.mxu0 0
      %2458 = vmatprep.subr.bf16.mxu0 0
      %2459 = vmatpush1.bf16.msra.mxu0 0
      %2460 = vmatprep.subr.bf16.mxu0 0
      %2461 = vmatpush1.bf16.msra.mxu0 0
      %2462 = vmatprep.subr.bf16.mxu0 0
      %2463 = vmatpush1.bf16.msra.mxu0 0
      %2464 = vmatprep.subr.bf16.mxu0 0
      %2465 = vmatpush1.bf16.msra.mxu0 0
      %2466 = vmatprep.subr.bf16.mxu0 0
      %2467 = vmatpush1.bf16.msra.mxu0 0
      %2468 = vmatprep.mubr.bf16.mxu0 0
      %2469 = vmatmul.mubr.bf16.gmra.mrb[0].mxu0 %v2425
      %v2470 = vpop.f32.mrb[0].mxu0
      %v2471 = vadd.f32 0.0, %v2470
      %v2472 = vpop.f32.mrb[0].mxu0
      %v2473 = vpop.f32.mrb[0].mxu0
      %v2474 = vadd.f32 0.0, %v2473
      %v2475 = vpop.f32.mrb[0].mxu0
      %2476 = vmatprep.mubr.bf16.mxu0 0
      %2477 = vmatmul.mubr.bf16.gmra.mrb[0].mxu0 %v2428
      %v2478 = vpop.f32.mrb[0].mxu0
      %v2479 = vadd.f32 0.0, %v2478
      %v2480 = vpop.f32.mrb[0].mxu0
      %v2481 = vpop.f32.mrb[0].mxu0
      %v2482 = vadd.f32 0.0, %v2481
      %v2483 = vpop.f32.mrb[0].mxu0
      %2484 = vmatprep.mubr.bf16.mxu0 0
      %2485 = vmatmul.mubr.bf16.gmra.mrb[0].mxu0 %v2431
      %v2486 = vpop.f32.mrb[0].mxu0
      %v2487 = vadd.f32 0.0, %v2486
      %v2488 = vpop.f32.mrb[0].mxu0
      %v2489 = vpop.f32.mrb[0].mxu0
      %v2490 = vadd.f32 0.0, %v2489
      %v2491 = vpop.f32.mrb[0].mxu0
      %2492 = vmatprep.mubr.bf16.mxu0 0
      %2493 = vmatmul.mubr.bf16.gmra.mrb[0].mxu0 %v2434
      %v2494 = vpop.f32.mrb[0].mxu0
      %v2495 = vadd.f32 0.0, %v2494
      %v2496 = vpop.f32.mrb[0].mxu0
      %v2497 = vpop.f32.mrb[0].mxu0
      %v2498 = vadd.f32 0.0, %v2497
      %v2499 = vpop.f32.mrb[0].mxu0
      %2500 = vdwg.mxu0
      %v2501 = vadd.f32 %v2377, %v2471
      %v2502 = vadd.f32 %v2380, %v2474
      %v2503 = vadd.f32 %v2385, %v2479
      %v2504 = vadd.f32 %v2388, %v2482
      %v2505 = vadd.f32 %v2393, %v2487
      %v2506 = vadd.f32 %v2396, %v2490
      %v2507 = vadd.f32 %v2401, %v2495
      %v2508 = vadd.f32 %v2404, %v2498
      %s2509 = scalar_lea.vmem %s6, 48
      %v2510 = vld [vmem:[%s2509] sm:$0xf]
      %v2511 = vld [vmem:[%s2509 + $0x4] sm:$0xf]
      %v2512 = vld [vmem:[%s2509 + $0x8] sm:$0xf]
      %v2513 = vld [vmem:[%s2509 + $0xc] sm:$0xf]
      %v2518 = vunpack.c.l.b16 %v2510
      %v2519 = vunpack.c.l.b16 %v2511
      %v2520 = vunpack.c.l.b16 %v2512
      %v2521 = vunpack.c.l.b16 %v2513
      %v2522 = vpack.c.b16 %v2519, %v2518
      %v2523 = vpack.c.b16 %v2521, %v2520
      %v2527 = vsel %vm785, %v2196, 0
      %v2530 = vsel %vm785, %v2197, 0
      %v2533 = vsel %vm785, %v2198, 0
      %v2536 = vsel %vm785, %v2199, 0
      %2538 = vmatprep.subr.bf16.mxu0 0
      %2539 = vmatpush1.bf16.msra.mxu0 %v2522
      %2540 = vmatprep.subr.bf16.mxu0 0
      %2541 = vmatpush1.bf16.msra.mxu0 %v2523
      %2542 = vmatprep.subr.bf16.mxu0 0
      %2543 = vmatpush1.bf16.msra.mxu0 0
      %2544 = vmatprep.subr.bf16.mxu0 0
      %2545 = vmatpush1.bf16.msra.mxu0 0
      %2546 = vmatprep.subr.bf16.mxu0 0
      %2547 = vmatpush1.bf16.msra.mxu0 0
      %2548 = vmatprep.subr.bf16.mxu0 0
      %2549 = vmatpush1.bf16.msra.mxu0 0
      %2550 = vmatprep.subr.bf16.mxu0 0
      %2551 = vmatpush1.bf16.msra.mxu0 0
      %2552 = vmatprep.subr.bf16.mxu0 0
      %2553 = vmatpush1.bf16.msra.mxu0 0
      %2554 = vmatprep.subr.bf16.mxu0 0
      %2555 = vmatpush1.bf16.msra.mxu0 0
      %2556 = vmatprep.subr.bf16.mxu0 0
      %2557 = vmatpush1.bf16.msra.mxu0 0
      %2558 = vmatprep.subr.bf16.mxu0 0
      %2559 = vmatpush1.bf16.msra.mxu0 0
      %2560 = vmatprep.subr.bf16.mxu0 0
      %2561 = vmatpush1.bf16.msra.mxu0 0
      %2562 = vmatprep.subr.bf16.mxu0 0
      %2563 = vmatpush1.bf16.msra.mxu0 0
      %2564 = vmatprep.subr.bf16.mxu0 0
      %2565 = vmatpush1.bf16.msra.mxu0 0
      %2566 = vmatprep.subr.bf16.mxu0 0
      %2567 = vmatpush1.bf16.msra.mxu0 0
      %2568 = vmatprep.subr.bf16.mxu0 0
      %2569 = vmatpush1.bf16.msra.mxu0 0
      %2570 = vmatprep.mubr.bf16.mxu0 0
      %2571 = vmatmul.mubr.bf16.gmra.mrb[0].mxu0 %v2527
      %v2572 = vpop.f32.mrb[0].mxu0
      %v2573 = vadd.f32 0.0, %v2572
      %v2574 = vpop.f32.mrb[0].mxu0
      %v2575 = vpop.f32.mrb[0].mxu0
      %v2576 = vadd.f32 0.0, %v2575
      %v2577 = vpop.f32.mrb[0].mxu0
      %2578 = vmatprep.mubr.bf16.mxu0 0
      %2579 = vmatmul.mubr.bf16.gmra.mrb[0].mxu0 %v2530
      %v2580 = vpop.f32.mrb[0].mxu0
      %v2581 = vadd.f32 0.0, %v2580
      %v2582 = vpop.f32.mrb[0].mxu0
      %v2583 = vpop.f32.mrb[0].mxu0
      %v2584 = vadd.f32 0.0, %v2583
      %v2585 = vpop.f32.mrb[0].mxu0
      %2586 = vmatprep.mubr.bf16.mxu0 0
      %2587 = vmatmul.mubr.bf16.gmra.mrb[0].mxu0 %v2533
      %v2588 = vpop.f32.mrb[0].mxu0
      %v2589 = vadd.f32 0.0, %v2588
      %v2590 = vpop.f32.mrb[0].mxu0
      %v2591 = vpop.f32.mrb[0].mxu0
      %v2592 = vadd.f32 0.0, %v2591
      %v2593 = vpop.f32.mrb[0].mxu0
      %2594 = vmatprep.mubr.bf16.mxu0 0
      %2595 = vmatmul.mubr.bf16.gmra.mrb[0].mxu0 %v2536
      %v2596 = vpop.f32.mrb[0].mxu0
      %v2597 = vadd.f32 0.0, %v2596
      %v2598 = vpop.f32.mrb[0].mxu0
      %v2599 = vpop.f32.mrb[0].mxu0
      %v2600 = vadd.f32 0.0, %v2599
      %v2601 = vpop.f32.mrb[0].mxu0
      %2602 = vdwg.mxu0
      %v2603 = vadd.f32 %v2501, %v2573
      %v2604 = vadd.f32 %v2502, %v2576
      %v2605 = vadd.f32 %v2503, %v2581
      %v2606 = vadd.f32 %v2504, %v2584
      %v2607 = vadd.f32 %v2505, %v2589
      %v2608 = vadd.f32 %v2506, %v2592
      %v2609 = vadd.f32 %v2507, %v2597
      %v2610 = vadd.f32 %v2508, %v2600
      %s2611 = scalar_lea.vmem %s6, 64
      %v2612 = vld [vmem:[%s2611] sm:$0xf]
      %v2613 = vld [vmem:[%s2611 + $0x4] sm:$0xf]
      %v2614 = vld [vmem:[%s2611 + $0x8] sm:$0xf]
      %v2615 = vld [vmem:[%s2611 + $0xc] sm:$0xf]
      %v2620 = vunpack.c.l.b16 %v2612
      %v2621 = vunpack.c.l.b16 %v2613
      %v2622 = vunpack.c.l.b16 %v2614
      %v2623 = vunpack.c.l.b16 %v2615
      %v2624 = vpack.c.b16 %v2621, %v2620
      %v2625 = vpack.c.b16 %v2623, %v2622
      %v2629 = vsel %vm785, %v2200, 0
      %v2632 = vsel %vm785, %v2201, 0
      %v2635 = vsel %vm785, %v2202, 0
      %v2638 = vsel %vm785, %v2203, 0
      %2640 = vmatprep.subr.bf16.mxu0 0
      %2641 = vmatpush1.bf16.msra.mxu0 %v2624
      %2642 = vmatprep.subr.bf16.mxu0 0
      %2643 = vmatpush1.bf16.msra.mxu0 %v2625
      %2644 = vmatprep.subr.bf16.mxu0 0
      %2645 = vmatpush1.bf16.msra.mxu0 0
      %2646 = vmatprep.subr.bf16.mxu0 0
      %2647 = vmatpush1.bf16.msra.mxu0 0
      %2648 = vmatprep.subr.bf16.mxu0 0
      %2649 = vmatpush1.bf16.msra.mxu0 0
      %2650 = vmatprep.subr.bf16.mxu0 0
      %2651 = vmatpush1.bf16.msra.mxu0 0
      %2652 = vmatprep.subr.bf16.mxu0 0
      %2653 = vmatpush1.bf16.msra.mxu0 0
      %2654 = vmatprep.subr.bf16.mxu0 0
      %2655 = vmatpush1.bf16.msra.mxu0 0
      %2656 = vmatprep.subr.bf16.mxu0 0
      %2657 = vmatpush1.bf16.msra.mxu0 0
      %2658 = vmatprep.subr.bf16.mxu0 0
      %2659 = vmatpush1.bf16.msra.mxu0 0
      %2660 = vmatprep.subr.bf16.mxu0 0
      %2661 = vmatpush1.bf16.msra.mxu0 0
      %2662 = vmatprep.subr.bf16.mxu0 0
      %2663 = vmatpush1.bf16.msra.mxu0 0
      %2664 = vmatprep.subr.bf16.mxu0 0
      %2665 = vmatpush1.bf16.msra.mxu0 0
      %2666 = vmatprep.subr.bf16.mxu0 0
      %2667 = vmatpush1.bf16.msra.mxu0 0
      %2668 = vmatprep.subr.bf16.mxu0 0
      %2669 = vmatpush1.bf16.msra.mxu0 0
      %2670 = vmatprep.subr.bf16.mxu0 0
      %2671 = vmatpush1.bf16.msra.mxu0 0
      %2672 = vmatprep.mubr.bf16.mxu0 0
      %2673 = vmatmul.mubr.bf16.gmra.mrb[0].mxu0 %v2629
      %v2674 = vpop.f32.mrb[0].mxu0
      %v2675 = vadd.f32 0.0, %v2674
      %v2676 = vpop.f32.mrb[0].mxu0
      %v2677 = vpop.f32.mrb[0].mxu0
      %v2678 = vadd.f32 0.0, %v2677
      %v2679 = vpop.f32.mrb[0].mxu0
      %2680 = vmatprep.mubr.bf16.mxu0 0
      %2681 = vmatmul.mubr.bf16.gmra.mrb[0].mxu0 %v2632
      %v2682 = vpop.f32.mrb[0].mxu0
      %v2683 = vadd.f32 0.0, %v2682
      %v2684 = vpop.f32.mrb[0].mxu0
      %v2685 = vpop.f32.mrb[0].mxu0
      %v2686 = vadd.f32 0.0, %v2685
      %v2687 = vpop.f32.mrb[0].mxu0
      %2688 = vmatprep.mubr.bf16.mxu0 0
      %2689 = vmatmul.mubr.bf16.gmra.mrb[0].mxu0 %v2635
      %v2690 = vpop.f32.mrb[0].mxu0
      %v2691 = vadd.f32 0.0, %v2690
      %v2692 = vpop.f32.mrb[0].mxu0
      %v2693 = vpop.f32.mrb[0].mxu0
      %v2694 = vadd.f32 0.0, %v2693
      %v2695 = vpop.f32.mrb[0].mxu0
      %2696 = vmatprep.mubr.bf16.mxu0 0
      %2697 = vmatmul.mubr.bf16.gmra.mrb[0].mxu0 %v2638
      %v2698 = vpop.f32.mrb[0].mxu0
      %v2699 = vadd.f32 0.0, %v2698
      %v2700 = vpop.f32.mrb[0].mxu0
      %v2701 = vpop.f32.mrb[0].mxu0
      %v2702 = vadd.f32 0.0, %v2701
      %v2703 = vpop.f32.mrb[0].mxu0
      %2704 = vdwg.mxu0
      %v2705 = vadd.f32 %v2603, %v2675
      %v2706 = vadd.f32 %v2604, %v2678
      %v2707 = vadd.f32 %v2605, %v2683
      %v2708 = vadd.f32 %v2606, %v2686
      %v2709 = vadd.f32 %v2607, %v2691
      %v2710 = vadd.f32 %v2608, %v2694
      %v2711 = vadd.f32 %v2609, %v2699
      %v2712 = vadd.f32 %v2610, %v2702
      %s2713 = scalar_lea.vmem %s6, 80
      %v2714 = vld [vmem:[%s2713] sm:$0xf]
      %v2715 = vld [vmem:[%s2713 + $0x4] sm:$0xf]
      %v2716 = vld [vmem:[%s2713 + $0x8] sm:$0xf]
      %v2717 = vld [vmem:[%s2713 + $0xc] sm:$0xf]
      %v2722 = vunpack.c.l.b16 %v2714
      %v2723 = vunpack.c.l.b16 %v2715
      %v2724 = vunpack.c.l.b16 %v2716
      %v2725 = vunpack.c.l.b16 %v2717
      %v2726 = vpack.c.b16 %v2723, %v2722
      %v2727 = vpack.c.b16 %v2725, %v2724
      %v2731 = vsel %vm785, %v2204, 0
      %v2734 = vsel %vm785, %v2205, 0
      %v2737 = vsel %vm785, %v2206, 0
      %v2740 = vsel %vm785, %v2207, 0
      %2742 = vmatprep.subr.bf16.mxu0 0
      %2743 = vmatpush1.bf16.msra.mxu0 %v2726
      %2744 = vmatprep.subr.bf16.mxu0 0
      %2745 = vmatpush1.bf16.msra.mxu0 %v2727
      %2746 = vmatprep.subr.bf16.mxu0 0
      %2747 = vmatpush1.bf16.msra.mxu0 0
      %2748 = vmatprep.subr.bf16.mxu0 0
      %2749 = vmatpush1.bf16.msra.mxu0 0
      %2750 = vmatprep.subr.bf16.mxu0 0
      %2751 = vmatpush1.bf16.msra.mxu0 0
      %2752 = vmatprep.subr.bf16.mxu0 0
      %2753 = vmatpush1.bf16.msra.mxu0 0
      %2754 = vmatprep.subr.bf16.mxu0 0
      %2755 = vmatpush1.bf16.msra.mxu0 0
      %2756 = vmatprep.subr.bf16.mxu0 0
      %2757 = vmatpush1.bf16.msra.mxu0 0
      %2758 = vmatprep.subr.bf16.mxu0 0
      %2759 = vmatpush1.bf16.msra.mxu0 0
      %2760 = vmatprep.subr.bf16.mxu0 0
      %2761 = vmatpush1.bf16.msra.mxu0 0
      %2762 = vmatprep.subr.bf16.mxu0 0
      %2763 = vmatpush1.bf16.msra.mxu0 0
      %2764 = vmatprep.subr.bf16.mxu0 0
      %2765 = vmatpush1.bf16.msra.mxu0 0
      %2766 = vmatprep.subr.bf16.mxu0 0
      %2767 = vmatpush1.bf16.msra.mxu0 0
      %2768 = vmatprep.subr.bf16.mxu0 0
      %2769 = vmatpush1.bf16.msra.mxu0 0
      %2770 = vmatprep.subr.bf16.mxu0 0
      %2771 = vmatpush1.bf16.msra.mxu0 0
      %2772 = vmatprep.subr.bf16.mxu0 0
      %2773 = vmatpush1.bf16.msra.mxu0 0
      %2774 = vmatprep.mubr.bf16.mxu0 0
      %2775 = vmatmul.mubr.bf16.gmra.mrb[0].mxu0 %v2731
      %v2776 = vpop.f32.mrb[0].mxu0
      %v2777 = vadd.f32 0.0, %v2776
      %v2778 = vpop.f32.mrb[0].mxu0
      %v2779 = vpop.f32.mrb[0].mxu0
      %v2780 = vadd.f32 0.0, %v2779
      %v2781 = vpop.f32.mrb[0].mxu0
      %2782 = vmatprep.mubr.bf16.mxu0 0
      %2783 = vmatmul.mubr.bf16.gmra.mrb[0].mxu0 %v2734
      %v2784 = vpop.f32.mrb[0].mxu0
      %v2785 = vadd.f32 0.0, %v2784
      %v2786 = vpop.f32.mrb[0].mxu0
      %v2787 = vpop.f32.mrb[0].mxu0
      %v2788 = vadd.f32 0.0, %v2787
      %v2789 = vpop.f32.mrb[0].mxu0
      %2790 = vmatprep.mubr.bf16.mxu0 0
      %2791 = vmatmul.mubr.bf16.gmra.mrb[0].mxu0 %v2737
      %v2792 = vpop.f32.mrb[0].mxu0
      %v2793 = vadd.f32 0.0, %v2792
      %v2794 = vpop.f32.mrb[0].mxu0
      %v2795 = vpop.f32.mrb[0].mxu0
      %v2796 = vadd.f32 0.0, %v2795
      %v2797 = vpop.f32.mrb[0].mxu0
      %2798 = vmatprep.mubr.bf16.mxu0 0
      %2799 = vmatmul.mubr.bf16.gmra.mrb[0].mxu0 %v2740
      %v2800 = vpop.f32.mrb[0].mxu0
      %v2801 = vadd.f32 0.0, %v2800
      %v2802 = vpop.f32.mrb[0].mxu0
      %v2803 = vpop.f32.mrb[0].mxu0
      %v2804 = vadd.f32 0.0, %v2803
      %v2805 = vpop.f32.mrb[0].mxu0
      %2806 = vdwg.mxu0
      %v2807 = vadd.f32 %v2705, %v2777
      %v2808 = vadd.f32 %v2706, %v2780
      %v2809 = vadd.f32 %v2707, %v2785
      %v2810 = vadd.f32 %v2708, %v2788
      %v2811 = vadd.f32 %v2709, %v2793
      %v2812 = vadd.f32 %v2710, %v2796
      %v2813 = vadd.f32 %v2711, %v2801
      %v2814 = vadd.f32 %v2712, %v2804
      %s2815 = scalar_lea.vmem %s6, 96
      %v2816 = vld [vmem:[%s2815] sm:$0xf]
      %v2817 = vld [vmem:[%s2815 + $0x4] sm:$0xf]
      %v2818 = vld [vmem:[%s2815 + $0x8] sm:$0xf]
      %v2819 = vld [vmem:[%s2815 + $0xc] sm:$0xf]
      %v2824 = vunpack.c.l.b16 %v2816
      %v2825 = vunpack.c.l.b16 %v2817
      %v2826 = vunpack.c.l.b16 %v2818
      %v2827 = vunpack.c.l.b16 %v2819
      %v2828 = vpack.c.b16 %v2825, %v2824
      %v2829 = vpack.c.b16 %v2827, %v2826
      %v2833 = vsel %vm785, %v2208, 0
      %v2836 = vsel %vm785, %v2209, 0
      %v2839 = vsel %vm785, %v2210, 0
      %v2842 = vsel %vm785, %v2211, 0
      %2844 = vmatprep.subr.bf16.mxu0 0
      %2845 = vmatpush1.bf16.msra.mxu0 %v2828
      %2846 = vmatprep.subr.bf16.mxu0 0
      %2847 = vmatpush1.bf16.msra.mxu0 %v2829
      %2848 = vmatprep.subr.bf16.mxu0 0
      %2849 = vmatpush1.bf16.msra.mxu0 0
      %2850 = vmatprep.subr.bf16.mxu0 0
      %2851 = vmatpush1.bf16.msra.mxu0 0
      %2852 = vmatprep.subr.bf16.mxu0 0
      %2853 = vmatpush1.bf16.msra.mxu0 0
      %2854 = vmatprep.subr.bf16.mxu0 0
      %2855 = vmatpush1.bf16.msra.mxu0 0
      %2856 = vmatprep.subr.bf16.mxu0 0
      %2857 = vmatpush1.bf16.msra.mxu0 0
      %2858 = vmatprep.subr.bf16.mxu0 0
      %2859 = vmatpush1.bf16.msra.mxu0 0
      %2860 = vmatprep.subr.bf16.mxu0 0
      %2861 = vmatpush1.bf16.msra.mxu0 0
      %2862 = vmatprep.subr.bf16.mxu0 0
      %2863 = vmatpush1.bf16.msra.mxu0 0
      %2864 = vmatprep.subr.bf16.mxu0 0
      %2865 = vmatpush1.bf16.msra.mxu0 0
      %2866 = vmatprep.subr.bf16.mxu0 0
      %2867 = vmatpush1.bf16.msra.mxu0 0
      %2868 = vmatprep.subr.bf16.mxu0 0
      %2869 = vmatpush1.bf16.msra.mxu0 0
      %2870 = vmatprep.subr.bf16.mxu0 0
      %2871 = vmatpush1.bf16.msra.mxu0 0
      %2872 = vmatprep.subr.bf16.mxu0 0
      %2873 = vmatpush1.bf16.msra.mxu0 0
      %2874 = vmatprep.subr.bf16.mxu0 0
      %2875 = vmatpush1.bf16.msra.mxu0 0
      %2876 = vmatprep.mubr.bf16.mxu0 0
      %2877 = vmatmul.mubr.bf16.gmra.mrb[0].mxu0 %v2833
      %v2878 = vpop.f32.mrb[0].mxu0
      %v2879 = vadd.f32 0.0, %v2878
      %v2880 = vpop.f32.mrb[0].mxu0
      %v2881 = vpop.f32.mrb[0].mxu0
      %v2882 = vadd.f32 0.0, %v2881
      %v2883 = vpop.f32.mrb[0].mxu0
      %2884 = vmatprep.mubr.bf16.mxu0 0
      %2885 = vmatmul.mubr.bf16.gmra.mrb[0].mxu0 %v2836
      %v2886 = vpop.f32.mrb[0].mxu0
      %v2887 = vadd.f32 0.0, %v2886
      %v2888 = vpop.f32.mrb[0].mxu0
      %v2889 = vpop.f32.mrb[0].mxu0
      %v2890 = vadd.f32 0.0, %v2889
      %v2891 = vpop.f32.mrb[0].mxu0
      %2892 = vmatprep.mubr.bf16.mxu0 0
      %2893 = vmatmul.mubr.bf16.gmra.mrb[0].mxu0 %v2839
      %v2894 = vpop.f32.mrb[0].mxu0
      %v2895 = vadd.f32 0.0, %v2894
      %v2896 = vpop.f32.mrb[0].mxu0
      %v2897 = vpop.f32.mrb[0].mxu0
      %v2898 = vadd.f32 0.0, %v2897
      %v2899 = vpop.f32.mrb[0].mxu0
      %2900 = vmatprep.mubr.bf16.mxu0 0
      %2901 = vmatmul.mubr.bf16.gmra.mrb[0].mxu0 %v2842
      %v2902 = vpop.f32.mrb[0].mxu0
      %v2903 = vadd.f32 0.0, %v2902
      %v2904 = vpop.f32.mrb[0].mxu0
      %v2905 = vpop.f32.mrb[0].mxu0
      %v2906 = vadd.f32 0.0, %v2905
      %v2907 = vpop.f32.mrb[0].mxu0
      %2908 = vdwg.mxu0
      %v2909 = vadd.f32 %v2807, %v2879
      %v2910 = vadd.f32 %v2808, %v2882
      %v2911 = vadd.f32 %v2809, %v2887
      %v2912 = vadd.f32 %v2810, %v2890
      %v2913 = vadd.f32 %v2811, %v2895
      %v2914 = vadd.f32 %v2812, %v2898
      %v2915 = vadd.f32 %v2813, %v2903
      %v2916 = vadd.f32 %v2814, %v2906
      %s2917 = scalar_lea.vmem %s6, 112
      %v2918 = vld [vmem:[%s2917] sm:$0xf]
      %v2919 = vld [vmem:[%s2917 + $0x4] sm:$0xf]
      %v2920 = vld [vmem:[%s2917 + $0x8] sm:$0xf]
      %v2921 = vld [vmem:[%s2917 + $0xc] sm:$0xf]
      %v2926 = vunpack.c.l.b16 %v2918
      %v2927 = vunpack.c.l.b16 %v2919
      %v2928 = vunpack.c.l.b16 %v2920
      %v2929 = vunpack.c.l.b16 %v2921
      %v2930 = vpack.c.b16 %v2927, %v2926
      %v2931 = vpack.c.b16 %v2929, %v2928
      %v2935 = vsel %vm785, %v2212, 0
      %v2938 = vsel %vm785, %v2213, 0
      %v2941 = vsel %vm785, %v2214, 0
      %v2944 = vsel %vm785, %v2215, 0
      %2946 = vmatprep.subr.bf16.mxu0 0
      %2947 = vmatpush1.bf16.msra.mxu0 %v2930
      %2948 = vmatprep.subr.bf16.mxu0 0
      %2949 = vmatpush1.bf16.msra.mxu0 %v2931
      %2950 = vmatprep.subr.bf16.mxu0 0
      %2951 = vmatpush1.bf16.msra.mxu0 0
      %2952 = vmatprep.subr.bf16.mxu0 0
      %2953 = vmatpush1.bf16.msra.mxu0 0
      %2954 = vmatprep.subr.bf16.mxu0 0
      %2955 = vmatpush1.bf16.msra.mxu0 0
      %2956 = vmatprep.subr.bf16.mxu0 0
      %2957 = vmatpush1.bf16.msra.mxu0 0
      %2958 = vmatprep.subr.bf16.mxu0 0
      %2959 = vmatpush1.bf16.msra.mxu0 0
      %2960 = vmatprep.subr.bf16.mxu0 0
      %2961 = vmatpush1.bf16.msra.mxu0 0
      %2962 = vmatprep.subr.bf16.mxu0 0
      %2963 = vmatpush1.bf16.msra.mxu0 0
      %2964 = vmatprep.subr.bf16.mxu0 0
      %2965 = vmatpush1.bf16.msra.mxu0 0
      %2966 = vmatprep.subr.bf16.mxu0 0
      %2967 = vmatpush1.bf16.msra.mxu0 0
      %2968 = vmatprep.subr.bf16.mxu0 0
      %2969 = vmatpush1.bf16.msra.mxu0 0
      %2970 = vmatprep.subr.bf16.mxu0 0
      %2971 = vmatpush1.bf16.msra.mxu0 0
      %2972 = vmatprep.subr.bf16.mxu0 0
      %2973 = vmatpush1.bf16.msra.mxu0 0
      %2974 = vmatprep.subr.bf16.mxu0 0
      %2975 = vmatpush1.bf16.msra.mxu0 0
      %2976 = vmatprep.subr.bf16.mxu0 0
      %2977 = vmatpush1.bf16.msra.mxu0 0
      %2978 = vmatprep.mubr.bf16.mxu0 0
      %2979 = vmatmul.mubr.bf16.gmra.mrb[0].mxu0 %v2935
      %v2980 = vpop.f32.mrb[0].mxu0
      %v2981 = vadd.f32 0.0, %v2980
      %v2982 = vpop.f32.mrb[0].mxu0
      %v2983 = vpop.f32.mrb[0].mxu0
      %v2984 = vadd.f32 0.0, %v2983
      %v2985 = vpop.f32.mrb[0].mxu0
      %2986 = vmatprep.mubr.bf16.mxu0 0
      %2987 = vmatmul.mubr.bf16.gmra.mrb[0].mxu0 %v2938
      %v2988 = vpop.f32.mrb[0].mxu0
      %v2989 = vadd.f32 0.0, %v2988
      %v2990 = vpop.f32.mrb[0].mxu0
      %v2991 = vpop.f32.mrb[0].mxu0
      %v2992 = vadd.f32 0.0, %v2991
      %v2993 = vpop.f32.mrb[0].mxu0
      %2994 = vmatprep.mubr.bf16.mxu0 0
      %2995 = vmatmul.mubr.bf16.gmra.mrb[0].mxu0 %v2941
      %v2996 = vpop.f32.mrb[0].mxu0
      %v2997 = vadd.f32 0.0, %v2996
      %v2998 = vpop.f32.mrb[0].mxu0
      %v2999 = vpop.f32.mrb[0].mxu0
      %v3000 = vadd.f32 0.0, %v2999
      %v3001 = vpop.f32.mrb[0].mxu0
      %3002 = vmatprep.mubr.bf16.mxu0 0
      %3003 = vmatmul.mubr.bf16.gmra.mrb[0].mxu0 %v2944
      %v3004 = vpop.f32.mrb[0].mxu0
      %v3005 = vadd.f32 0.0, %v3004
      %v3006 = vpop.f32.mrb[0].mxu0
      %v3007 = vpop.f32.mrb[0].mxu0
      %v3008 = vadd.f32 0.0, %v3007
      %v3009 = vpop.f32.mrb[0].mxu0
      %3010 = vdwg.mxu0
      %v3011 = vadd.f32 %v2909, %v2981
      %v3012 = vadd.f32 %v2910, %v2984
      %v3013 = vadd.f32 %v2911, %v2989
      %v3014 = vadd.f32 %v2912, %v2992
      %v3015 = vadd.f32 %v2913, %v2997
      %v3016 = vadd.f32 %v2914, %v3000
      %v3017 = vadd.f32 %v2915, %v3005
      %v3018 = vadd.f32 %v2916, %v3008
      %s3019 = scalar_lea.vmem %s6, 128
      %v3020 = vld [vmem:[%s3019] sm:$0xf]
      %v3021 = vld [vmem:[%s3019 + $0x4] sm:$0xf]
      %v3022 = vld [vmem:[%s3019 + $0x8] sm:$0xf]
      %v3023 = vld [vmem:[%s3019 + $0xc] sm:$0xf]
      %v3028 = vunpack.c.l.b16 %v3020
      %v3029 = vunpack.c.l.b16 %v3021
      %v3030 = vunpack.c.l.b16 %v3022
      %v3031 = vunpack.c.l.b16 %v3023
      %v3032 = vpack.c.b16 %v3029, %v3028
      %v3033 = vpack.c.b16 %v3031, %v3030
      %v3037 = vsel %vm785, %v2216, 0
      %v3040 = vsel %vm785, %v2217, 0
      %v3043 = vsel %vm785, %v2218, 0
      %v3046 = vsel %vm785, %v2219, 0
      %3048 = vmatprep.subr.bf16.mxu0 0
      %3049 = vmatpush1.bf16.msra.mxu0 %v3032
      %3050 = vmatprep.subr.bf16.mxu0 0
      %3051 = vmatpush1.bf16.msra.mxu0 %v3033
      %3052 = vmatprep.subr.bf16.mxu0 0
      %3053 = vmatpush1.bf16.msra.mxu0 0
      %3054 = vmatprep.subr.bf16.mxu0 0
      %3055 = vmatpush1.bf16.msra.mxu0 0
      %3056 = vmatprep.subr.bf16.mxu0 0
      %3057 = vmatpush1.bf16.msra.mxu0 0
      %3058 = vmatprep.subr.bf16.mxu0 0
      %3059 = vmatpush1.bf16.msra.mxu0 0
      %3060 = vmatprep.subr.bf16.mxu0 0
      %3061 = vmatpush1.bf16.msra.mxu0 0
      %3062 = vmatprep.subr.bf16.mxu0 0
      %3063 = vmatpush1.bf16.msra.mxu0 0
      %3064 = vmatprep.subr.bf16.mxu0 0
      %3065 = vmatpush1.bf16.msra.mxu0 0
      %3066 = vmatprep.subr.bf16.mxu0 0
      %3067 = vmatpush1.bf16.msra.mxu0 0
      %3068 = vmatprep.subr.bf16.mxu0 0
      %3069 = vmatpush1.bf16.msra.mxu0 0
      %3070 = vmatprep.subr.bf16.mxu0 0
      %3071 = vmatpush1.bf16.msra.mxu0 0
      %3072 = vmatprep.subr.bf16.mxu0 0
      %3073 = vmatpush1.bf16.msra.mxu0 0
      %3074 = vmatprep.subr.bf16.mxu0 0
      %3075 = vmatpush1.bf16.msra.mxu0 0
      %3076 = vmatprep.subr.bf16.mxu0 0
      %3077 = vmatpush1.bf16.msra.mxu0 0
      %3078 = vmatprep.subr.bf16.mxu0 0
      %3079 = vmatpush1.bf16.msra.mxu0 0
      %3080 = vmatprep.mubr.bf16.mxu0 0
      %3081 = vmatmul.mubr.bf16.gmra.mrb[0].mxu0 %v3037
      %v3082 = vpop.f32.mrb[0].mxu0
      %v3083 = vadd.f32 0.0, %v3082
      %v3084 = vpop.f32.mrb[0].mxu0
      %v3085 = vpop.f32.mrb[0].mxu0
      %v3086 = vadd.f32 0.0, %v3085
      %v3087 = vpop.f32.mrb[0].mxu0
      %3088 = vmatprep.mubr.bf16.mxu0 0
      %3089 = vmatmul.mubr.bf16.gmra.mrb[0].mxu0 %v3040
      %v3090 = vpop.f32.mrb[0].mxu0
      %v3091 = vadd.f32 0.0, %v3090
      %v3092 = vpop.f32.mrb[0].mxu0
      %v3093 = vpop.f32.mrb[0].mxu0
      %v3094 = vadd.f32 0.0, %v3093
      %v3095 = vpop.f32.mrb[0].mxu0
      %3096 = vmatprep.mubr.bf16.mxu0 0
      %3097 = vmatmul.mubr.bf16.gmra.mrb[0].mxu0 %v3043
      %v3098 = vpop.f32.mrb[0].mxu0
      %v3099 = vadd.f32 0.0, %v3098
      %v3100 = vpop.f32.mrb[0].mxu0
      %v3101 = vpop.f32.mrb[0].mxu0
      %v3102 = vadd.f32 0.0, %v3101
      %v3103 = vpop.f32.mrb[0].mxu0
      %3104 = vmatprep.mubr.bf16.mxu0 0
      %3105 = vmatmul.mubr.bf16.gmra.mrb[0].mxu0 %v3046
      %v3106 = vpop.f32.mrb[0].mxu0
      %v3107 = vadd.f32 0.0, %v3106
      %v3108 = vpop.f32.mrb[0].mxu0
      %v3109 = vpop.f32.mrb[0].mxu0
      %v3110 = vadd.f32 0.0, %v3109
      %v3111 = vpop.f32.mrb[0].mxu0
      %3112 = vdwg.mxu0
      %v3113 = vadd.f32 %v3011, %v3083
      %v3114 = vadd.f32 %v3012, %v3086
      %v3115 = vadd.f32 %v3013, %v3091
      %v3116 = vadd.f32 %v3014, %v3094
      %v3117 = vadd.f32 %v3015, %v3099
      %v3118 = vadd.f32 %v3016, %v3102
      %v3119 = vadd.f32 %v3017, %v3107
      %v3120 = vadd.f32 %v3018, %v3110
      %v3121 = vld [vmem:[%s7] sm:$0x1]
      %v3123 = vlaneseq
      %v3124 = vshrl.u32 %v3123, 7
      %v3125 = vsub.s32 0, %v3124
      %v3126 = vrot.slane %v3121, %v3125
      %v3128 = vmul.f32 %v3113, %v3126
      %v3129 = vmul.f32 %v3114, %v3126
      %v3130 = vmul.f32 %v3115, %v3126
      %v3131 = vmul.f32 %v3116, %v3126
      %v3132 = vmul.f32 %v3117, %v3126
      %v3133 = vmul.f32 %v3118, %v3126
      %v3134 = vmul.f32 %v3119, %v3126
      %v3135 = vmul.f32 %v3120, %v3126
      %v3136 = vld [vmem:[%s8] sm:$0x1]
      %v3138 = vlaneseq
      %v3139 = vshrl.u32 %v3138, 7
      %v3140 = vsub.s32 0, %v3139
      %v3141 = vrot.slane %v3136, %v3140
      %v3143 = vadd.f32 %v3128, %v3141
      %v3144 = vadd.f32 %v3129, %v3141
      %v3145 = vadd.f32 %v3130, %v3141
      %v3146 = vadd.f32 %v3131, %v3141
      %v3147 = vadd.f32 %v3132, %v3141
      %v3148 = vadd.f32 %v3133, %v3141
      %v3149 = vadd.f32 %v3134, %v3141
      %v3150 = vadd.f32 %v3135, %v3141
      %v3151 = vmax.f32 %v3143, 0.0
      %v3152 = vmax.f32 %v3144, 0.0
      %v3153 = vmax.f32 %v3145, 0.0
      %v3154 = vmax.f32 %v3146, 0.0
      %v3155 = vmax.f32 %v3147, 0.0
      %v3156 = vmax.f32 %v3148, 0.0
      %v3157 = vmax.f32 %v3149, 0.0
      %v3158 = vmax.f32 %v3150, 0.0
      %v3159 = vpack.c.bf16 %v3152, %v3151
      %v3160 = vpack.c.bf16 %v3154, %v3153
      %v3161 = vpack.c.bf16 %v3156, %v3155
      %v3162 = vpack.c.bf16 %v3158, %v3157
      %v3163 = vld [vmem:[%s9] sm:$0xf]
      %v3164 = vld [vmem:[%s9 + $0x4] sm:$0xf]
      %v3165 = vld [vmem:[%s9 + $0x8] sm:$0xf]
      %v3166 = vld [vmem:[%s9 + $0xc] sm:$0xf]
      %v3167 = vld [vmem:[%s9 + $0x10] sm:$0xf]
      %v3168 = vld [vmem:[%s9 + $0x14] sm:$0xf]
      %v3169 = vld [vmem:[%s9 + $0x18] sm:$0xf]
      %v3170 = vld [vmem:[%s9 + $0x1c] sm:$0xf]
      %v3179 = vunpack.c.l.b16 %v3163
      %v3180 = vunpack.c.l.b16 %v3164
      %v3181 = vunpack.c.l.b16 %v3165
      %v3182 = vunpack.c.l.b16 %v3166
      %v3183 = vunpack.c.l.b16 %v3167
      %v3184 = vunpack.c.l.b16 %v3168
      %v3185 = vunpack.c.l.b16 %v3169
      %v3186 = vunpack.c.l.b16 %v3170
      %v3187 = vpack.c.b16 %v3180, %v3179
      %v3188 = vpack.c.b16 %v3182, %v3181
      %v3189 = vpack.c.b16 %v3184, %v3183
      %v3190 = vpack.c.b16 %v3186, %v3185
      %v3192 = vsel %vm1754, %v3187, 0
      %v3195 = vsel %vm1754, %v3188, 0
      %v3198 = vsel %vm1754, %v3189, 0
      %v3201 = vsel %vm1754, %v3190, 0
      %3203 = vmatprep.subr.bf16.mxu0 0
      %3204 = vmatpush1.bf16.msra.mxu0 %v3159
      %3205 = vmatprep.subr.bf16.mxu0 0
      %3206 = vmatpush1.bf16.msra.mxu0 %v3160
      %3207 = vmatprep.subr.bf16.mxu0 0
      %3208 = vmatpush1.bf16.msra.mxu0 %v3161
      %3209 = vmatprep.subr.bf16.mxu0 0
      %3210 = vmatpush1.bf16.msra.mxu0 %v3162
      %3211 = vmatprep.subr.bf16.mxu0 0
      %3212 = vmatpush1.bf16.msra.mxu0 0
      %3213 = vmatprep.subr.bf16.mxu0 0
      %3214 = vmatpush1.bf16.msra.mxu0 0
      %3215 = vmatprep.subr.bf16.mxu0 0
      %3216 = vmatpush1.bf16.msra.mxu0 0
      %3217 = vmatprep.subr.bf16.mxu0 0
      %3218 = vmatpush1.bf16.msra.mxu0 0
      %3219 = vmatprep.subr.bf16.mxu0 0
      %3220 = vmatpush1.bf16.msra.mxu0 0
      %3221 = vmatprep.subr.bf16.mxu0 0
      %3222 = vmatpush1.bf16.msra.mxu0 0
      %3223 = vmatprep.subr.bf16.mxu0 0
      %3224 = vmatpush1.bf16.msra.mxu0 0
      %3225 = vmatprep.subr.bf16.mxu0 0
      %3226 = vmatpush1.bf16.msra.mxu0 0
      %3227 = vmatprep.subr.bf16.mxu0 0
      %3228 = vmatpush1.bf16.msra.mxu0 0
      %3229 = vmatprep.subr.bf16.mxu0 0
      %3230 = vmatpush1.bf16.msra.mxu0 0
      %3231 = vmatprep.subr.bf16.mxu0 0
      %3232 = vmatpush1.bf16.msra.mxu0 0
      %3233 = vmatprep.subr.bf16.mxu0 0
      %3234 = vmatpush1.bf16.msra.mxu0 0
      %3235 = vmatprep.mubr.bf16.mxu0 0
      %3236 = vmatmul.mubr.bf16.gmra.mrb[0].mxu0 %v3192
      %v3237 = vpop.f32.mrb[0].mxu0
      %v3238 = vadd.f32 0.0, %v3237
      %v3239 = vpop.f32.mrb[0].mxu0
      %v3240 = vpop.f32.mrb[0].mxu0
      %v3241 = vadd.f32 0.0, %v3240
      %v3242 = vpop.f32.mrb[0].mxu0
      %3243 = vmatprep.mubr.bf16.mxu0 0
      %3244 = vmatmul.mubr.bf16.gmra.mrb[0].mxu0 %v3195
      %v3245 = vpop.f32.mrb[0].mxu0
      %v3246 = vadd.f32 0.0, %v3245
      %v3247 = vpop.f32.mrb[0].mxu0
      %v3248 = vpop.f32.mrb[0].mxu0
      %v3249 = vadd.f32 0.0, %v3248
      %v3250 = vpop.f32.mrb[0].mxu0
      %3251 = vmatprep.mubr.bf16.mxu0 0
      %3252 = vmatmul.mubr.bf16.gmra.mrb[0].mxu0 %v3198
      %v3253 = vpop.f32.mrb[0].mxu0
      %v3254 = vadd.f32 0.0, %v3253
      %v3255 = vpop.f32.mrb[0].mxu0
      %v3256 = vpop.f32.mrb[0].mxu0
      %v3257 = vadd.f32 0.0, %v3256
      %v3258 = vpop.f32.mrb[0].mxu0
      %3259 = vmatprep.mubr.bf16.mxu0 0
      %3260 = vmatmul.mubr.bf16.gmra.mrb[0].mxu0 %v3201
      %v3261 = vpop.f32.mrb[0].mxu0
      %v3262 = vadd.f32 0.0, %v3261
      %v3263 = vpop.f32.mrb[0].mxu0
      %v3264 = vpop.f32.mrb[0].mxu0
      %v3265 = vadd.f32 0.0, %v3264
      %v3266 = vpop.f32.mrb[0].mxu0
      %3267 = vdwg.mxu0
      %v3268 = vmax.f32 %v3238, %v3246
      %v3269 = vmax.f32 %v3241, %v3249
      %v3270 = vmax.f32 %v3254, %v3262
      %v3271 = vmax.f32 %v3257, %v3265
      %v3272 = vmax.f32 %v3268, %v3270
      %v3273 = vmax.f32 %v3269, %v3271
      %v3274 = vpack.c.bf16 %v3273, %v3272
      %v3275 = vld [vmem:[%s10] sm:$0xf]
      %v3276 = vld [vmem:[%s10 + $0x4] sm:$0xf]
      %v3277 = vld [vmem:[%s10 + $0x8] sm:$0xf]
      %v3278 = vld [vmem:[%s10 + $0xc] sm:$0xf]
      %v3279 = vld [vmem:[%s10 + $0x10] sm:$0xf]
      %v3280 = vld [vmem:[%s10 + $0x14] sm:$0xf]
      %v3281 = vld [vmem:[%s10 + $0x18] sm:$0xf]
      %v3282 = vld [vmem:[%s10 + $0x1c] sm:$0xf]
      %v3283 = vld [vmem:[%s11] sm:$0x1]
      %v3285 = vlaneseq
      %v3286 = vshrl.u32 %v3285, 7
      %v3287 = vsub.s32 0, %v3286
      %v3288 = vrot.slane %v3283, %v3287
      %v3298 = vunpack.c.l.b16 %v3275
      %v3299 = vunpack.c.l.b16 %v3276
      %v3300 = vunpack.c.l.b16 %v3277
      %v3301 = vunpack.c.l.b16 %v3278
      %v3302 = vunpack.c.l.b16 %v3279
      %v3303 = vunpack.c.l.b16 %v3280
      %v3304 = vunpack.c.l.b16 %v3281
      %v3305 = vunpack.c.l.b16 %v3282
      %v3306 = vpack.c.b16 %v3299, %v3298
      %v3307 = vpack.c.b16 %v3301, %v3300
      %v3308 = vpack.c.b16 %v3303, %v3302
      %v3309 = vpack.c.b16 %v3305, %v3304
      %v3315 = vsel %vm1754, %v3274, 0
      %3317 = vmatprep.subr.bf16.mxu0 0
      %3318 = vmatpush1.bf16.msra.mxu0 %v3306
      %3319 = vmatprep.subr.bf16.mxu0 0
      %3320 = vmatpush1.bf16.msra.mxu0 %v3307
      %3321 = vmatprep.subr.bf16.mxu0 0
      %3322 = vmatpush1.bf16.msra.mxu0 %v3308
      %3323 = vmatprep.subr.bf16.mxu0 0
      %3324 = vmatpush1.bf16.msra.mxu0 %v3309
      %3325 = vmatprep.subr.bf16.mxu0 0
      %3326 = vmatpush1.bf16.msra.mxu0 0
      %3327 = vmatprep.subr.bf16.mxu0 0
      %3328 = vmatpush1.bf16.msra.mxu0 0
      %3329 = vmatprep.subr.bf16.mxu0 0
      %3330 = vmatpush1.bf16.msra.mxu0 0
      %3331 = vmatprep.subr.bf16.mxu0 0
      %3332 = vmatpush1.bf16.msra.mxu0 0
      %3333 = vmatprep.subr.bf16.mxu0 0
      %3334 = vmatpush1.bf16.msra.mxu0 0
      %3335 = vmatprep.subr.bf16.mxu0 0
      %3336 = vmatpush1.bf16.msra.mxu0 0
      %3337 = vmatprep.subr.bf16.mxu0 0
      %3338 = vmatpush1.bf16.msra.mxu0 0
      %3339 = vmatprep.subr.bf16.mxu0 0
      %3340 = vmatpush1.bf16.msra.mxu0 0
      %3341 = vmatprep.subr.bf16.mxu0 0
      %3342 = vmatpush1.bf16.msra.mxu0 0
      %3343 = vmatprep.subr.bf16.mxu0 0
      %3344 = vmatpush1.bf16.msra.mxu0 0
      %3345 = vmatprep.subr.bf16.mxu0 0
      %3346 = vmatpush1.bf16.msra.mxu0 0
      %3347 = vmatprep.subr.bf16.mxu0 0
      %3348 = vmatpush1.bf16.msra.mxu0 0
      %3349 = vmatprep.mubr.bf16.mxu0 0
      %3350 = vmatmul.mubr.bf16.gmra.mrb[0].mxu0 %v3315
      %v3351 = vpop.f32.mrb[0].mxu0
      %v3352 = vadd.f32 %v3288, %v3351
      %v3353 = vpop.f32.mrb[0].mxu0
      %v3354 = vpop.f32.mrb[0].mxu0
      %v3355 = vadd.f32 %v3288, %v3354
      %v3356 = vpop.f32.mrb[0].mxu0
      %3357 = vdwg.mxu0
      %v3358 = vld [vmem:[%s12] sm:$0xf]
      %v3359 = vld [vmem:[%s12 + $0x4] sm:$0xf]
      %v3360 = vld [vmem:[%s12 + $0x8] sm:$0xf]
      %v3361 = vld [vmem:[%s12 + $0xc] sm:$0xf]
      %v3362 = vld [vmem:[%s12 + $0x10] sm:$0xf]
      %v3363 = vld [vmem:[%s12 + $0x14] sm:$0xf]
      %v3364 = vld [vmem:[%s12 + $0x18] sm:$0xf]
      %v3365 = vld [vmem:[%s12 + $0x1c] sm:$0xf]
      %v3366 = vld [vmem:[%s13] sm:$0x1]
      %v3368 = vlaneseq
      %v3369 = vshrl.u32 %v3368, 7
      %v3370 = vsub.s32 0, %v3369
      %v3371 = vrot.slane %v3366, %v3370
      %v3381 = vunpack.c.l.b16 %v3358
      %v3382 = vunpack.c.l.b16 %v3359
      %v3383 = vunpack.c.l.b16 %v3360
      %v3384 = vunpack.c.l.b16 %v3361
      %v3385 = vunpack.c.l.b16 %v3362
      %v3386 = vunpack.c.l.b16 %v3363
      %v3387 = vunpack.c.l.b16 %v3364
      %v3388 = vunpack.c.l.b16 %v3365
      %v3389 = vpack.c.b16 %v3382, %v3381
      %v3390 = vpack.c.b16 %v3384, %v3383
      %v3391 = vpack.c.b16 %v3386, %v3385
      %v3392 = vpack.c.b16 %v3388, %v3387
      %3397 = vmatprep.subr.bf16.mxu0 0
      %3398 = vmatpush1.bf16.msra.mxu0 %v3389
      %3399 = vmatprep.subr.bf16.mxu0 0
      %3400 = vmatpush1.bf16.msra.mxu0 %v3390
      %3401 = vmatprep.subr.bf16.mxu0 0
      %3402 = vmatpush1.bf16.msra.mxu0 %v3391
      %3403 = vmatprep.subr.bf16.mxu0 0
      %3404 = vmatpush1.bf16.msra.mxu0 %v3392
      %3405 = vmatprep.subr.bf16.mxu0 0
      %3406 = vmatpush1.bf16.msra.mxu0 0
      %3407 = vmatprep.subr.bf16.mxu0 0
      %3408 = vmatpush1.bf16.msra.mxu0 0
      %3409 = vmatprep.subr.bf16.mxu0 0
      %3410 = vmatpush1.bf16.msra.mxu0 0
      %3411 = vmatprep.subr.bf16.mxu0 0
      %3412 = vmatpush1.bf16.msra.mxu0 0
      %3413 = vmatprep.subr.bf16.mxu0 0
      %3414 = vmatpush1.bf16.msra.mxu0 0
      %3415 = vmatprep.subr.bf16.mxu0 0
      %3416 = vmatpush1.bf16.msra.mxu0 0
      %3417 = vmatprep.subr.bf16.mxu0 0
      %3418 = vmatpush1.bf16.msra.mxu0 0
      %3419 = vmatprep.subr.bf16.mxu0 0
      %3420 = vmatpush1.bf16.msra.mxu0 0
      %3421 = vmatprep.subr.bf16.mxu0 0
      %3422 = vmatpush1.bf16.msra.mxu0 0
      %3423 = vmatprep.subr.bf16.mxu0 0
      %3424 = vmatpush1.bf16.msra.mxu0 0
      %3425 = vmatprep.subr.bf16.mxu0 0
      %3426 = vmatpush1.bf16.msra.mxu0 0
      %3427 = vmatprep.subr.bf16.mxu0 0
      %3428 = vmatpush1.bf16.msra.mxu0 0
      %3429 = vmatprep.mubr.bf16.mxu0 0
      %3430 = vmatmul.mubr.bf16.gmra.mrb[0].mxu0 %v3315
      %v3431 = vpop.f32.mrb[0].mxu0
      %v3432 = vadd.f32 %v3371, %v3431
      %v3433 = vpop.f32.mrb[0].mxu0
      %v3434 = vpop.f32.mrb[0].mxu0
      %v3435 = vadd.f32 %v3371, %v3434
      %v3436 = vpop.f32.mrb[0].mxu0
      %3437 = vdwg.mxu0
      %v3438 = vld [vmem:[%s14] sm:$0xf]
      %v3439 = vld [vmem:[%s14 + $0x4] sm:$0xf]
      %v3440 = vld [vmem:[%s14 + $0x8] sm:$0xf]
      %v3441 = vld [vmem:[%s14 + $0xc] sm:$0xf]
      %v3442 = vld [vmem:[%s14 + $0x10] sm:$0xf]
      %v3443 = vld [vmem:[%s14 + $0x14] sm:$0xf]
      %v3444 = vld [vmem:[%s14 + $0x18] sm:$0xf]
      %v3445 = vld [vmem:[%s14 + $0x1c] sm:$0xf]
      %v3446 = vld [vmem:[%s15] sm:$0x1]
      %v3448 = vlaneseq
      %v3449 = vshrl.u32 %v3448, 7
      %v3450 = vsub.s32 0, %v3449
      %v3451 = vrot.slane %v3446, %v3450
      %v3461 = vunpack.c.l.b16 %v3438
      %v3462 = vunpack.c.l.b16 %v3439
      %v3463 = vunpack.c.l.b16 %v3440
      %v3464 = vunpack.c.l.b16 %v3441
      %v3465 = vunpack.c.l.b16 %v3442
      %v3466 = vunpack.c.l.b16 %v3443
      %v3467 = vunpack.c.l.b16 %v3444
      %v3468 = vunpack.c.l.b16 %v3445
      %v3469 = vpack.c.b16 %v3462, %v3461
      %v3470 = vpack.c.b16 %v3464, %v3463
      %v3471 = vpack.c.b16 %v3466, %v3465
      %v3472 = vpack.c.b16 %v3468, %v3467
      %3477 = vmatprep.subr.bf16.mxu0 0
      %3478 = vmatpush1.bf16.msra.mxu0 %v3469
      %3479 = vmatprep.subr.bf16.mxu0 0
      %3480 = vmatpush1.bf16.msra.mxu0 %v3470
      %3481 = vmatprep.subr.bf16.mxu0 0
      %3482 = vmatpush1.bf16.msra.mxu0 %v3471
      %3483 = vmatprep.subr.bf16.mxu0 0
      %3484 = vmatpush1.bf16.msra.mxu0 %v3472
      %3485 = vmatprep.subr.bf16.mxu0 0
      %3486 = vmatpush1.bf16.msra.mxu0 0
      %3487 = vmatprep.subr.bf16.mxu0 0
      %3488 = vmatpush1.bf16.msra.mxu0 0
      %3489 = vmatprep.subr.bf16.mxu0 0
      %3490 = vmatpush1.bf16.msra.mxu0 0
      %3491 = vmatprep.subr.bf16.mxu0 0
      %3492 = vmatpush1.bf16.msra.mxu0 0
      %3493 = vmatprep.subr.bf16.mxu0 0
      %3494 = vmatpush1.bf16.msra.mxu0 0
      %3495 = vmatprep.subr.bf16.mxu0 0
      %3496 = vmatpush1.bf16.msra.mxu0 0
      %3497 = vmatprep.subr.bf16.mxu0 0
      %3498 = vmatpush1.bf16.msra.mxu0 0
      %3499 = vmatprep.subr.bf16.mxu0 0
      %3500 = vmatpush1.bf16.msra.mxu0 0
      %3501 = vmatprep.subr.bf16.mxu0 0
      %3502 = vmatpush1.bf16.msra.mxu0 0
      %3503 = vmatprep.subr.bf16.mxu0 0
      %3504 = vmatpush1.bf16.msra.mxu0 0
      %3505 = vmatprep.subr.bf16.mxu0 0
      %3506 = vmatpush1.bf16.msra.mxu0 0
      %3507 = vmatprep.subr.bf16.mxu0 0
      %3508 = vmatpush1.bf16.msra.mxu0 0
      %3509 = vmatprep.mubr.bf16.mxu0 0
      %3510 = vmatmul.mubr.bf16.gmra.mrb[0].mxu0 %v3315
      %v3511 = vpop.f32.mrb[0].mxu0
      %v3512 = vadd.f32 %v3451, %v3511
      %v3513 = vpop.f32.mrb[0].mxu0
      %v3514 = vpop.f32.mrb[0].mxu0
      %v3515 = vadd.f32 %v3451, %v3514
      %v3516 = vpop.f32.mrb[0].mxu0
      %3517 = vdwg.mxu0
      %v3518 = vpack.c.bf16 %v3355, %v3352
      %v3519 = vpack.c.bf16 %v3435, %v3432
      %vm3520 = vcmask 64512
      %v3522 = vsel %vm3520, %v3518, 0
      %v3525 = vsel %vm3520, %v3519, 0
      %3527 = vmatprep.subr.bf16.mxu0 0
      %3528 = vmatpush1.bf16.xpose.msra.mxu0 %v3525
      %3529 = vmatprep.subr.bf16.mxu0 0
      %3530 = vmatpush1.bf16.xpose.msra.mxu0 0
      %3531 = vmatprep.subr.bf16.mxu0 0
      %3532 = vmatpush1.bf16.xpose.msra.mxu0 0
      %3533 = vmatprep.subr.bf16.mxu0 0
      %3534 = vmatpush1.bf16.xpose.msra.mxu0 0
      %3535 = vmatprep.subr.bf16.mxu0 0
      %3536 = vmatpush1.bf16.xpose.msra.mxu0 0
      %3537 = vmatprep.subr.bf16.mxu0 0
      %3538 = vmatpush1.bf16.xpose.msra.mxu0 0
      %3539 = vmatprep.subr.bf16.mxu0 0
      %3540 = vmatpush1.bf16.xpose.msra.mxu0 0
      %3541 = vmatprep.subr.bf16.mxu0 0
      %3542 = vmatpush1.bf16.xpose.msra.mxu0 0
      %3543 = vmatprep.subr.bf16.mxu0 0
      %3544 = vmatpush1.bf16.xpose.msra.mxu0 0
      %3545 = vmatprep.subr.bf16.mxu0 0
      %3546 = vmatpush1.bf16.xpose.msra.mxu0 0
      %3547 = vmatprep.subr.bf16.mxu0 0
      %3548 = vmatpush1.bf16.xpose.msra.mxu0 0
      %3549 = vmatprep.subr.bf16.mxu0 0
      %3550 = vmatpush1.bf16.xpose.msra.mxu0 0
      %3551 = vmatprep.subr.bf16.mxu0 0
      %3552 = vmatpush1.bf16.xpose.msra.mxu0 0
      %3553 = vmatprep.subr.bf16.mxu0 0
      %3554 = vmatpush1.bf16.xpose.msra.mxu0 0
      %3555 = vmatprep.subr.bf16.mxu0 0
      %3556 = vmatpush1.bf16.xpose.msra.mxu0 0
      %3557 = vmatprep.subr.bf16.mxu0 0
      %3558 = vmatpush1.bf16.xpose.msra.mxu0 0
      %3559 = vmatprep.mubr.bf16.mxu0 0
      %3560 = vmatmul.mubr.bf16.gmra.mrb[0].mxu0 %v3522
      %v3561 = vpop.f32.mrb[0].mxu0
      %v3562 = vadd.f32 0.0, %v3561
      %v3563 = vpop.f32.mrb[0].mxu0
      %v3564 = vpop.f32.mrb[0].mxu0
      %v3565 = vadd.f32 0.0, %v3564
      %v3566 = vpop.f32.mrb[0].mxu0
      %3567 = vdwg.mxu0
      %vm3568 = vcmask 130048
      %v3569 = vsel %vm3568, %v3562, -inf
      %3570 = vmax.xlane.f32.xlu0 %v3569
      %v3571 = vpop.xlane.xlu0 %3570
      %v3572 = vsel %vm3568, %v3565, -inf
      %3573 = vmax.xlane.f32.xlu0 %v3572
      %v3574 = vpop.xlane.xlu0 %3573
      %v3575 = vsub.f32 %v3562, %v3571
      %v3576 = vsub.f32 %v3565, %v3574
      %v3577 = vmul.f32 %v3575, 1.442695
      %v3578 = vpow.pop %v3577
      %v3579 = vmul.f32 %v3576, 1.442695
      %v3580 = vpow.pop %v3579
      %v3581 = vsel %vm3568, %v3578, 0.0
      %3582 = vadd.xlane.f32.xlu0 %v3581
      %v3583 = vpop.xlane.xlu0 %3582
      %v3584 = vsel %vm3568, %v3580, 0.0
      %3585 = vadd.xlane.f32.xlu0 %v3584
      %v3586 = vpop.xlane.xlu0 %3585
      %v3587 = vrcp.pop %v3583
      %v3588 = vrcp.pop %v3586
      %v3589 = vmul.f32 %v3578, %v3587
      %v3590 = vmul.f32 %v3580, %v3588
      %v3591 = vpack.c.bf16 %v3590, %v3589
      %v3592 = vpack.c.bf16 %v3515, %v3512
      %v3594 = vsel %vm3568, %v3591, 0
      %3596 = vmatprep.subr.bf16.mxu0 0
      %3597 = vmatpush1.bf16.msra.mxu0 %v3592
      %3598 = vmatprep.subr.bf16.mxu0 0
      %3599 = vmatpush1.bf16.msra.mxu0 0
      %3600 = vmatprep.subr.bf16.mxu0 0
      %3601 = vmatpush1.bf16.msra.mxu0 0
      %3602 = vmatprep.subr.bf16.mxu0 0
      %3603 = vmatpush1.bf16.msra.mxu0 0
      %3604 = vmatprep.subr.bf16.mxu0 0
      %3605 = vmatpush1.bf16.msra.mxu0 0
      %3606 = vmatprep.subr.bf16.mxu0 0
      %3607 = vmatpush1.bf16.msra.mxu0 0
      %3608 = vmatprep.subr.bf16.mxu0 0
      %3609 = vmatpush1.bf16.msra.mxu0 0
      %3610 = vmatprep.subr.bf16.mxu0 0
      %3611 = vmatpush1.bf16.msra.mxu0 0
      %3612 = vmatprep.subr.bf16.mxu0 0
      %3613 = vmatpush1.bf16.msra.mxu0 0
      %3614 = vmatprep.subr.bf16.mxu0 0
      %3615 = vmatpush1.bf16.msra.mxu0 0
      %3616 = vmatprep.subr.bf16.mxu0 0
      %3617 = vmatpush1.bf16.msra.mxu0 0
      %3618 = vmatprep.subr.bf16.mxu0 0
      %3619 = vmatpush1.bf16.msra.mxu0 0
      %3620 = vmatprep.subr.bf16.mxu0 0
      %3621 = vmatpush1.bf16.msra.mxu0 0
      %3622 = vmatprep.subr.bf16.mxu0 0
      %3623 = vmatpush1.bf16.msra.mxu0 0
      %3624 = vmatprep.subr.bf16.mxu0 0
      %3625 = vmatpush1.bf16.msra.mxu0 0
      %3626 = vmatprep.subr.bf16.mxu0 0
      %3627 = vmatpush1.bf16.msra.mxu0 0
      %3628 = vmatprep.mubr.bf16.mxu0 0
      %3629 = vmatmul.mubr.bf16.gmra.mrb[0].mxu0 %v3594
      %v3630 = vpop.f32.mrb[0].mxu0
      %v3631 = vadd.f32 0.0, %v3630
      %v3632 = vpop.f32.mrb[0].mxu0
      %v3633 = vpop.f32.mrb[0].mxu0
      %v3634 = vadd.f32 0.0, %v3633
      %v3635 = vpop.f32.mrb[0].mxu0
      %3636 = vdwg.mxu0
      %s3637 = sld [smem:[#allocation2]]
      %v3638 = vstv %s3637
      %v3639 = vmul.f32 %v3638, %v3631
      %v3640 = vmul.f32 %v3638, %v3634
      %v3641 = vadd.f32 %v3639, %v3272
      %v3642 = vadd.f32 %v3640, %v3273
      %v3643 = vpack.c.bf16 %v3642, %v3641
      %v3644 = vld [vmem:[%s17] sm:$0xf]
      %v3645 = vld [vmem:[%s17 + $0x4] sm:$0xf]
      %v3646 = vld [vmem:[%s17 + $0x8] sm:$0xf]
      %v3647 = vld [vmem:[%s17 + $0xc] sm:$0xf]
      %v3648 = vld [vmem:[%s17 + $0x10] sm:$0xf]
      %v3649 = vld [vmem:[%s17 + $0x14] sm:$0xf]
      %v3650 = vld [vmem:[%s17 + $0x18] sm:$0xf]
      %v3651 = vld [vmem:[%s17 + $0x1c] sm:$0xf]
      %v3652 = vld [vmem:[%s17 + $0x20] sm:$0xf]
      %v3653 = vld [vmem:[%s17 + $0x24] sm:$0xf]
      %v3654 = vld [vmem:[%s17 + $0x28] sm:$0xf]
      %v3655 = vld [vmem:[%s17 + $0x2c] sm:$0xf]
      %v3656 = vld [vmem:[%s17 + $0x30] sm:$0xf]
      %v3657 = vld [vmem:[%s17 + $0x34] sm:$0xf]
      %v3658 = vld [vmem:[%s17 + $0x38] sm:$0xf]
      %v3659 = vld [vmem:[%s17 + $0x3c] sm:$0xf]
      %v3660 = vld [vmem:[%s17 + $0x40] sm:$0xf]
      %v3661 = vld [vmem:[%s17 + $0x44] sm:$0xf]
      %v3680 = vunpack.c.l.b16 %v3644
      %v3681 = vunpack.c.l.b16 %v3645
      %v3682 = vunpack.c.l.b16 %v3646
      %v3683 = vunpack.c.l.b16 %v3647
      %v3684 = vunpack.c.l.b16 %v3648
      %v3685 = vunpack.c.l.b16 %v3649
      %v3686 = vunpack.c.l.b16 %v3650
      %v3687 = vunpack.c.l.b16 %v3651
      %v3688 = vunpack.c.l.b16 %v3652
      %v3689 = vunpack.c.l.b16 %v3653
      %v3690 = vunpack.c.l.b16 %v3654
      %v3691 = vunpack.c.l.b16 %v3655
      %v3692 = vunpack.c.l.b16 %v3656
      %v3693 = vunpack.c.l.b16 %v3657
      %v3694 = vunpack.c.l.b16 %v3658
      %v3695 = vunpack.c.l.b16 %v3659
      %v3696 = vunpack.c.l.b16 %v3660
      %v3697 = vunpack.c.l.b16 %v3661
      %v3698 = vpack.c.b16 %v3681, %v3680
      %v3699 = vpack.c.b16 %v3683, %v3682
      %v3700 = vpack.c.b16 %v3685, %v3684
      %v3701 = vpack.c.b16 %v3687, %v3686
      %v3702 = vpack.c.b16 %v3689, %v3688
      %v3703 = vpack.c.b16 %v3691, %v3690
      %v3704 = vpack.c.b16 %v3693, %v3692
      %v3705 = vpack.c.b16 %v3695, %v3694
      %v3706 = vpack.c.b16 %v3697, %v3696
      %v3708 = vsel %vm3568, %v3698, 0
      %v3711 = vsel %vm3568, %v3699, 0
      %v3714 = vsel %vm3568, %v3700, 0
      %v3717 = vsel %vm3568, %v3701, 0
      %v3720 = vsel %vm3568, %v3702, 0
      %v3723 = vsel %vm3568, %v3703, 0
      %v3726 = vsel %vm3568, %v3704, 0
      %v3729 = vsel %vm3568, %v3705, 0
      %v3732 = vsel %vm3568, %v3706, 0
      %3734 = vmatprep.subr.bf16.mxu0 0
      %3735 = vmatpush1.bf16.msra.mxu0 %v3643
      %3736 = vmatprep.subr.bf16.mxu0 0
      %3737 = vmatpush1.bf16.msra.mxu0 0
      %3738 = vmatprep.subr.bf16.mxu0 0
      %3739 = vmatpush1.bf16.msra.mxu0 0
      %3740 = vmatprep.subr.bf16.mxu0 0
      %3741 = vmatpush1.bf16.msra.mxu0 0
      %3742 = vmatprep.subr.bf16.mxu0 0
      %3743 = vmatpush1.bf16.msra.mxu0 0
      %3744 = vmatprep.subr.bf16.mxu0 0
      %3745 = vmatpush1.bf16.msra.mxu0 0
      %3746 = vmatprep.subr.bf16.mxu0 0
      %3747 = vmatpush1.bf16.msra.mxu0 0
      %3748 = vmatprep.subr.bf16.mxu0 0
      %3749 = vmatpush1.bf16.msra.mxu0 0
      %3750 = vmatprep.subr.bf16.mxu0 0
      %3751 = vmatpush1.bf16.msra.mxu0 0
      %3752 = vmatprep.subr.bf16.mxu0 0
      %3753 = vmatpush1.bf16.msra.mxu0 0
      %3754 = vmatprep.subr.bf16.mxu0 0
      %3755 = vmatpush1.bf16.msra.mxu0 0
      %3756 = vmatprep.subr.bf16.mxu0 0
      %3757 = vmatpush1.bf16.msra.mxu0 0
      %3758 = vmatprep.subr.bf16.mxu0 0
      %3759 = vmatpush1.bf16.msra.mxu0 0
      %3760 = vmatprep.subr.bf16.mxu0 0
      %3761 = vmatpush1.bf16.msra.mxu0 0
      %3762 = vmatprep.subr.bf16.mxu0 0
      %3763 = vmatpush1.bf16.msra.mxu0 0
      %3764 = vmatprep.subr.bf16.mxu0 0
      %3765 = vmatpush1.bf16.msra.mxu0 0
      %3766 = vmatprep.mubr.bf16.mxu0 0
      %3767 = vmatmul.mubr.bf16.gmra.mrb[0].mxu0 %v3708
      %v3768 = vpop.f32.mrb[0].mxu0
      %v3769 = vadd.f32 0.0, %v3768
      %v3770 = vpop.f32.mrb[0].mxu0
      %v3771 = vpop.f32.mrb[0].mxu0
      %v3772 = vadd.f32 0.0, %v3771
      %v3773 = vpop.f32.mrb[0].mxu0
      %3774 = vmatprep.mubr.bf16.mxu0 0
      %3775 = vmatmul.mubr.bf16.gmra.mrb[0].mxu0 %v3711
      %v3776 = vpop.f32.mrb[0].mxu0
      %v3777 = vadd.f32 0.0, %v3776
      %v3778 = vpop.f32.mrb[0].mxu0
      %v3779 = vpop.f32.mrb[0].mxu0
      %v3780 = vadd.f32 0.0, %v3779
      %v3781 = vpop.f32.mrb[0].mxu0
      %3782 = vmatprep.mubr.bf16.mxu0 0
      %3783 = vmatmul.mubr.bf16.gmra.mrb[0].mxu0 %v3714
      %v3784 = vpop.f32.mrb[0].mxu0
      %v3785 = vadd.f32 0.0, %v3784
      %v3786 = vpop.f32.mrb[0].mxu0
      %v3787 = vpop.f32.mrb[0].mxu0
      %v3788 = vadd.f32 0.0, %v3787
      %v3789 = vpop.f32.mrb[0].mxu0
      %3790 = vmatprep.mubr.bf16.mxu0 0
      %3791 = vmatmul.mubr.bf16.gmra.mrb[0].mxu0 %v3717
      %v3792 = vpop.f32.mrb[0].mxu0
      %v3793 = vadd.f32 0.0, %v3792
      %v3794 = vpop.f32.mrb[0].mxu0
      %v3795 = vpop.f32.mrb[0].mxu0
      %v3796 = vadd.f32 0.0, %v3795
      %v3797 = vpop.f32.mrb[0].mxu0
      %3798 = vmatprep.mubr.bf16.mxu0 0
      %3799 = vmatmul.mubr.bf16.gmra.mrb[0].mxu0 %v3720
      %v3800 = vpop.f32.mrb[0].mxu0
      %v3801 = vadd.f32 0.0, %v3800
      %v3802 = vpop.f32.mrb[0].mxu0
      %v3803 = vpop.f32.mrb[0].mxu0
      %v3804 = vadd.f32 0.0, %v3803
      %v3805 = vpop.f32.mrb[0].mxu0
      %3806 = vmatprep.mubr.bf16.mxu0 0
      %3807 = vmatmul.mubr.bf16.gmra.mrb[0].mxu0 %v3723
      %v3808 = vpop.f32.mrb[0].mxu0
      %v3809 = vadd.f32 0.0, %v3808
      %v3810 = vpop.f32.mrb[0].mxu0
      %v3811 = vpop.f32.mrb[0].mxu0
      %v3812 = vadd.f32 0.0, %v3811
      %v3813 = vpop.f32.mrb[0].mxu0
      %3814 = vmatprep.mubr.bf16.mxu0 0
      %3815 = vmatmul.mubr.bf16.gmra.mrb[0].mxu0 %v3726
      %v3816 = vpop.f32.mrb[0].mxu0
      %v3817 = vadd.f32 0.0, %v3816
      %v3818 = vpop.f32.mrb[0].mxu0
      %v3819 = vpop.f32.mrb[0].mxu0
      %v3820 = vadd.f32 0.0, %v3819
      %v3821 = vpop.f32.mrb[0].mxu0
      %3822 = vmatprep.mubr.bf16.mxu0 0
      %3823 = vmatmul.mubr.bf16.gmra.mrb[0].mxu0 %v3729
      %v3824 = vpop.f32.mrb[0].mxu0
      %v3825 = vadd.f32 0.0, %v3824
      %v3826 = vpop.f32.mrb[0].mxu0
      %v3827 = vpop.f32.mrb[0].mxu0
      %v3828 = vadd.f32 0.0, %v3827
      %v3829 = vpop.f32.mrb[0].mxu0
      %3830 = vmatprep.mubr.bf16.mxu0 0
      %3831 = vmatmul.mubr.bf16.gmra.mrb[0].mxu0 %v3732
      %v3832 = vpop.f32.mrb[0].mxu0
      %v3833 = vadd.f32 0.0, %v3832
      %v3834 = vpop.f32.mrb[0].mxu0
      %v3835 = vpop.f32.mrb[0].mxu0
      %v3836 = vadd.f32 0.0, %v3835
      %v3837 = vpop.f32.mrb[0].mxu0
      %3838 = vdwg.mxu0
      %v3839 = vpack.c.bf16 %v3772, %v3769
      %v3840 = vpack.c.bf16 %v3780, %v3777
      %v3841 = vpack.c.bf16 %v3788, %v3785
      %v3842 = vpack.c.bf16 %v3796, %v3793
      %v3843 = vpack.c.bf16 %v3804, %v3801
      %v3844 = vpack.c.bf16 %v3812, %v3809
      %v3845 = vpack.c.bf16 %v3820, %v3817
      %v3846 = vpack.c.bf16 %v3828, %v3825
      %v3847 = vpack.c.bf16 %v3836, %v3833
      %v3848 = vld [vmem:[%s18] sm:$0xf]
      %v3849 = vld [vmem:[%s18 + $0x4] sm:$0xf]
      %v3850 = vld [vmem:[%s18 + $0x8] sm:$0xf]
      %v3851 = vld [vmem:[%s18 + $0xc] sm:$0xf]
      %v3852 = vld [vmem:[%s18 + $0x10] sm:$0xf]
      %v3853 = vld [vmem:[%s18 + $0x14] sm:$0xf]
      %v3854 = vld [vmem:[%s18 + $0x18] sm:$0xf]
      %v3855 = vld [vmem:[%s18 + $0x1c] sm:$0xf]
      %s3856 = scalar_lea.vmem %s18, 32
      %v3857 = vld [vmem:[%s3856] sm:$0xf]
      %v3858 = vld [vmem:[%s3856 + $0x4] sm:$0xf]
      %v3859 = vld [vmem:[%s3856 + $0x8] sm:$0xf]
      %v3860 = vld [vmem:[%s3856 + $0xc] sm:$0xf]
      %v3861 = vld [vmem:[%s3856 + $0x10] sm:$0xf]
      %v3862 = vld [vmem:[%s3856 + $0x14] sm:$0xf]
      %v3863 = vld [vmem:[%s3856 + $0x18] sm:$0xf]
      %v3864 = vld [vmem:[%s3856 + $0x1c] sm:$0xf]
      %v3873 = vunpack.c.l.b16 %v3857
      %v3874 = vunpack.c.l.b16 %v3858
      %v3875 = vunpack.c.l.b16 %v3859
      %v3876 = vunpack.c.l.b16 %v3860
      %v3877 = vunpack.c.l.b16 %v3861
      %v3878 = vunpack.c.l.b16 %v3862
      %v3879 = vunpack.c.l.b16 %v3863
      %v3880 = vunpack.c.l.b16 %v3864
      %v3881 = vpack.c.b16 %v3874, %v3873
      %v3882 = vpack.c.b16 %v3876, %v3875
      %v3883 = vpack.c.b16 %v3878, %v3877
      %v3884 = vpack.c.b16 %v3880, %v3879
      %v3890 = vsel %vm1754, %v3840, 0
      %3892 = vmatprep.subr.bf16.mxu0 0
      %3893 = vmatpush1.bf16.msra.mxu0 %v3881
      %3894 = vmatprep.subr.bf16.mxu0 0
      %3895 = vmatpush1.bf16.msra.mxu0 %v3882
      %3896 = vmatprep.subr.bf16.mxu0 0
      %3897 = vmatpush1.bf16.msra.mxu0 %v3883
      %3898 = vmatprep.subr.bf16.mxu0 0
      %3899 = vmatpush1.bf16.msra.mxu0 %v3884
      %3900 = vmatprep.subr.bf16.mxu0 0
      %3901 = vmatpush1.bf16.msra.mxu0 0
      %3902 = vmatprep.subr.bf16.mxu0 0
      %3903 = vmatpush1.bf16.msra.mxu0 0
      %3904 = vmatprep.subr.bf16.mxu0 0
      %3905 = vmatpush1.bf16.msra.mxu0 0
      %3906 = vmatprep.subr.bf16.mxu0 0
      %3907 = vmatpush1.bf16.msra.mxu0 0
      %3908 = vmatprep.subr.bf16.mxu0 0
      %3909 = vmatpush1.bf16.msra.mxu0 0
      %3910 = vmatprep.subr.bf16.mxu0 0
      %3911 = vmatpush1.bf16.msra.mxu0 0
      %3912 = vmatprep.subr.bf16.mxu0 0
      %3913 = vmatpush1.bf16.msra.mxu0 0
      %3914 = vmatprep.subr.bf16.mxu0 0
      %3915 = vmatpush1.bf16.msra.mxu0 0
      %3916 = vmatprep.subr.bf16.mxu0 0
      %3917 = vmatpush1.bf16.msra.mxu0 0
      %3918 = vmatprep.subr.bf16.mxu0 0
      %3919 = vmatpush1.bf16.msra.mxu0 0
      %3920 = vmatprep.subr.bf16.mxu0 0
      %3921 = vmatpush1.bf16.msra.mxu0 0
      %3922 = vmatprep.subr.bf16.mxu0 0
      %3923 = vmatpush1.bf16.msra.mxu0 0
      %3924 = vmatprep.mubr.bf16.mxu0 0
      %3925 = vmatmul.mubr.bf16.gmra.mrb[0].mxu0 %v3890
      %v3926 = vpop.f32.mrb[0].mxu0
      %v3927 = vadd.f32 0.0, %v3926
      %v3928 = vpop.f32.mrb[0].mxu0
      %v3929 = vpop.f32.mrb[0].mxu0
      %v3930 = vadd.f32 0.0, %v3929
      %v3931 = vpop.f32.mrb[0].mxu0
      %3932 = vdwg.mxu0
      %v3941 = vunpack.c.l.b16 %v3848
      %v3942 = vunpack.c.l.b16 %v3849
      %v3943 = vunpack.c.l.b16 %v3850
      %v3944 = vunpack.c.l.b16 %v3851
      %v3945 = vunpack.c.l.b16 %v3852
      %v3946 = vunpack.c.l.b16 %v3853
      %v3947 = vunpack.c.l.b16 %v3854
      %v3948 = vunpack.c.l.b16 %v3855
      %v3949 = vpack.c.b16 %v3942, %v3941
      %v3950 = vpack.c.b16 %v3944, %v3943
      %v3951 = vpack.c.b16 %v3946, %v3945
      %v3952 = vpack.c.b16 %v3948, %v3947
      %v3958 = vsel %vm1754, %v3839, 0
      %3960 = vmatprep.subr.bf16.mxu0 0
      %3961 = vmatpush1.bf16.msra.mxu0 %v3949
      %3962 = vmatprep.subr.bf16.mxu0 0
      %3963 = vmatpush1.bf16.msra.mxu0 %v3950
      %3964 = vmatprep.subr.bf16.mxu0 0
      %3965 = vmatpush1.bf16.msra.mxu0 %v3951
      %3966 = vmatprep.subr.bf16.mxu0 0
      %3967 = vmatpush1.bf16.msra.mxu0 %v3952
      %3968 = vmatprep.subr.bf16.mxu0 0
      %3969 = vmatpush1.bf16.msra.mxu0 0
      %3970 = vmatprep.subr.bf16.mxu0 0
      %3971 = vmatpush1.bf16.msra.mxu0 0
      %3972 = vmatprep.subr.bf16.mxu0 0
      %3973 = vmatpush1.bf16.msra.mxu0 0
      %3974 = vmatprep.subr.bf16.mxu0 0
      %3975 = vmatpush1.bf16.msra.mxu0 0
      %3976 = vmatprep.subr.bf16.mxu0 0
      %3977 = vmatpush1.bf16.msra.mxu0 0
      %3978 = vmatprep.subr.bf16.mxu0 0
      %3979 = vmatpush1.bf16.msra.mxu0 0
      %3980 = vmatprep.subr.bf16.mxu0 0
      %3981 = vmatpush1.bf16.msra.mxu0 0
      %3982 = vmatprep.subr.bf16.mxu0 0
      %3983 = vmatpush1.bf16.msra.mxu0 0
      %3984 = vmatprep.subr.bf16.mxu0 0
      %3985 = vmatpush1.bf16.msra.mxu0 0
      %3986 = vmatprep.subr.bf16.mxu0 0
      %3987 = vmatpush1.bf16.msra.mxu0 0
      %3988 = vmatprep.subr.bf16.mxu0 0
      %3989 = vmatpush1.bf16.msra.mxu0 0
      %3990 = vmatprep.subr.bf16.mxu0 0
      %3991 = vmatpush1.bf16.msra.mxu0 0
      %3992 = vmatprep.mubr.bf16.mxu0 0
      %3993 = vmatmul.mubr.bf16.gmra.mrb[0].mxu0 %v3958
      %v3994 = vpop.f32.mrb[0].mxu0
      %v3995 = vadd.f32 %v3927, %v3994
      %v3996 = vpop.f32.mrb[0].mxu0
      %v3997 = vpop.f32.mrb[0].mxu0
      %v3998 = vadd.f32 %v3930, %v3997
      %v3999 = vpop.f32.mrb[0].mxu0
      %4000 = vdwg.mxu0
      %s4001 = scalar_lea.vmem %s18, 64
      %v4002 = vld [vmem:[%s4001] sm:$0xf]
      %v4003 = vld [vmem:[%s4001 + $0x4] sm:$0xf]
      %v4004 = vld [vmem:[%s4001 + $0x8] sm:$0xf]
      %v4005 = vld [vmem:[%s4001 + $0xc] sm:$0xf]
      %v4006 = vld [vmem:[%s4001 + $0x10] sm:$0xf]
      %v4007 = vld [vmem:[%s4001 + $0x14] sm:$0xf]
      %v4008 = vld [vmem:[%s4001 + $0x18] sm:$0xf]
      %v4009 = vld [vmem:[%s4001 + $0x1c] sm:$0xf]
      %v4018 = vunpack.c.l.b16 %v4002
      %v4019 = vunpack.c.l.b16 %v4003
      %v4020 = vunpack.c.l.b16 %v4004
      %v4021 = vunpack.c.l.b16 %v4005
      %v4022 = vunpack.c.l.b16 %v4006
      %v4023 = vunpack.c.l.b16 %v4007
      %v4024 = vunpack.c.l.b16 %v4008
      %v4025 = vunpack.c.l.b16 %v4009
      %v4026 = vpack.c.b16 %v4019, %v4018
      %v4027 = vpack.c.b16 %v4021, %v4020
      %v4028 = vpack.c.b16 %v4023, %v4022
      %v4029 = vpack.c.b16 %v4025, %v4024
      %v4035 = vsel %vm1754, %v3841, 0
      %4037 = vmatprep.subr.bf16.mxu0 0
      %4038 = vmatpush1.bf16.msra.mxu0 %v4026
      %4039 = vmatprep.subr.bf16.mxu0 0
      %4040 = vmatpush1.bf16.msra.mxu0 %v4027
      %4041 = vmatprep.subr.bf16.mxu0 0
      %4042 = vmatpush1.bf16.msra.mxu0 %v4028
      %4043 = vmatprep.subr.bf16.mxu0 0
      %4044 = vmatpush1.bf16.msra.mxu0 %v4029
      %4045 = vmatprep.subr.bf16.mxu0 0
      %4046 = vmatpush1.bf16.msra.mxu0 0
      %4047 = vmatprep.subr.bf16.mxu0 0
      %4048 = vmatpush1.bf16.msra.mxu0 0
      %4049 = vmatprep.subr.bf16.mxu0 0
      %4050 = vmatpush1.bf16.msra.mxu0 0
      %4051 = vmatprep.subr.bf16.mxu0 0
      %4052 = vmatpush1.bf16.msra.mxu0 0
      %4053 = vmatprep.subr.bf16.mxu0 0
      %4054 = vmatpush1.bf16.msra.mxu0 0
      %4055 = vmatprep.subr.bf16.mxu0 0
      %4056 = vmatpush1.bf16.msra.mxu0 0
      %4057 = vmatprep.subr.bf16.mxu0 0
      %4058 = vmatpush1.bf16.msra.mxu0 0
      %4059 = vmatprep.subr.bf16.mxu0 0
      %4060 = vmatpush1.bf16.msra.mxu0 0
      %4061 = vmatprep.subr.bf16.mxu0 0
      %4062 = vmatpush1.bf16.msra.mxu0 0
      %4063 = vmatprep.subr.bf16.mxu0 0
      %4064 = vmatpush1.bf16.msra.mxu0 0
      %4065 = vmatprep.subr.bf16.mxu0 0
      %4066 = vmatpush1.bf16.msra.mxu0 0
      %4067 = vmatprep.subr.bf16.mxu0 0
      %4068 = vmatpush1.bf16.msra.mxu0 0
      %4069 = vmatprep.mubr.bf16.mxu0 0
      %4070 = vmatmul.mubr.bf16.gmra.mrb[0].mxu0 %v4035
      %v4071 = vpop.f32.mrb[0].mxu0
      %v4072 = vadd.f32 0.0, %v4071
      %v4073 = vpop.f32.mrb[0].mxu0
      %v4074 = vpop.f32.mrb[0].mxu0
      %v4075 = vadd.f32 0.0, %v4074
      %v4076 = vpop.f32.mrb[0].mxu0
      %4077 = vdwg.mxu0
      %v4078 = vadd.f32 %v3995, %v4072
      %v4079 = vadd.f32 %v3998, %v4075
      %s4080 = scalar_lea.vmem %s18, 96
      %v4081 = vld [vmem:[%s4080] sm:$0xf]
      %v4082 = vld [vmem:[%s4080 + $0x4] sm:$0xf]
      %v4083 = vld [vmem:[%s4080 + $0x8] sm:$0xf]
      %v4084 = vld [vmem:[%s4080 + $0xc] sm:$0xf]
      %v4085 = vld [vmem:[%s4080 + $0x10] sm:$0xf]
      %v4086 = vld [vmem:[%s4080 + $0x14] sm:$0xf]
      %v4087 = vld [vmem:[%s4080 + $0x18] sm:$0xf]
      %v4088 = vld [vmem:[%s4080 + $0x1c] sm:$0xf]
      %v4097 = vunpack.c.l.b16 %v4081
      %v4098 = vunpack.c.l.b16 %v4082
      %v4099 = vunpack.c.l.b16 %v4083
      %v4100 = vunpack.c.l.b16 %v4084
      %v4101 = vunpack.c.l.b16 %v4085
      %v4102 = vunpack.c.l.b16 %v4086
      %v4103 = vunpack.c.l.b16 %v4087
      %v4104 = vunpack.c.l.b16 %v4088
      %v4105 = vpack.c.b16 %v4098, %v4097
      %v4106 = vpack.c.b16 %v4100, %v4099
      %v4107 = vpack.c.b16 %v4102, %v4101
      %v4108 = vpack.c.b16 %v4104, %v4103
      %v4114 = vsel %vm1754, %v3842, 0
      %4116 = vmatprep.subr.bf16.mxu0 0
      %4117 = vmatpush1.bf16.msra.mxu0 %v4105
      %4118 = vmatprep.subr.bf16.mxu0 0
      %4119 = vmatpush1.bf16.msra.mxu0 %v4106
      %4120 = vmatprep.subr.bf16.mxu0 0
      %4121 = vmatpush1.bf16.msra.mxu0 %v4107
      %4122 = vmatprep.subr.bf16.mxu0 0
      %4123 = vmatpush1.bf16.msra.mxu0 %v4108
      %4124 = vmatprep.subr.bf16.mxu0 0
      %4125 = vmatpush1.bf16.msra.mxu0 0
      %4126 = vmatprep.subr.bf16.mxu0 0
      %4127 = vmatpush1.bf16.msra.mxu0 0
      %4128 = vmatprep.subr.bf16.mxu0 0
      %4129 = vmatpush1.bf16.msra.mxu0 0
      %4130 = vmatprep.subr.bf16.mxu0 0
      %4131 = vmatpush1.bf16.msra.mxu0 0
      %4132 = vmatprep.subr.bf16.mxu0 0
      %4133 = vmatpush1.bf16.msra.mxu0 0
      %4134 = vmatprep.subr.bf16.mxu0 0
      %4135 = vmatpush1.bf16.msra.mxu0 0
      %4136 = vmatprep.subr.bf16.mxu0 0
      %4137 = vmatpush1.bf16.msra.mxu0 0
      %4138 = vmatprep.subr.bf16.mxu0 0
      %4139 = vmatpush1.bf16.msra.mxu0 0
      %4140 = vmatprep.subr.bf16.mxu0 0
      %4141 = vmatpush1.bf16.msra.mxu0 0
      %4142 = vmatprep.subr.bf16.mxu0 0
      %4143 = vmatpush1.bf16.msra.mxu0 0
      %4144 = vmatprep.subr.bf16.mxu0 0
      %4145 = vmatpush1.bf16.msra.mxu0 0
      %4146 = vmatprep.subr.bf16.mxu0 0
      %4147 = vmatpush1.bf16.msra.mxu0 0
      %4148 = vmatprep.mubr.bf16.mxu0 0
      %4149 = vmatmul.mubr.bf16.gmra.mrb[0].mxu0 %v4114
      %v4150 = vpop.f32.mrb[0].mxu0
      %v4151 = vadd.f32 0.0, %v4150
      %v4152 = vpop.f32.mrb[0].mxu0
      %v4153 = vpop.f32.mrb[0].mxu0
      %v4154 = vadd.f32 0.0, %v4153
      %v4155 = vpop.f32.mrb[0].mxu0
      %4156 = vdwg.mxu0
      %v4157 = vadd.f32 %v4078, %v4151
      %v4158 = vadd.f32 %v4079, %v4154
      %s4159 = scalar_lea.vmem %s18, 128
      %v4160 = vld [vmem:[%s4159] sm:$0xf]
      %v4161 = vld [vmem:[%s4159 + $0x4] sm:$0xf]
      %v4162 = vld [vmem:[%s4159 + $0x8] sm:$0xf]
      %v4163 = vld [vmem:[%s4159 + $0xc] sm:$0xf]
      %v4164 = vld [vmem:[%s4159 + $0x10] sm:$0xf]
      %v4165 = vld [vmem:[%s4159 + $0x14] sm:$0xf]
      %v4166 = vld [vmem:[%s4159 + $0x18] sm:$0xf]
      %v4167 = vld [vmem:[%s4159 + $0x1c] sm:$0xf]
      %v4176 = vunpack.c.l.b16 %v4160
      %v4177 = vunpack.c.l.b16 %v4161
      %v4178 = vunpack.c.l.b16 %v4162
      %v4179 = vunpack.c.l.b16 %v4163
      %v4180 = vunpack.c.l.b16 %v4164
      %v4181 = vunpack.c.l.b16 %v4165
      %v4182 = vunpack.c.l.b16 %v4166
      %v4183 = vunpack.c.l.b16 %v4167
      %v4184 = vpack.c.b16 %v4177, %v4176
      %v4185 = vpack.c.b16 %v4179, %v4178
      %v4186 = vpack.c.b16 %v4181, %v4180
      %v4187 = vpack.c.b16 %v4183, %v4182
      %v4193 = vsel %vm1754, %v3843, 0
      %4195 = vmatprep.subr.bf16.mxu0 0
      %4196 = vmatpush1.bf16.msra.mxu0 %v4184
      %4197 = vmatprep.subr.bf16.mxu0 0
      %4198 = vmatpush1.bf16.msra.mxu0 %v4185
      %4199 = vmatprep.subr.bf16.mxu0 0
      %4200 = vmatpush1.bf16.msra.mxu0 %v4186
      %4201 = vmatprep.subr.bf16.mxu0 0
      %4202 = vmatpush1.bf16.msra.mxu0 %v4187
      %4203 = vmatprep.subr.bf16.mxu0 0
      %4204 = vmatpush1.bf16.msra.mxu0 0
      %4205 = vmatprep.subr.bf16.mxu0 0
      %4206 = vmatpush1.bf16.msra.mxu0 0
      %4207 = vmatprep.subr.bf16.mxu0 0
      %4208 = vmatpush1.bf16.msra.mxu0 0
      %4209 = vmatprep.subr.bf16.mxu0 0
      %4210 = vmatpush1.bf16.msra.mxu0 0
      %4211 = vmatprep.subr.bf16.mxu0 0
      %4212 = vmatpush1.bf16.msra.mxu0 0
      %4213 = vmatprep.subr.bf16.mxu0 0
      %4214 = vmatpush1.bf16.msra.mxu0 0
      %4215 = vmatprep.subr.bf16.mxu0 0
      %4216 = vmatpush1.bf16.msra.mxu0 0
      %4217 = vmatprep.subr.bf16.mxu0 0
      %4218 = vmatpush1.bf16.msra.mxu0 0
      %4219 = vmatprep.subr.bf16.mxu0 0
      %4220 = vmatpush1.bf16.msra.mxu0 0
      %4221 = vmatprep.subr.bf16.mxu0 0
      %4222 = vmatpush1.bf16.msra.mxu0 0
      %4223 = vmatprep.subr.bf16.mxu0 0
      %4224 = vmatpush1.bf16.msra.mxu0 0
      %4225 = vmatprep.subr.bf16.mxu0 0
      %4226 = vmatpush1.bf16.msra.mxu0 0
      %4227 = vmatprep.mubr.bf16.mxu0 0
      %4228 = vmatmul.mubr.bf16.gmra.mrb[0].mxu0 %v4193
      %v4229 = vpop.f32.mrb[0].mxu0
      %v4230 = vadd.f32 0.0, %v4229
      %v4231 = vpop.f32.mrb[0].mxu0
      %v4232 = vpop.f32.mrb[0].mxu0
      %v4233 = vadd.f32 0.0, %v4232
      %v4234 = vpop.f32.mrb[0].mxu0
      %4235 = vdwg.mxu0
      %v4236 = vadd.f32 %v4157, %v4230
      %v4237 = vadd.f32 %v4158, %v4233
      %s4238 = scalar_lea.vmem %s18, 160
      %v4239 = vld [vmem:[%s4238] sm:$0xf]
      %v4240 = vld [vmem:[%s4238 + $0x4] sm:$0xf]
      %v4241 = vld [vmem:[%s4238 + $0x8] sm:$0xf]
      %v4242 = vld [vmem:[%s4238 + $0xc] sm:$0xf]
      %v4243 = vld [vmem:[%s4238 + $0x10] sm:$0xf]
      %v4244 = vld [vmem:[%s4238 + $0x14] sm:$0xf]
      %v4245 = vld [vmem:[%s4238 + $0x18] sm:$0xf]
      %v4246 = vld [vmem:[%s4238 + $0x1c] sm:$0xf]
      %v4255 = vunpack.c.l.b16 %v4239
      %v4256 = vunpack.c.l.b16 %v4240
      %v4257 = vunpack.c.l.b16 %v4241
      %v4258 = vunpack.c.l.b16 %v4242
      %v4259 = vunpack.c.l.b16 %v4243
      %v4260 = vunpack.c.l.b16 %v4244
      %v4261 = vunpack.c.l.b16 %v4245
      %v4262 = vunpack.c.l.b16 %v4246
      %v4263 = vpack.c.b16 %v4256, %v4255
      %v4264 = vpack.c.b16 %v4258, %v4257
      %v4265 = vpack.c.b16 %v4260, %v4259
      %v4266 = vpack.c.b16 %v4262, %v4261
      %v4272 = vsel %vm1754, %v3844, 0
      %4274 = vmatprep.subr.bf16.mxu0 0
      %4275 = vmatpush1.bf16.msra.mxu0 %v4263
      %4276 = vmatprep.subr.bf16.mxu0 0
      %4277 = vmatpush1.bf16.msra.mxu0 %v4264
      %4278 = vmatprep.subr.bf16.mxu0 0
      %4279 = vmatpush1.bf16.msra.mxu0 %v4265
      %4280 = vmatprep.subr.bf16.mxu0 0
      %4281 = vmatpush1.bf16.msra.mxu0 %v4266
      %4282 = vmatprep.subr.bf16.mxu0 0
      %4283 = vmatpush1.bf16.msra.mxu0 0
      %4284 = vmatprep.subr.bf16.mxu0 0
      %4285 = vmatpush1.bf16.msra.mxu0 0
      %4286 = vmatprep.subr.bf16.mxu0 0
      %4287 = vmatpush1.bf16.msra.mxu0 0
      %4288 = vmatprep.subr.bf16.mxu0 0
      %4289 = vmatpush1.bf16.msra.mxu0 0
      %4290 = vmatprep.subr.bf16.mxu0 0
      %4291 = vmatpush1.bf16.msra.mxu0 0
      %4292 = vmatprep.subr.bf16.mxu0 0
      %4293 = vmatpush1.bf16.msra.mxu0 0
      %4294 = vmatprep.subr.bf16.mxu0 0
      %4295 = vmatpush1.bf16.msra.mxu0 0
      %4296 = vmatprep.subr.bf16.mxu0 0
      %4297 = vmatpush1.bf16.msra.mxu0 0
      %4298 = vmatprep.subr.bf16.mxu0 0
      %4299 = vmatpush1.bf16.msra.mxu0 0
      %4300 = vmatprep.subr.bf16.mxu0 0
      %4301 = vmatpush1.bf16.msra.mxu0 0
      %4302 = vmatprep.subr.bf16.mxu0 0
      %4303 = vmatpush1.bf16.msra.mxu0 0
      %4304 = vmatprep.subr.bf16.mxu0 0
      %4305 = vmatpush1.bf16.msra.mxu0 0
      %4306 = vmatprep.mubr.bf16.mxu0 0
      %4307 = vmatmul.mubr.bf16.gmra.mrb[0].mxu0 %v4272
      %v4308 = vpop.f32.mrb[0].mxu0
      %v4309 = vadd.f32 0.0, %v4308
      %v4310 = vpop.f32.mrb[0].mxu0
      %v4311 = vpop.f32.mrb[0].mxu0
      %v4312 = vadd.f32 0.0, %v4311
      %v4313 = vpop.f32.mrb[0].mxu0
      %4314 = vdwg.mxu0
      %v4315 = vadd.f32 %v4236, %v4309
      %v4316 = vadd.f32 %v4237, %v4312
      %s4317 = scalar_lea.vmem %s18, 192
      %v4318 = vld [vmem:[%s4317] sm:$0xf]
      %v4319 = vld [vmem:[%s4317 + $0x4] sm:$0xf]
      %v4320 = vld [vmem:[%s4317 + $0x8] sm:$0xf]
      %v4321 = vld [vmem:[%s4317 + $0xc] sm:$0xf]
      %v4322 = vld [vmem:[%s4317 + $0x10] sm:$0xf]
      %v4323 = vld [vmem:[%s4317 + $0x14] sm:$0xf]
      %v4324 = vld [vmem:[%s4317 + $0x18] sm:$0xf]
      %v4325 = vld [vmem:[%s4317 + $0x1c] sm:$0xf]
      %v4334 = vunpack.c.l.b16 %v4318
      %v4335 = vunpack.c.l.b16 %v4319
      %v4336 = vunpack.c.l.b16 %v4320
      %v4337 = vunpack.c.l.b16 %v4321
      %v4338 = vunpack.c.l.b16 %v4322
      %v4339 = vunpack.c.l.b16 %v4323
      %v4340 = vunpack.c.l.b16 %v4324
      %v4341 = vunpack.c.l.b16 %v4325
      %v4342 = vpack.c.b16 %v4335, %v4334
      %v4343 = vpack.c.b16 %v4337, %v4336
      %v4344 = vpack.c.b16 %v4339, %v4338
      %v4345 = vpack.c.b16 %v4341, %v4340
      %v4351 = vsel %vm1754, %v3845, 0
      %4353 = vmatprep.subr.bf16.mxu0 0
      %4354 = vmatpush1.bf16.msra.mxu0 %v4342
      %4355 = vmatprep.subr.bf16.mxu0 0
      %4356 = vmatpush1.bf16.msra.mxu0 %v4343
      %4357 = vmatprep.subr.bf16.mxu0 0
      %4358 = vmatpush1.bf16.msra.mxu0 %v4344
      %4359 = vmatprep.subr.bf16.mxu0 0
      %4360 = vmatpush1.bf16.msra.mxu0 %v4345
      %4361 = vmatprep.subr.bf16.mxu0 0
      %4362 = vmatpush1.bf16.msra.mxu0 0
      %4363 = vmatprep.subr.bf16.mxu0 0
      %4364 = vmatpush1.bf16.msra.mxu0 0
      %4365 = vmatprep.subr.bf16.mxu0 0
      %4366 = vmatpush1.bf16.msra.mxu0 0
      %4367 = vmatprep.subr.bf16.mxu0 0
      %4368 = vmatpush1.bf16.msra.mxu0 0
      %4369 = vmatprep.subr.bf16.mxu0 0
      %4370 = vmatpush1.bf16.msra.mxu0 0
      %4371 = vmatprep.subr.bf16.mxu0 0
      %4372 = vmatpush1.bf16.msra.mxu0 0
      %4373 = vmatprep.subr.bf16.mxu0 0
      %4374 = vmatpush1.bf16.msra.mxu0 0
      %4375 = vmatprep.subr.bf16.mxu0 0
      %4376 = vmatpush1.bf16.msra.mxu0 0
      %4377 = vmatprep.subr.bf16.mxu0 0
      %4378 = vmatpush1.bf16.msra.mxu0 0
      %4379 = vmatprep.subr.bf16.mxu0 0
      %4380 = vmatpush1.bf16.msra.mxu0 0
      %4381 = vmatprep.subr.bf16.mxu0 0
      %4382 = vmatpush1.bf16.msra.mxu0 0
      %4383 = vmatprep.subr.bf16.mxu0 0
      %4384 = vmatpush1.bf16.msra.mxu0 0
      %4385 = vmatprep.mubr.bf16.mxu0 0
      %4386 = vmatmul.mubr.bf16.gmra.mrb[0].mxu0 %v4351
      %v4387 = vpop.f32.mrb[0].mxu0
      %v4388 = vadd.f32 0.0, %v4387
      %v4389 = vpop.f32.mrb[0].mxu0
      %v4390 = vpop.f32.mrb[0].mxu0
      %v4391 = vadd.f32 0.0, %v4390
      %v4392 = vpop.f32.mrb[0].mxu0
      %4393 = vdwg.mxu0
      %v4394 = vadd.f32 %v4315, %v4388
      %v4395 = vadd.f32 %v4316, %v4391
      %s4396 = scalar_lea.vmem %s18, 224
      %v4397 = vld [vmem:[%s4396] sm:$0xf]
      %v4398 = vld [vmem:[%s4396 + $0x4] sm:$0xf]
      %v4399 = vld [vmem:[%s4396 + $0x8] sm:$0xf]
      %v4400 = vld [vmem:[%s4396 + $0xc] sm:$0xf]
      %v4401 = vld [vmem:[%s4396 + $0x10] sm:$0xf]
      %v4402 = vld [vmem:[%s4396 + $0x14] sm:$0xf]
      %v4403 = vld [vmem:[%s4396 + $0x18] sm:$0xf]
      %v4404 = vld [vmem:[%s4396 + $0x1c] sm:$0xf]
      %v4413 = vunpack.c.l.b16 %v4397
      %v4414 = vunpack.c.l.b16 %v4398
      %v4415 = vunpack.c.l.b16 %v4399
      %v4416 = vunpack.c.l.b16 %v4400
      %v4417 = vunpack.c.l.b16 %v4401
      %v4418 = vunpack.c.l.b16 %v4402
      %v4419 = vunpack.c.l.b16 %v4403
      %v4420 = vunpack.c.l.b16 %v4404
      %v4421 = vpack.c.b16 %v4414, %v4413
      %v4422 = vpack.c.b16 %v4416, %v4415
      %v4423 = vpack.c.b16 %v4418, %v4417
      %v4424 = vpack.c.b16 %v4420, %v4419
      %v4430 = vsel %vm1754, %v3846, 0
      %4432 = vmatprep.subr.bf16.mxu0 0
      %4433 = vmatpush1.bf16.msra.mxu0 %v4421
      %4434 = vmatprep.subr.bf16.mxu0 0
      %4435 = vmatpush1.bf16.msra.mxu0 %v4422
      %4436 = vmatprep.subr.bf16.mxu0 0
      %4437 = vmatpush1.bf16.msra.mxu0 %v4423
      %4438 = vmatprep.subr.bf16.mxu0 0
      %4439 = vmatpush1.bf16.msra.mxu0 %v4424
      %4440 = vmatprep.subr.bf16.mxu0 0
      %4441 = vmatpush1.bf16.msra.mxu0 0
      %4442 = vmatprep.subr.bf16.mxu0 0
      %4443 = vmatpush1.bf16.msra.mxu0 0
      %4444 = vmatprep.subr.bf16.mxu0 0
      %4445 = vmatpush1.bf16.msra.mxu0 0
      %4446 = vmatprep.subr.bf16.mxu0 0
      %4447 = vmatpush1.bf16.msra.mxu0 0
      %4448 = vmatprep.subr.bf16.mxu0 0
      %4449 = vmatpush1.bf16.msra.mxu0 0
      %4450 = vmatprep.subr.bf16.mxu0 0
      %4451 = vmatpush1.bf16.msra.mxu0 0
      %4452 = vmatprep.subr.bf16.mxu0 0
      %4453 = vmatpush1.bf16.msra.mxu0 0
      %4454 = vmatprep.subr.bf16.mxu0 0
      %4455 = vmatpush1.bf16.msra.mxu0 0
      %4456 = vmatprep.subr.bf16.mxu0 0
      %4457 = vmatpush1.bf16.msra.mxu0 0
      %4458 = vmatprep.subr.bf16.mxu0 0
      %4459 = vmatpush1.bf16.msra.mxu0 0
      %4460 = vmatprep.subr.bf16.mxu0 0
      %4461 = vmatpush1.bf16.msra.mxu0 0
      %4462 = vmatprep.subr.bf16.mxu0 0
      %4463 = vmatpush1.bf16.msra.mxu0 0
      %4464 = vmatprep.mubr.bf16.mxu0 0
      %4465 = vmatmul.mubr.bf16.gmra.mrb[0].mxu0 %v4430
      %v4466 = vpop.f32.mrb[0].mxu0
      %v4467 = vadd.f32 0.0, %v4466
      %v4468 = vpop.f32.mrb[0].mxu0
      %v4469 = vpop.f32.mrb[0].mxu0
      %v4470 = vadd.f32 0.0, %v4469
      %v4471 = vpop.f32.mrb[0].mxu0
      %4472 = vdwg.mxu0
      %v4473 = vadd.f32 %v4394, %v4467
      %v4474 = vadd.f32 %v4395, %v4470
      %s4475 = scalar_lea.vmem %s18, 256
      %v4476 = vld [vmem:[%s4475] sm:$0xf]
      %v4477 = vld [vmem:[%s4475 + $0x4] sm:$0xf]
      %v4478 = vld [vmem:[%s4475 + $0x8] sm:$0xf]
      %v4479 = vld [vmem:[%s4475 + $0xc] sm:$0xf]
      %v4480 = vld [vmem:[%s4475 + $0x10] sm:$0xf]
      %v4481 = vld [vmem:[%s4475 + $0x14] sm:$0xf]
      %v4482 = vld [vmem:[%s4475 + $0x18] sm:$0xf]
      %v4483 = vld [vmem:[%s4475 + $0x1c] sm:$0xf]
      %v4492 = vunpack.c.l.b16 %v4476
      %v4493 = vunpack.c.l.b16 %v4477
      %v4494 = vunpack.c.l.b16 %v4478
      %v4495 = vunpack.c.l.b16 %v4479
      %v4496 = vunpack.c.l.b16 %v4480
      %v4497 = vunpack.c.l.b16 %v4481
      %v4498 = vunpack.c.l.b16 %v4482
      %v4499 = vunpack.c.l.b16 %v4483
      %v4500 = vpack.c.b16 %v4493, %v4492
      %v4501 = vpack.c.b16 %v4495, %v4494
      %v4502 = vpack.c.b16 %v4497, %v4496
      %v4503 = vpack.c.b16 %v4499, %v4498
      %v4509 = vsel %vm1754, %v3847, 0
      %4511 = vmatprep.subr.bf16.mxu0 0
      %4512 = vmatpush1.bf16.msra.mxu0 %v4500
      %4513 = vmatprep.subr.bf16.mxu0 0
      %4514 = vmatpush1.bf16.msra.mxu0 %v4501
      %4515 = vmatprep.subr.bf16.mxu0 0
      %4516 = vmatpush1.bf16.msra.mxu0 %v4502
      %4517 = vmatprep.subr.bf16.mxu0 0
      %4518 = vmatpush1.bf16.msra.mxu0 %v4503
      %4519 = vmatprep.subr.bf16.mxu0 0
      %4520 = vmatpush1.bf16.msra.mxu0 0
      %4521 = vmatprep.subr.bf16.mxu0 0
      %4522 = vmatpush1.bf16.msra.mxu0 0
      %4523 = vmatprep.subr.bf16.mxu0 0
      %4524 = vmatpush1.bf16.msra.mxu0 0
      %4525 = vmatprep.subr.bf16.mxu0 0
      %4526 = vmatpush1.bf16.msra.mxu0 0
      %4527 = vmatprep.subr.bf16.mxu0 0
      %4528 = vmatpush1.bf16.msra.mxu0 0
      %4529 = vmatprep.subr.bf16.mxu0 0
      %4530 = vmatpush1.bf16.msra.mxu0 0
      %4531 = vmatprep.subr.bf16.mxu0 0
      %4532 = vmatpush1.bf16.msra.mxu0 0
      %4533 = vmatprep.subr.bf16.mxu0 0
      %4534 = vmatpush1.bf16.msra.mxu0 0
      %4535 = vmatprep.subr.bf16.mxu0 0
      %4536 = vmatpush1.bf16.msra.mxu0 0
      %4537 = vmatprep.subr.bf16.mxu0 0
      %4538 = vmatpush1.bf16.msra.mxu0 0
      %4539 = vmatprep.subr.bf16.mxu0 0
      %4540 = vmatpush1.bf16.msra.mxu0 0
      %4541 = vmatprep.subr.bf16.mxu0 0
      %4542 = vmatpush1.bf16.msra.mxu0 0
      %4543 = vmatprep.mubr.bf16.mxu0 0
      %4544 = vmatmul.mubr.bf16.gmra.mrb[0].mxu0 %v4509
      %v4545 = vpop.f32.mrb[0].mxu0
      %v4546 = vadd.f32 0.0, %v4545
      %v4547 = vpop.f32.mrb[0].mxu0
      %v4548 = vpop.f32.mrb[0].mxu0
      %v4549 = vadd.f32 0.0, %v4548
      %v4550 = vpop.f32.mrb[0].mxu0
      %4551 = vdwg.mxu0
      %v4552 = vadd.f32 %v4473, %v4546
      %v4553 = vadd.f32 %v4474, %v4549
      %v4554 = vld [vmem:[%s19] sm:$0x1]
      %v4556 = vlaneseq
      %v4557 = vshrl.u32 %v4556, 7
      %v4558 = vsub.s32 0, %v4557
      %v4559 = vrot.slane %v4554, %v4558
      %v4561 = vmul.f32 %v4552, %v4559
      %v4562 = vmul.f32 %v4553, %v4559
      %v4563 = vld [vmem:[%s20] sm:$0x1]
      %v4565 = vlaneseq
      %v4566 = vshrl.u32 %v4565, 7
      %v4567 = vsub.s32 0, %v4566
      %v4568 = vrot.slane %v4563, %v4567
      %v4570 = vadd.f32 %v4561, %v4568
      %v4571 = vadd.f32 %v4562, %v4568
      %v4572 = vmax.f32 %v4570, 0.0
      %v4573 = vmax.f32 %v4571, 0.0
      %v4574 = vadd.f32 %v4572, %v4573
      %v4575 = vrot.slane %v4574, 4
      %v4576 = vadd.f32 %v4574, %v4575
      %v4577 = vrot.slane %v4576, 2
      %v4578 = vadd.f32 %v4576, %v4577
      %v4579 = vrot.slane %v4578, 1
      %v4580 = vadd.f32 %v4578, %v4579
      %v4581 = vrcp.pop 16.0
      %v4582 = vmul.f32 %v4580, %v4581
      %4583 = vst [vmem:[%s655] sm:$0xff] %v4582
      %p4584 = scmp.lt.s32.totalorder %s33, 1
      %s4585 = scalar_select %p4584, %s33, 1
      %s4586 = smul.addr %s4585, 8
      %s4587 = scalar_lea.vmem %s21, %s4586
      // Predicated region
      $region105: #{gating_cnn_with_attention.1} parent=103 // pred_check
        %p4588 = pneg %p497
      $region106: #{gating_cnn_with_attention.1} parent=103 // pred_check_branch
        %4590 = sbr.rel (%p4588) target = $region108
      $region107: #{gating_cnn_with_attention.1} parent=103 // pred_region
        _
      $region108: #{gating_cnn_with_attention.1} parent=103 // pred_fallthru
        _
    $region104: #{gating_cnn_with_attention.1} parent=5 // pred_fallthru
      _
    %p4591 = scmp.le.s32.totalorder 2, %s28
    // Predicated region
    $region109: #{gating_cnn_with_attention.1} parent=5 // pred_check
      %p4592 = pneg %p4591
    $region110: #{gating_cnn_with_attention.1} parent=5 // pred_check_branch
      %4594 = sbr.rel (%p4592) target = $region112
    $region111: #{gating_cnn_with_attention.1} parent=5 // pred_region
      %s4595 = ssub.s32 %s28, 2
      // Predicated region
      $region113: #{gating_cnn_with_attention.1} parent=111 // pred_check
        %p4596 = pneg %p503
      $region114: #{gating_cnn_with_attention.1} parent=111 // pred_check_branch
        %4598 = sbr.rel (%p4596) target = $region116
      $region115: #{gating_cnn_with_attention.1} parent=111 // pred_region
        %p4599 = scmp.lt.s32.totalorder %s34, 1
        %s4600 = scalar_select %p4599, %s34, 1
        %s4601 = smul.addr %s4600, 8
        %s4602 = scalar_lea.vmem %s21, %s4601
      $region116: #{gating_cnn_with_attention.1} parent=111 // pred_fallthru
        _
    $region112: #{gating_cnn_with_attention.1} parent=5 // pred_fallthru
      _
  $region6: #{gating_cnn_with_attention.1} parent=0 // loop_footer
    %s32 = sadd.s32 1, %s28
  $region7: #{gating_cnn_with_attention.1} parent=0 // loop_footer_branch
    %27 = sbr.rel target = $region3
  $region8: #{gating_cnn_with_attention.1} parent=0 // loop_exit
    _

</llo_original>
